<compile_context>
chip_gen: v5e
topology: v5e:2x2
jax: 0.10.0
libtpu: 0.0.40
codegen_flags: <defaults>
</compile_context>

<pallas_src>
import numpy as np
import jax
import jax.numpy as jnp
from jax.experimental import pallas as pl
from jax.experimental.pallas import tpu as pltpu

ENC_CH = [(1, 16), (16, 32), (32, 64), (64, 128), (128, 256)]
DEC_CH = [(256, 128), (128, 64), (64, 32), (32, 16), (16, 1)]

# 32x32 super-cells processed per grid step (must be a multiple of 8).
# ~10 MiB VMEM at 64; v7x (64 MiB VMEM) could use 32, v5e/v6e could go higher.
MAX_CELLS_PER_BLOCK = 64

# Bit de-interleave permutation (pure transpose, no gather):
# [B, ch, h4..h0, cw, w4..w0] -> [B, ch, cw, h4, w4, h3, w3, h2, w2, h1, w1, h0, w0]
_PERM = (0, 1, 7, 2, 8, 3, 9, 4, 10, 5, 11, 6, 12)
_INV_PERM = tuple(int(i) for i in np.argsort(_PERM))


# --------------------------------------------------------------------------- #
#                              fused Pallas kernel                             #
# --------------------------------------------------------------------------- #
def _autoenc_kernel(x_ref,
                    ew1, eb1, ew2, eb2, ew3, eb3, ew4, eb4, ew5, eb5,
                    dw1, db1, dw2, db2, dw3, db3, dw4, db4, dw5, db5,
                    out_ref,
                    p0, e2, e3, e4, u1, u2, u3):
    """Whole 10-layer autoencoder for one block of G 32x32 cells.

    Row digit convention within a block: d_k = 2*h_k + w_k is the 2x2
    sub-position consumed/produced by (de)conv level k+1; cell = cell index
    within the block.
    """
    G = x_ref.shape[0] // 4
    f32 = jnp.float32
    bf16 = jnp.bfloat16

    def dot(a, w_ref):
        return jnp.dot(a, w_ref[...], preferred_element_type=f32)

    def relu(a):
        return jnp.maximum(a, 0.0)

    # -------- unfold the lane-dense input into 4x4-patch rows ---------------
    # x_ref: (4G, 256)  rows=(d4,cell)          lanes=(d3,d2,d1,d0)
    # p0   : (64G, 16)  rows=(d2,d3,d4,cell)    lanes=(d1,d0)
    for q2 in range(4):
        for q3 in range(4):
            p0[(q2 * 4 + q3) * 4 * G:(q2 * 4 + q3 + 1) * 4 * G, :] = \
                x_ref[:, (q3 * 4 + q2) * 16:(q3 * 4 + q2 + 1) * 16]

    # -------- encoder: one MXU matmul per Conv2d(k=2,s=2) -------------------
    y = relu(dot(p0[...], ew1) + eb1[...])                 # (64G, 64) L1 (block-diag, taps d0)
    y = relu(dot(y.astype(bf16), ew2) + eb2[...])          # (64G, 32) L2 (taps d1 in K)
    for j in range(4):                                     # fold d2 into lanes
        e2[:, 32 * j:32 * (j + 1)] = y[16 * G * j:16 * G * (j + 1), :].astype(bf16)
    y = relu(dot(e2[...], ew3) + eb3[...])                 # (16G, 64) L3
    for j in range(4):                                     # fold d3
        e3[:, 64 * j:64 * (j + 1)] = y[4 * G * j:4 * G * (j + 1), :].astype(bf16)
    y = relu(dot(e3[...], ew4) + eb4[...])                 # (4G, 128) L4
    for j in range(4):                                     # fold d4
        e4[:, 128 * j:128 * (j + 1)] = y[G * j:G * (j + 1), :].astype(bf16)
    y = relu(dot(e4[...], ew5) + eb5[...])                 # (G, 256)  bottleneck

    # -------- decoder: one MXU matmul per ConvTranspose2d(k=2,s=2) ----------
    z = relu(dot(y.astype(bf16), dw1) + db1[...])          # (G, 512)  taps d4 in N
    for j in range(4):                                     # unfold d4 to rows
        u1[G * j:G * (j + 1), :] = z[:, 128 * j:128 * (j + 1)].astype(bf16)
    z = relu(dot(u1[...], dw2) + db2[...])                 # (4G, 256) taps d3 in N
    for j in range(4):                                     # unfold d3
        u2[4 * G * j:4 * G * (j + 1), :] = z[:, 64 * j:64 * (j + 1)].astype(bf16)
    z = relu(dot(u2[...], dw3) + db3[...])                 # (16G, 128) taps d2 in N
    for j in range(4):                                     # unfold d2
        u3[16 * G * j:16 * G * (j + 1), :] = z[:, 32 * j:32 * (j + 1)].astype(bf16)
    z = relu(dot(u3[...], dw4) + db4[...])                 # (64G, 64) taps d1 in N
    z = dot(z.astype(bf16), dw5) + db5[...]                # (64G, 16) last layer, Identity

    # -------- fold back into the lane-dense output block --------------------
    # out_ref: (4G, 256)  rows=(d4,cell)  lanes=(d3,d2,d1,d0)
    for q3 in range(4):
        for q2 in range(4):
            out_ref[:, (q3 * 4 + q2) * 16:(q3 * 4 + q2 + 1) * 16] = \
                z[(q2 * 4 + q3) * 4 * G:(q2 * 4 + q3 + 1) * 4 * G, :]


def _run_block_pipeline(xq, flat_params, G, NB):
    m = 4 * G
    in_specs = [pl.BlockSpec((m, 256), lambda i: (i, 0))]
    # Weights/biases: whole-array, single-buffered VMEM residents (DMA'd once
    # per call, not per grid step).
    in_specs += [pl.BlockSpec(memory_space=pltpu.MemorySpace.VMEM)
                 for _ in flat_params]
    scratch = [
        pltpu.VMEM((64 * G, 16), jnp.bfloat16),    # p0  (4x4-patch pixel rows)
        pltpu.VMEM((16 * G, 128), jnp.bfloat16),   # e2  (L3 folded input)
        pltpu.VMEM((4 * G, 256), jnp.bfloat16),    # e3  (L4 folded input)
        pltpu.VMEM((G, 512), jnp.bfloat16),        # e4  (L5 folded input)
        pltpu.VMEM((4 * G, 128), jnp.bfloat16),    # u1  (dec-2 input)
        pltpu.VMEM((16 * G, 64), jnp.bfloat16),    # u2  (dec-3 input)
        pltpu.VMEM((64 * G, 32), jnp.bfloat16),    # u3  (dec-4 input)
    ]
    return pl.pallas_call(
        _autoenc_kernel,
        out_shape=jax.ShapeDtypeStruct((NB * m, 256), jnp.float32),
        grid=(NB,),
        in_specs=in_specs,
        out_specs=pl.BlockSpec((m, 256), lambda i: (i, 0)),
        scratch_shapes=scratch,
        compiler_params=pltpu.CompilerParams(
            dimension_semantics=("parallel",),      # cell blocks are independent
            vmem_limit_bytes=32 * 1024 * 1024),
    )(xq, *flat_params)


# --------------------------------------------------------------------------- #
#                 layout plumbing (reshape/transpose only, no gathers)         #
# --------------------------------------------------------------------------- #
@jax.jit
def forward(packed, x):
    B, C, H, W = x.shape
    assert C == 1 and H % 32 == 0 and W % 32 == 0, "needs 1 channel, spatial % 32 == 0"
    nc = B * (H // 32) * (W // 32)                  # number of 32x32 super-cells
    G = min(MAX_CELLS_PER_BLOCK, ((nc + 7) // 8) * 8)   # cells per grid step (mult. of 8)
    ncp = ((nc + G - 1) // G) * G                   # pad cell count to a multiple of G
    NB = ncp // G

    # space -> block-major planar quadtree (bit de-interleave): pure transposes.
    t = x.reshape(B, H // 32, 2, 2, 2, 2, 2, W // 32, 2, 2, 2, 2, 2)
    t = jnp.transpose(t, _PERM).reshape(nc, 4, 256)
    if ncp != nc:
        t = jnp.pad(t, ((0, ncp - nc), (0, 0), (0, 0)))
    xq = t.reshape(NB, G, 4, 256).transpose(0, 2, 1, 3).reshape(NB * 4 * G, 256)
    xq = xq.astype(jnp.bfloat16)                    # halve the input HBM stream

    flat = []
    for w, b in packed:
        flat += [w, b]
    yq = _run_block_pipeline(xq, flat, G, NB)       # one fused Pallas kernel

    # inverse: quadtree -> space
    t = yq.reshape(NB, 4, G, 256).transpose(0, 2, 1, 3).reshape(ncp, 4, 256)[:nc]
    t = t.reshape(B, H // 32, W // 32, 2, 2, 2, 2, 2, 2, 2, 2, 2, 2)
    t = jnp.transpose(t, _INV_PERM)
    return t.reshape(B, 1, H, W)


# --------------------------------------------------------------------------- #
#          parameters (PyTorch layout) + packing + pure-JAX reference          #
# --------------------------------------------------------------------------- #
def init_params(key):
    params = {"enc": [], "dec": []}
    for ci, co in ENC_CH:
        key, k1, k2 = jax.random.split(key, 3)
        bound = 1.0 / np.sqrt(ci * 4)
        w = jax.random.uniform(k1, (co, ci, 2, 2), jnp.float32, -bound, bound)
        b = jax.random.uniform(k2, (co,), jnp.float32, -bound, bound)
        params["enc"].append((w, b))
    for ci, co in DEC_CH:
        key, k1, k2 = jax.random.split(key, 3)
        bound = 1.0 / np.sqrt(ci * 4)
        w = jax.random.uniform(k1, (ci, co, 2, 2), jnp.float32, -bound, bound)
        b = jax.random.uniform(k2, (co,), jnp.float32, -bound, bound)
        params["dec"].append((w, b))
    return params


def pack_params(params):
    """PyTorch-layout conv params -> kernel matmul layout (weights bf16, biases f32)."""
    packed = []

    # encoder layer 1 (Cin=1): block-diagonal (16, 64), tap d1 shared on both sides
    w, b = params["enc"][0]
    w = np.asarray(w, np.float32).reshape(16, 4)            # (cout, 2p+q)
    w1f = np.zeros((16, 64), np.float32)
    for d1 in range(4):
        w1f[d1 * 4:(d1 + 1) * 4, d1 * 16:(d1 + 1) * 16] = w.T
    b1f = np.tile(np.asarray(b, np.float32), 4).reshape(1, 64)
    packed.append((jnp.asarray(w1f, jnp.bfloat16), jnp.asarray(b1f)))

    # encoder layers 2..5: (4*Ci, Co), rows ordered (2p+q, ci)
    for w, b in params["enc"][1:]:
        co, ci = int(w.shape[0]), int(w.shape[1])
        wf = np.transpose(np.asarray(w, np.float32), (2, 3, 1, 0)).reshape(4 * ci, co)
        packed.append((jnp.asarray(wf, jnp.bfloat16),
                       jnp.asarray(np.asarray(b, np.float32).reshape(1, co))))

    # decoder layers 1..4: (Ci, 4*Co), columns ordered (2p+q, co)
    for w, b in params["dec"][:4]:
        ci, co = int(w.shape[0]), int(w.shape[1])
        wf = np.transpose(np.asarray(w, np.float32), (0, 2, 3, 1)).reshape(ci, 4 * co)
        bf = np.tile(np.asarray(b, np.float32), 4).reshape(1, 4 * co)
        packed.append((jnp.asarray(wf, jnp.bfloat16), jnp.asarray(bf)))

    # decoder layer 5 (Cout=1): block-diagonal (64, 16), tap d1 shared on both sides
    w, b = params["dec"][4]
    w = np.asarray(w, np.float32).reshape(16, 4)            # (cin, 2p+q)
    w5f = np.zeros((64, 16), np.float32)
    for d1 in range(4):
        w5f[d1 * 16:(d1 + 1) * 16, d1 * 4:(d1 + 1) * 4] = w
    b5f = np.full((1, 16), float(np.asarray(b, np.float32)[0]), np.float32)
    packed.append((jnp.asarray(w5f, jnp.bfloat16), jnp.asarray(b5f)))
    return packed


def _ref_conv(x, w, b):
    B, C, H, W = x.shape
    xr = x.reshape(B, C, H // 2, 2, W // 2, 2)
    y = jnp.einsum('bchpwq,ocpq->bohw', xr, w) + b[None, :, None, None]
    return jnp.maximum(y, 0.0)


def _ref_convT(x, w, b, relu):
    B, C, H, W = x.shape
    Co = w.shape[1]
    y = jnp.einsum('bchw,copq->bohpwq', x, w).reshape(B, Co, 2 * H, 2 * W)
    y = y + b[None, :, None, None]
    return jnp.maximum(y, 0.0) if relu else y


@jax.jit
def forward_ref(params, x):
    for w, b in params["enc"]:
        x = _ref_conv(x, w, b)
    for i, (w, b) in enumerate(params["dec"]):
        x = _ref_convT(x, w, b, relu=i < len(params["dec"]) - 1)
    return x


# --------------------------------------------------------------------------- #
#                                     main                                     #
# --------------------------------------------------------------------------- #
if __name__ == "__main__":
    key = jax.random.PRNGKey(0)
    key, pkey, xkey = jax.random.split(key, 3)
    params = init_params(pkey)
    packed = pack_params(params)

    # 5 stride-2 convs require spatial dims divisible by 32.
    B, Cin, H, W = 2, 1, 32, 32
    x = jax.random.normal(xkey, (B, Cin, H, W), jnp.float32)

    y = jax.block_until_ready(forward(packed, x))
    assert y.shape == (B, 1, H, W), y.shape

    y_ref = jax.block_until_ready(forward_ref(params, x))
    scale = float(jnp.max(jnp.abs(y_ref)))
    err = float(jnp.max(jnp.abs(y - y_ref)))
    # bf16 matmul path: tolerance relative to the output scale (catches any
    # layout/packing bug, which would give O(1) relative error).
    np.testing.assert_allclose(np.asarray(y), np.asarray(y_ref),
                               rtol=5e-2, atol=max(7e-2 * scale, 1e-5))
    print("KERNEL_OK")
</pallas_src>

<mosaic_0001>
module attributes {stable_mosaic.version = 11 : i64} {
  func.func @_autoenc_kernel(%arg0: i32, %arg1: memref<32x256xbf16, #tpu.memory_space<vmem>>, %arg2: memref<16x64xbf16, #tpu.memory_space<vmem>>, %arg3: memref<1x64xf32, #tpu.memory_space<vmem>>, %arg4: memref<64x32xbf16, #tpu.memory_space<vmem>>, %arg5: memref<1x32xf32, #tpu.memory_space<vmem>>, %arg6: memref<128x64xbf16, #tpu.memory_space<vmem>>, %arg7: memref<1x64xf32, #tpu.memory_space<vmem>>, %arg8: memref<256x128xbf16, #tpu.memory_space<vmem>>, %arg9: memref<1x128xf32, #tpu.memory_space<vmem>>, %arg10: memref<512x256xbf16, #tpu.memory_space<vmem>>, %arg11: memref<1x256xf32, #tpu.memory_space<vmem>>, %arg12: memref<256x512xbf16, #tpu.memory_space<vmem>>, %arg13: memref<1x512xf32, #tpu.memory_space<vmem>>, %arg14: memref<128x256xbf16, #tpu.memory_space<vmem>>, %arg15: memref<1x256xf32, #tpu.memory_space<vmem>>, %arg16: memref<64x128xbf16, #tpu.memory_space<vmem>>, %arg17: memref<1x128xf32, #tpu.memory_space<vmem>>, %arg18: memref<32x64xbf16, #tpu.memory_space<vmem>>, %arg19: memref<1x64xf32, #tpu.memory_space<vmem>>, %arg20: memref<64x16xbf16, #tpu.memory_space<vmem>>, %arg21: memref<1x16xf32, #tpu.memory_space<vmem>>, %arg22: memref<32x256xf32, #tpu.memory_space<vmem>>, %arg23: memref<512x16xbf16, #tpu.memory_space<vmem>>, %arg24: memref<128x128xbf16, #tpu.memory_space<vmem>>, %arg25: memref<32x256xbf16, #tpu.memory_space<vmem>>, %arg26: memref<8x512xbf16, #tpu.memory_space<vmem>>, %arg27: memref<32x128xbf16, #tpu.memory_space<vmem>>, %arg28: memref<128x64xbf16, #tpu.memory_space<vmem>>, %arg29: memref<512x32xbf16, #tpu.memory_space<vmem>>) attributes {dimension_semantics = [#tpu.dimension_semantics<parallel>], iteration_bounds = array<i64: 1>, scalar_prefetch = 0 : i64, scratch_operands = 7 : i64, tpu.core_type = #tpu.core_type<tc>, window_params = [{transform_indices = @transform_0, window_bounds = array<i64: 32, 256>}, {pipeline_mode = #tpu.pipeline_mode<synchronous>, transform_indices = @transform_1, window_bounds = array<i64: 16, 64>}, {pipeline_mode = #tpu.pipeline_mode<synchronous>, transform_indices = @transform_2, window_bounds = array<i64: 1, 64>}, {pipeline_mode = #tpu.pipeline_mode<synchronous>, transform_indices = @transform_3, window_bounds = array<i64: 64, 32>}, {pipeline_mode = #tpu.pipeline_mode<synchronous>, transform_indices = @transform_4, window_bounds = array<i64: 1, 32>}, {pipeline_mode = #tpu.pipeline_mode<synchronous>, transform_indices = @transform_5, window_bounds = array<i64: 128, 64>}, {pipeline_mode = #tpu.pipeline_mode<synchronous>, transform_indices = @transform_6, window_bounds = array<i64: 1, 64>}, {pipeline_mode = #tpu.pipeline_mode<synchronous>, transform_indices = @transform_7, window_bounds = array<i64: 256, 128>}, {pipeline_mode = #tpu.pipeline_mode<synchronous>, transform_indices = @transform_8, window_bounds = array<i64: 1, 128>}, {pipeline_mode = #tpu.pipeline_mode<synchronous>, transform_indices = @transform_9, window_bounds = array<i64: 512, 256>}, {pipeline_mode = #tpu.pipeline_mode<synchronous>, transform_indices = @transform_10, window_bounds = array<i64: 1, 256>}, {pipeline_mode = #tpu.pipeline_mode<synchronous>, transform_indices = @transform_11, window_bounds = array<i64: 256, 512>}, {pipeline_mode = #tpu.pipeline_mode<synchronous>, transform_indices = @transform_12, window_bounds = array<i64: 1, 512>}, {pipeline_mode = #tpu.pipeline_mode<synchronous>, transform_indices = @transform_13, window_bounds = array<i64: 128, 256>}, {pipeline_mode = #tpu.pipeline_mode<synchronous>, transform_indices = @transform_14, window_bounds = array<i64: 1, 256>}, {pipeline_mode = #tpu.pipeline_mode<synchronous>, transform_indices = @transform_15, window_bounds = array<i64: 64, 128>}, {pipeline_mode = #tpu.pipeline_mode<synchronous>, transform_indices = @transform_16, window_bounds = array<i64: 1, 128>}, {pipeline_mode = #tpu.pipeline_mode<synchronous>, transform_indices = @transform_17, window_bounds = array<i64: 32, 64>}, {pipeline_mode = #tpu.pipeline_mode<synchronous>, transform_indices = @transform_18, window_bounds = array<i64: 1, 64>}, {pipeline_mode = #tpu.pipeline_mode<synchronous>, transform_indices = @transform_19, window_bounds = array<i64: 64, 16>}, {pipeline_mode = #tpu.pipeline_mode<synchronous>, transform_indices = @transform_20, window_bounds = array<i64: 1, 16>}, {transform_indices = @transform_21, window_bounds = array<i64: 32, 256>}]} {
    %c0 = arith.constant 0 : index
    %c0_0 = arith.constant 0 : index
    %0 = vector.load %arg1[%c0, %c0_0] : memref<32x256xbf16, #tpu.memory_space<vmem>>, vector<32x16xbf16>
    %c0_1 = arith.constant 0 : index
    %c0_2 = arith.constant 0 : index
    %1 = vector.load %arg23[%c0_1, %c0_2] : memref<512x16xbf16, #tpu.memory_space<vmem>>, vector<32x16xbf16>
    tpu.vector_store %arg23[%c0_1, %c0_2], %0 {strides = array<i32>} : memref<512x16xbf16, #tpu.memory_space<vmem>>, vector<32x16xbf16>,
    %c0_3 = arith.constant 0 : index
    %c64 = arith.constant 64 : index
    %2 = vector.load %arg1[%c0_3, %c64] : memref<32x256xbf16, #tpu.memory_space<vmem>>, vector<32x16xbf16>
    %c32 = arith.constant 32 : index
    %c0_4 = arith.constant 0 : index
    %3 = vector.load %arg23[%c32, %c0_4] : memref<512x16xbf16, #tpu.memory_space<vmem>>, vector<32x16xbf16>
    tpu.vector_store %arg23[%c32, %c0_4], %2 {strides = array<i32>} : memref<512x16xbf16, #tpu.memory_space<vmem>>, vector<32x16xbf16>,
    %c0_5 = arith.constant 0 : index
    %c128 = arith.constant 128 : index
    %4 = vector.load %arg1[%c0_5, %c128] : memref<32x256xbf16, #tpu.memory_space<vmem>>, vector<32x16xbf16>
    %c64_6 = arith.constant 64 : index
    %c0_7 = arith.constant 0 : index
    %5 = vector.load %arg23[%c64_6, %c0_7] : memref<512x16xbf16, #tpu.memory_space<vmem>>, vector<32x16xbf16>
    tpu.vector_store %arg23[%c64_6, %c0_7], %4 {strides = array<i32>} : memref<512x16xbf16, #tpu.memory_space<vmem>>, vector<32x16xbf16>,
    %c0_8 = arith.constant 0 : index
    %c192 = arith.constant 192 : index
    %6 = vector.load %arg1[%c0_8, %c192] : memref<32x256xbf16, #tpu.memory_space<vmem>>, vector<32x16xbf16>
    %c96 = arith.constant 96 : index
    %c0_9 = arith.constant 0 : index
    %7 = vector.load %arg23[%c96, %c0_9] : memref<512x16xbf16, #tpu.memory_space<vmem>>, vector<32x16xbf16>
    tpu.vector_store %arg23[%c96, %c0_9], %6 {strides = array<i32>} : memref<512x16xbf16, #tpu.memory_space<vmem>>, vector<32x16xbf16>,
    %c0_10 = arith.constant 0 : index
    %c16 = arith.constant 16 : index
    %8 = vector.load %arg1[%c0_10, %c16] : memref<32x256xbf16, #tpu.memory_space<vmem>>, vector<32x16xbf16>
    %c128_11 = arith.constant 128 : index
    %c0_12 = arith.constant 0 : index
    %9 = vector.load %arg23[%c128_11, %c0_12] : memref<512x16xbf16, #tpu.memory_space<vmem>>, vector<32x16xbf16>
    tpu.vector_store %arg23[%c128_11, %c0_12], %8 {strides = array<i32>} : memref<512x16xbf16, #tpu.memory_space<vmem>>, vector<32x16xbf16>,
    %c0_13 = arith.constant 0 : index
    %c80 = arith.constant 80 : index
    %10 = vector.load %arg1[%c0_13, %c80] : memref<32x256xbf16, #tpu.memory_space<vmem>>, vector<32x16xbf16>
    %c160 = arith.constant 160 : index
    %c0_14 = arith.constant 0 : index
    %11 = vector.load %arg23[%c160, %c0_14] : memref<512x16xbf16, #tpu.memory_space<vmem>>, vector<32x16xbf16>
    tpu.vector_store %arg23[%c160, %c0_14], %10 {strides = array<i32>} : memref<512x16xbf16, #tpu.memory_space<vmem>>, vector<32x16xbf16>,
    %c0_15 = arith.constant 0 : index
    %c144 = arith.constant 144 : index
    %12 = vector.load %arg1[%c0_15, %c144] : memref<32x256xbf16, #tpu.memory_space<vmem>>, vector<32x16xbf16>
    %c192_16 = arith.constant 192 : index
    %c0_17 = arith.constant 0 : index
    %13 = vector.load %arg23[%c192_16, %c0_17] : memref<512x16xbf16, #tpu.memory_space<vmem>>, vector<32x16xbf16>
    tpu.vector_store %arg23[%c192_16, %c0_17], %12 {strides = array<i32>} : memref<512x16xbf16, #tpu.memory_space<vmem>>, vector<32x16xbf16>,
    %c0_18 = arith.constant 0 : index
    %c208 = arith.constant 208 : index
    %14 = vector.load %arg1[%c0_18, %c208] : memref<32x256xbf16, #tpu.memory_space<vmem>>, vector<32x16xbf16>
    %c224 = arith.constant 224 : index
    %c0_19 = arith.constant 0 : index
    %15 = vector.load %arg23[%c224, %c0_19] : memref<512x16xbf16, #tpu.memory_space<vmem>>, vector<32x16xbf16>
    tpu.vector_store %arg23[%c224, %c0_19], %14 {strides = array<i32>} : memref<512x16xbf16, #tpu.memory_space<vmem>>, vector<32x16xbf16>,
    %c0_20 = arith.constant 0 : index
    %c32_21 = arith.constant 32 : index
    %16 = vector.load %arg1[%c0_20, %c32_21] : memref<32x256xbf16, #tpu.memory_space<vmem>>, vector<32x16xbf16>
    %c256 = arith.constant 256 : index
    %c0_22 = arith.constant 0 : index
    %17 = vector.load %arg23[%c256, %c0_22] : memref<512x16xbf16, #tpu.memory_space<vmem>>, vector<32x16xbf16>
    tpu.vector_store %arg23[%c256, %c0_22], %16 {strides = array<i32>} : memref<512x16xbf16, #tpu.memory_space<vmem>>, vector<32x16xbf16>,
    %c0_23 = arith.constant 0 : index
    %c96_24 = arith.constant 96 : index
    %18 = vector.load %arg1[%c0_23, %c96_24] : memref<32x256xbf16, #tpu.memory_space<vmem>>, vector<32x16xbf16>
    %c288 = arith.constant 288 : index
    %c0_25 = arith.constant 0 : index
    %19 = vector.load %arg23[%c288, %c0_25] : memref<512x16xbf16, #tpu.memory_space<vmem>>, vector<32x16xbf16>
    tpu.vector_store %arg23[%c288, %c0_25], %18 {strides = array<i32>} : memref<512x16xbf16, #tpu.memory_space<vmem>>, vector<32x16xbf16>,
    %c0_26 = arith.constant 0 : index
    %c160_27 = arith.constant 160 : index
    %20 = vector.load %arg1[%c0_26, %c160_27] : memref<32x256xbf16, #tpu.memory_space<vmem>>, vector<32x16xbf16>
    %c320 = arith.constant 320 : index
    %c0_28 = arith.constant 0 : index
    %21 = vector.load %arg23[%c320, %c0_28] : memref<512x16xbf16, #tpu.memory_space<vmem>>, vector<32x16xbf16>
    tpu.vector_store %arg23[%c320, %c0_28], %20 {strides = array<i32>} : memref<512x16xbf16, #tpu.memory_space<vmem>>, vector<32x16xbf16>,
    %c0_29 = arith.constant 0 : index
    %c224_30 = arith.constant 224 : index
    %22 = vector.load %arg1[%c0_29, %c224_30] : memref<32x256xbf16, #tpu.memory_space<vmem>>, vector<32x16xbf16>
    %c352 = arith.constant 352 : index
    %c0_31 = arith.constant 0 : index
    %23 = vector.load %arg23[%c352, %c0_31] : memref<512x16xbf16, #tpu.memory_space<vmem>>, vector<32x16xbf16>
    tpu.vector_store %arg23[%c352, %c0_31], %22 {strides = array<i32>} : memref<512x16xbf16, #tpu.memory_space<vmem>>, vector<32x16xbf16>,
    %c0_32 = arith.constant 0 : index
    %c48 = arith.constant 48 : index
    %24 = vector.load %arg1[%c0_32, %c48] : memref<32x256xbf16, #tpu.memory_space<vmem>>, vector<32x16xbf16>
    %c384 = arith.constant 384 : index
    %c0_33 = arith.constant 0 : index
    %25 = vector.load %arg23[%c384, %c0_33] : memref<512x16xbf16, #tpu.memory_space<vmem>>, vector<32x16xbf16>
    tpu.vector_store %arg23[%c384, %c0_33], %24 {strides = array<i32>} : memref<512x16xbf16, #tpu.memory_space<vmem>>, vector<32x16xbf16>,
    %c0_34 = arith.constant 0 : index
    %c112 = arith.constant 112 : index
    %26 = vector.load %arg1[%c0_34, %c112] : memref<32x256xbf16, #tpu.memory_space<vmem>>, vector<32x16xbf16>
    %c416 = arith.constant 416 : index
    %c0_35 = arith.constant 0 : index
    %27 = vector.load %arg23[%c416, %c0_35] : memref<512x16xbf16, #tpu.memory_space<vmem>>, vector<32x16xbf16>
    tpu.vector_store %arg23[%c416, %c0_35], %26 {strides = array<i32>} : memref<512x16xbf16, #tpu.memory_space<vmem>>, vector<32x16xbf16>,
    %c0_36 = arith.constant 0 : index
    %c176 = arith.constant 176 : index
    %28 = vector.load %arg1[%c0_36, %c176] : memref<32x256xbf16, #tpu.memory_space<vmem>>, vector<32x16xbf16>
    %c448 = arith.constant 448 : index
    %c0_37 = arith.constant 0 : index
    %29 = vector.load %arg23[%c448, %c0_37] : memref<512x16xbf16, #tpu.memory_space<vmem>>, vector<32x16xbf16>
    tpu.vector_store %arg23[%c448, %c0_37], %28 {strides = array<i32>} : memref<512x16xbf16, #tpu.memory_space<vmem>>, vector<32x16xbf16>,
    %c0_38 = arith.constant 0 : index
    %c240 = arith.constant 240 : index
    %30 = vector.load %arg1[%c0_38, %c240] : memref<32x256xbf16, #tpu.memory_space<vmem>>, vector<32x16xbf16>
    %c480 = arith.constant 480 : index
    %c0_39 = arith.constant 0 : index
    %31 = vector.load %arg23[%c480, %c0_39] : memref<512x16xbf16, #tpu.memory_space<vmem>>, vector<32x16xbf16>
    tpu.vector_store %arg23[%c480, %c0_39], %30 {strides = array<i32>} : memref<512x16xbf16, #tpu.memory_space<vmem>>, vector<32x16xbf16>,
    %c0_40 = arith.constant 0 : index
    %c0_41 = arith.constant 0 : index
    %32 = vector.load %arg23[%c0_40, %c0_41] : memref<512x16xbf16, #tpu.memory_space<vmem>>, vector<512x16xbf16>
    %c0_42 = arith.constant 0 : index
    %c0_43 = arith.constant 0 : index
    %33 = vector.load %arg2[%c0_42, %c0_43] : memref<16x64xbf16, #tpu.memory_space<vmem>>, vector<16x64xbf16>
    %cst = arith.constant dense<0.000000e+00> : vector<512x64xf32>
    %34 = tpu.matmul %32, %33, %cst {dimension_numbers = #tpu.dot_dimension_numbers<[1], [0], [0], [1], [0, 0, 1, 1], [], []>} : vector<512x16xbf16>, vector<16x64xbf16>, vector<512x64xf32> -> vector<512x64xf32>
    %c0_44 = arith.constant 0 : index
    %c0_45 = arith.constant 0 : index
    %35 = vector.load %arg3[%c0_44, %c0_45] : memref<1x64xf32, #tpu.memory_space<vmem>>, vector<1x64xf32>
    %36 = vector.broadcast %35 : vector<1x64xf32> to vector<512x64xf32>
    %37 = arith.addf %34, %36 : vector<512x64xf32>
    %cst_46 = arith.constant 0.000000e+00 : f32
    %38 = vector.broadcast %cst_46 : f32 to vector<512x64xf32>
    %39 = arith.maximumf %37, %38 : vector<512x64xf32>
    %40 = arith.truncf %39 : vector<512x64xf32> to vector<512x64xbf16>
    %c0_47 = arith.constant 0 : index
    %c0_48 = arith.constant 0 : index
    %41 = vector.load %arg4[%c0_47, %c0_48] : memref<64x32xbf16, #tpu.memory_space<vmem>>, vector<64x32xbf16>
    %cst_49 = arith.constant dense<0.000000e+00> : vector<512x32xf32>
    %42 = tpu.matmul %40, %41, %cst_49 {dimension_numbers = #tpu.dot_dimension_numbers<[1], [0], [0], [1], [0, 0, 1, 1], [], []>} : vector<512x64xbf16>, vector<64x32xbf16>, vector<512x32xf32> -> vector<512x32xf32>
    %c0_50 = arith.constant 0 : index
    %c0_51 = arith.constant 0 : index
    %43 = vector.load %arg5[%c0_50, %c0_51] : memref<1x32xf32, #tpu.memory_space<vmem>>, vector<1x32xf32>
    %44 = vector.broadcast %43 : vector<1x32xf32> to vector<512x32xf32>
    %45 = arith.addf %42, %44 : vector<512x32xf32>
    %cst_52 = arith.constant 0.000000e+00 : f32
    %46 = vector.broadcast %cst_52 : f32 to vector<512x32xf32>
    %47 = arith.maximumf %45, %46 : vector<512x32xf32>
    %48 = vector.extract_strided_slice %47 {offsets = [0, 0], sizes = [128, 32], strides = [1, 1]} : vector<512x32xf32> to vector<128x32xf32>
    %49 = arith.truncf %48 : vector<128x32xf32> to vector<128x32xbf16>
    %c0_53 = arith.constant 0 : index
    %c0_54 = arith.constant 0 : index
    %50 = vector.load %arg24[%c0_53, %c0_54] : memref<128x128xbf16, #tpu.memory_space<vmem>>, vector<128x32xbf16>
    tpu.vector_store %arg24[%c0_53, %c0_54], %49 {strides = array<i32>} : memref<128x128xbf16, #tpu.memory_space<vmem>>, vector<128x32xbf16>,
    %51 = vector.extract_strided_slice %47 {offsets = [128, 0], sizes = [128, 32], strides = [1, 1]} : vector<512x32xf32> to vector<128x32xf32>
    %52 = arith.truncf %51 : vector<128x32xf32> to vector<128x32xbf16>
    %c0_55 = arith.constant 0 : index
    %c32_56 = arith.constant 32 : index
    %53 = vector.load %arg24[%c0_55, %c32_56] : memref<128x128xbf16, #tpu.memory_space<vmem>>, vector<128x32xbf16>
    tpu.vector_store %arg24[%c0_55, %c32_56], %52 {strides = array<i32>} : memref<128x128xbf16, #tpu.memory_space<vmem>>, vector<128x32xbf16>,
    %54 = vector.extract_strided_slice %47 {offsets = [256, 0], sizes = [128, 32], strides = [1, 1]} : vector<512x32xf32> to vector<128x32xf32>
    %55 = arith.truncf %54 : vector<128x32xf32> to vector<128x32xbf16>
    %c0_57 = arith.constant 0 : index
    %c64_58 = arith.constant 64 : index
    %56 = vector.load %arg24[%c0_57, %c64_58] : memref<128x128xbf16, #tpu.memory_space<vmem>>, vector<128x32xbf16>
    tpu.vector_store %arg24[%c0_57, %c64_58], %55 {strides = array<i32>} : memref<128x128xbf16, #tpu.memory_space<vmem>>, vector<128x32xbf16>,
    %57 = vector.extract_strided_slice %47 {offsets = [384, 0], sizes = [128, 32], strides = [1, 1]} : vector<512x32xf32> to vector<128x32xf32>
    %58 = arith.truncf %57 : vector<128x32xf32> to vector<128x32xbf16>
    %c0_59 = arith.constant 0 : index
    %c96_60 = arith.constant 96 : index
    %59 = vector.load %arg24[%c0_59, %c96_60] : memref<128x128xbf16, #tpu.memory_space<vmem>>, vector<128x32xbf16>
    tpu.vector_store %arg24[%c0_59, %c96_60], %58 {strides = array<i32>} : memref<128x128xbf16, #tpu.memory_space<vmem>>, vector<128x32xbf16>,
    %c0_61 = arith.constant 0 : index
    %c0_62 = arith.constant 0 : index
    %60 = vector.load %arg24[%c0_61, %c0_62] : memref<128x128xbf16, #tpu.memory_space<vmem>>, vector<128x128xbf16>
    %c0_63 = arith.constant 0 : index
    %c0_64 = arith.constant 0 : index
    %61 = vector.load %arg6[%c0_63, %c0_64] : memref<128x64xbf16, #tpu.memory_space<vmem>>, vector<128x64xbf16>
    %cst_65 = arith.constant dense<0.000000e+00> : vector<128x64xf32>
    %62 = tpu.matmul %60, %61, %cst_65 {dimension_numbers = #tpu.dot_dimension_numbers<[1], [0], [0], [1], [0, 0, 1, 1], [], []>} : vector<128x128xbf16>, vector<128x64xbf16>, vector<128x64xf32> -> vector<128x64xf32>
    %c0_66 = arith.constant 0 : index
    %c0_67 = arith.constant 0 : index
    %63 = vector.load %arg7[%c0_66, %c0_67] : memref<1x64xf32, #tpu.memory_space<vmem>>, vector<1x64xf32>
    %64 = vector.broadcast %63 : vector<1x64xf32> to vector<128x64xf32>
    %65 = arith.addf %62, %64 : vector<128x64xf32>
    %cst_68 = arith.constant 0.000000e+00 : f32
    %66 = vector.broadcast %cst_68 : f32 to vector<128x64xf32>
    %67 = arith.maximumf %65, %66 : vector<128x64xf32>
    %68 = vector.extract_strided_slice %67 {offsets = [0, 0], sizes = [32, 64], strides = [1, 1]} : vector<128x64xf32> to vector<32x64xf32>
    %69 = arith.truncf %68 : vector<32x64xf32> to vector<32x64xbf16>
    %c0_69 = arith.constant 0 : index
    %c0_70 = arith.constant 0 : index
    %70 = vector.load %arg25[%c0_69, %c0_70] : memref<32x256xbf16, #tpu.memory_space<vmem>>, vector<32x64xbf16>
    tpu.vector_store %arg25[%c0_69, %c0_70], %69 {strides = array<i32>} : memref<32x256xbf16, #tpu.memory_space<vmem>>, vector<32x64xbf16>,
    %71 = vector.extract_strided_slice %67 {offsets = [32, 0], sizes = [32, 64], strides = [1, 1]} : vector<128x64xf32> to vector<32x64xf32>
    %72 = arith.truncf %71 : vector<32x64xf32> to vector<32x64xbf16>
    %c0_71 = arith.constant 0 : index
    %c64_72 = arith.constant 64 : index
    %73 = vector.load %arg25[%c0_71, %c64_72] : memref<32x256xbf16, #tpu.memory_space<vmem>>, vector<32x64xbf16>
    tpu.vector_store %arg25[%c0_71, %c64_72], %72 {strides = array<i32>} : memref<32x256xbf16, #tpu.memory_space<vmem>>, vector<32x64xbf16>,
    %74 = vector.extract_strided_slice %67 {offsets = [64, 0], sizes = [32, 64], strides = [1, 1]} : vector<128x64xf32> to vector<32x64xf32>
    %75 = arith.truncf %74 : vector<32x64xf32> to vector<32x64xbf16>
    %c0_73 = arith.constant 0 : index
    %c128_74 = arith.constant 128 : index
    %76 = vector.load %arg25[%c0_73, %c128_74] : memref<32x256xbf16, #tpu.memory_space<vmem>>, vector<32x64xbf16>
    tpu.vector_store %arg25[%c0_73, %c128_74], %75 {strides = array<i32>} : memref<32x256xbf16, #tpu.memory_space<vmem>>, vector<32x64xbf16>,
    %77 = vector.extract_strided_slice %67 {offsets = [96, 0], sizes = [32, 64], strides = [1, 1]} : vector<128x64xf32> to vector<32x64xf32>
    %78 = arith.truncf %77 : vector<32x64xf32> to vector<32x64xbf16>
    %c0_75 = arith.constant 0 : index
    %c192_76 = arith.constant 192 : index
    %79 = vector.load %arg25[%c0_75, %c192_76] : memref<32x256xbf16, #tpu.memory_space<vmem>>, vector<32x64xbf16>
    tpu.vector_store %arg25[%c0_75, %c192_76], %78 {strides = array<i32>} : memref<32x256xbf16, #tpu.memory_space<vmem>>, vector<32x64xbf16>,
    %c0_77 = arith.constant 0 : index
    %c0_78 = arith.constant 0 : index
    %80 = vector.load %arg25[%c0_77, %c0_78] : memref<32x256xbf16, #tpu.memory_space<vmem>>, vector<32x256xbf16>
    %c0_79 = arith.constant 0 : index
    %c0_80 = arith.constant 0 : index
    %81 = vector.load %arg8[%c0_79, %c0_80] : memref<256x128xbf16, #tpu.memory_space<vmem>>, vector<256x128xbf16>
    %cst_81 = arith.constant dense<0.000000e+00> : vector<32x128xf32>
    %82 = tpu.matmul %80, %81, %cst_81 {dimension_numbers = #tpu.dot_dimension_numbers<[1], [0], [0], [1], [0, 0, 1, 1], [], []>} : vector<32x256xbf16>, vector<256x128xbf16>, vector<32x128xf32> -> vector<32x128xf32>
    %c0_82 = arith.constant 0 : index
    %c0_83 = arith.constant 0 : index
    %83 = vector.load %arg9[%c0_82, %c0_83] : memref<1x128xf32, #tpu.memory_space<vmem>>, vector<1x128xf32>
    %84 = vector.broadcast %83 : vector<1x128xf32> to vector<32x128xf32>
    %85 = arith.addf %82, %84 : vector<32x128xf32>
    %cst_84 = arith.constant 0.000000e+00 : f32
    %86 = vector.broadcast %cst_84 : f32 to vector<32x128xf32>
    %87 = arith.maximumf %85, %86 : vector<32x128xf32>
    %88 = vector.extract_strided_slice %87 {offsets = [0, 0], sizes = [8, 128], strides = [1, 1]} : vector<32x128xf32> to vector<8x128xf32>
    %89 = arith.truncf %88 : vector<8x128xf32> to vector<8x128xbf16>
    %c0_85 = arith.constant 0 : index
    %c0_86 = arith.constant 0 : index
    %90 = vector.load %arg26[%c0_85, %c0_86] : memref<8x512xbf16, #tpu.memory_space<vmem>>, vector<8x128xbf16>
    tpu.vector_store %arg26[%c0_85, %c0_86], %89 {strides = array<i32>} : memref<8x512xbf16, #tpu.memory_space<vmem>>, vector<8x128xbf16>,
    %91 = vector.extract_strided_slice %87 {offsets = [8, 0], sizes = [8, 128], strides = [1, 1]} : vector<32x128xf32> to vector<8x128xf32>
    %92 = arith.truncf %91 : vector<8x128xf32> to vector<8x128xbf16>
    %c0_87 = arith.constant 0 : index
    %c128_88 = arith.constant 128 : index
    %93 = vector.load %arg26[%c0_87, %c128_88] : memref<8x512xbf16, #tpu.memory_space<vmem>>, vector<8x128xbf16>
    tpu.vector_store %arg26[%c0_87, %c128_88], %92 {strides = array<i32>} : memref<8x512xbf16, #tpu.memory_space<vmem>>, vector<8x128xbf16>,
    %94 = vector.extract_strided_slice %87 {offsets = [16, 0], sizes = [8, 128], strides = [1, 1]} : vector<32x128xf32> to vector<8x128xf32>
    %95 = arith.truncf %94 : vector<8x128xf32> to vector<8x128xbf16>
    %c0_89 = arith.constant 0 : index
    %c256_90 = arith.constant 256 : index
    %96 = vector.load %arg26[%c0_89, %c256_90] : memref<8x512xbf16, #tpu.memory_space<vmem>>, vector<8x128xbf16>
    tpu.vector_store %arg26[%c0_89, %c256_90], %95 {strides = array<i32>} : memref<8x512xbf16, #tpu.memory_space<vmem>>, vector<8x128xbf16>,
    %97 = vector.extract_strided_slice %87 {offsets = [24, 0], sizes = [8, 128], strides = [1, 1]} : vector<32x128xf32> to vector<8x128xf32>
    %98 = arith.truncf %97 : vector<8x128xf32> to vector<8x128xbf16>
    %c0_91 = arith.constant 0 : index
    %c384_92 = arith.constant 384 : index
    %99 = vector.load %arg26[%c0_91, %c384_92] : memref<8x512xbf16, #tpu.memory_space<vmem>>, vector<8x128xbf16>
    tpu.vector_store %arg26[%c0_91, %c384_92], %98 {strides = array<i32>} : memref<8x512xbf16, #tpu.memory_space<vmem>>, vector<8x128xbf16>,
    %c0_93 = arith.constant 0 : index
    %c0_94 = arith.constant 0 : index
    %100 = vector.load %arg26[%c0_93, %c0_94] : memref<8x512xbf16, #tpu.memory_space<vmem>>, vector<8x512xbf16>
    %c0_95 = arith.constant 0 : index
    %c0_96 = arith.constant 0 : index
    %101 = vector.load %arg10[%c0_95, %c0_96] : memref<512x256xbf16, #tpu.memory_space<vmem>>, vector<512x256xbf16>
    %cst_97 = arith.constant dense<0.000000e+00> : vector<8x256xf32>
    %102 = tpu.matmul %100, %101, %cst_97 {dimension_numbers = #tpu.dot_dimension_numbers<[1], [0], [0], [1], [0, 0, 1, 1], [], []>} : vector<8x512xbf16>, vector<512x256xbf16>, vector<8x256xf32> -> vector<8x256xf32>
    %c0_98 = arith.constant 0 : index
    %c0_99 = arith.constant 0 : index
    %103 = vector.load %arg11[%c0_98, %c0_99] : memref<1x256xf32, #tpu.memory_space<vmem>>, vector<1x256xf32>
    %104 = vector.broadcast %103 : vector<1x256xf32> to vector<8x256xf32>
    %105 = arith.addf %102, %104 : vector<8x256xf32>
    %cst_100 = arith.constant 0.000000e+00 : f32
    %106 = vector.broadcast %cst_100 : f32 to vector<8x256xf32>
    %107 = arith.maximumf %105, %106 : vector<8x256xf32>
    %108 = arith.truncf %107 : vector<8x256xf32> to vector<8x256xbf16>
    %c0_101 = arith.constant 0 : index
    %c0_102 = arith.constant 0 : index
    %109 = vector.load %arg12[%c0_101, %c0_102] : memref<256x512xbf16, #tpu.memory_space<vmem>>, vector<256x512xbf16>
    %cst_103 = arith.constant dense<0.000000e+00> : vector<8x512xf32>
    %110 = tpu.matmul %108, %109, %cst_103 {dimension_numbers = #tpu.dot_dimension_numbers<[1], [0], [0], [1], [0, 0, 1, 1], [], []>} : vector<8x256xbf16>, vector<256x512xbf16>, vector<8x512xf32> -> vector<8x512xf32>
    %c0_104 = arith.constant 0 : index
    %c0_105 = arith.constant 0 : index
    %111 = vector.load %arg13[%c0_104, %c0_105] : memref<1x512xf32, #tpu.memory_space<vmem>>, vector<1x512xf32>
    %112 = vector.broadcast %111 : vector<1x512xf32> to vector<8x512xf32>
    %113 = arith.addf %110, %112 : vector<8x512xf32>
    %cst_106 = arith.constant 0.000000e+00 : f32
    %114 = vector.broadcast %cst_106 : f32 to vector<8x512xf32>
    %115 = arith.maximumf %113, %114 : vector<8x512xf32>
    %116 = vector.extract_strided_slice %115 {offsets = [0, 0], sizes = [8, 128], strides = [1, 1]} : vector<8x512xf32> to vector<8x128xf32>
    %117 = arith.truncf %116 : vector<8x128xf32> to vector<8x128xbf16>
    %c0_107 = arith.constant 0 : index
    %c0_108 = arith.constant 0 : index
    %118 = vector.load %arg27[%c0_107, %c0_108] : memref<32x128xbf16, #tpu.memory_space<vmem>>, vector<8x128xbf16>
    tpu.vector_store %arg27[%c0_107, %c0_108], %117 {strides = array<i32>} : memref<32x128xbf16, #tpu.memory_space<vmem>>, vector<8x128xbf16>,
    %119 = vector.extract_strided_slice %115 {offsets = [0, 128], sizes = [8, 128], strides = [1, 1]} : vector<8x512xf32> to vector<8x128xf32>
    %120 = arith.truncf %119 : vector<8x128xf32> to vector<8x128xbf16>
    %c8 = arith.constant 8 : index
    %c0_109 = arith.constant 0 : index
    %121 = vector.load %arg27[%c8, %c0_109] : memref<32x128xbf16, #tpu.memory_space<vmem>>, vector<8x128xbf16>
    tpu.vector_store %arg27[%c8, %c0_109], %120 {strides = array<i32>} : memref<32x128xbf16, #tpu.memory_space<vmem>>, vector<8x128xbf16>,
    %122 = vector.extract_strided_slice %115 {offsets = [0, 256], sizes = [8, 128], strides = [1, 1]} : vector<8x512xf32> to vector<8x128xf32>
    %123 = arith.truncf %122 : vector<8x128xf32> to vector<8x128xbf16>
    %c16_110 = arith.constant 16 : index
    %c0_111 = arith.constant 0 : index
    %124 = vector.load %arg27[%c16_110, %c0_111] : memref<32x128xbf16, #tpu.memory_space<vmem>>, vector<8x128xbf16>
    tpu.vector_store %arg27[%c16_110, %c0_111], %123 {strides = array<i32>} : memref<32x128xbf16, #tpu.memory_space<vmem>>, vector<8x128xbf16>,
    %125 = vector.extract_strided_slice %115 {offsets = [0, 384], sizes = [8, 128], strides = [1, 1]} : vector<8x512xf32> to vector<8x128xf32>
    %126 = arith.truncf %125 : vector<8x128xf32> to vector<8x128xbf16>
    %c24 = arith.constant 24 : index
    %c0_112 = arith.constant 0 : index
    %127 = vector.load %arg27[%c24, %c0_112] : memref<32x128xbf16, #tpu.memory_space<vmem>>, vector<8x128xbf16>
    tpu.vector_store %arg27[%c24, %c0_112], %126 {strides = array<i32>} : memref<32x128xbf16, #tpu.memory_space<vmem>>, vector<8x128xbf16>,
    %c0_113 = arith.constant 0 : index
    %c0_114 = arith.constant 0 : index
    %128 = vector.load %arg27[%c0_113, %c0_114] : memref<32x128xbf16, #tpu.memory_space<vmem>>, vector<32x128xbf16>
    %c0_115 = arith.constant 0 : index
    %c0_116 = arith.constant 0 : index
    %129 = vector.load %arg14[%c0_115, %c0_116] : memref<128x256xbf16, #tpu.memory_space<vmem>>, vector<128x256xbf16>
    %cst_117 = arith.constant dense<0.000000e+00> : vector<32x256xf32>
    %130 = tpu.matmul %128, %129, %cst_117 {dimension_numbers = #tpu.dot_dimension_numbers<[1], [0], [0], [1], [0, 0, 1, 1], [], []>} : vector<32x128xbf16>, vector<128x256xbf16>, vector<32x256xf32> -> vector<32x256xf32>
    %c0_118 = arith.constant 0 : index
    %c0_119 = arith.constant 0 : index
    %131 = vector.load %arg15[%c0_118, %c0_119] : memref<1x256xf32, #tpu.memory_space<vmem>>, vector<1x256xf32>
    %132 = vector.broadcast %131 : vector<1x256xf32> to vector<32x256xf32>
    %133 = arith.addf %130, %132 : vector<32x256xf32>
    %cst_120 = arith.constant 0.000000e+00 : f32
    %134 = vector.broadcast %cst_120 : f32 to vector<32x256xf32>
    %135 = arith.maximumf %133, %134 : vector<32x256xf32>
    %136 = vector.extract_strided_slice %135 {offsets = [0, 0], sizes = [32, 64], strides = [1, 1]} : vector<32x256xf32> to vector<32x64xf32>
    %137 = arith.truncf %136 : vector<32x64xf32> to vector<32x64xbf16>
    %c0_121 = arith.constant 0 : index
    %c0_122 = arith.constant 0 : index
    %138 = vector.load %arg28[%c0_121, %c0_122] : memref<128x64xbf16, #tpu.memory_space<vmem>>, vector<32x64xbf16>
    tpu.vector_store %arg28[%c0_121, %c0_122], %137 {strides = array<i32>} : memref<128x64xbf16, #tpu.memory_space<vmem>>, vector<32x64xbf16>,
    %139 = vector.extract_strided_slice %135 {offsets = [0, 64], sizes = [32, 64], strides = [1, 1]} : vector<32x256xf32> to vector<32x64xf32>
    %140 = arith.truncf %139 : vector<32x64xf32> to vector<32x64xbf16>
    %c32_123 = arith.constant 32 : index
    %c0_124 = arith.constant 0 : index
    %141 = vector.load %arg28[%c32_123, %c0_124] : memref<128x64xbf16, #tpu.memory_space<vmem>>, vector<32x64xbf16>
    tpu.vector_store %arg28[%c32_123, %c0_124], %140 {strides = array<i32>} : memref<128x64xbf16, #tpu.memory_space<vmem>>, vector<32x64xbf16>,
    %142 = vector.extract_strided_slice %135 {offsets = [0, 128], sizes = [32, 64], strides = [1, 1]} : vector<32x256xf32> to vector<32x64xf32>
    %143 = arith.truncf %142 : vector<32x64xf32> to vector<32x64xbf16>
    %c64_125 = arith.constant 64 : index
    %c0_126 = arith.constant 0 : index
    %144 = vector.load %arg28[%c64_125, %c0_126] : memref<128x64xbf16, #tpu.memory_space<vmem>>, vector<32x64xbf16>
    tpu.vector_store %arg28[%c64_125, %c0_126], %143 {strides = array<i32>} : memref<128x64xbf16, #tpu.memory_space<vmem>>, vector<32x64xbf16>,
    %145 = vector.extract_strided_slice %135 {offsets = [0, 192], sizes = [32, 64], strides = [1, 1]} : vector<32x256xf32> to vector<32x64xf32>
    %146 = arith.truncf %145 : vector<32x64xf32> to vector<32x64xbf16>
    %c96_127 = arith.constant 96 : index
    %c0_128 = arith.constant 0 : index
    %147 = vector.load %arg28[%c96_127, %c0_128] : memref<128x64xbf16, #tpu.memory_space<vmem>>, vector<32x64xbf16>
    tpu.vector_store %arg28[%c96_127, %c0_128], %146 {strides = array<i32>} : memref<128x64xbf16, #tpu.memory_space<vmem>>, vector<32x64xbf16>,
    %c0_129 = arith.constant 0 : index
    %c0_130 = arith.constant 0 : index
    %148 = vector.load %arg28[%c0_129, %c0_130] : memref<128x64xbf16, #tpu.memory_space<vmem>>, vector<128x64xbf16>
    %c0_131 = arith.constant 0 : index
    %c0_132 = arith.constant 0 : index
    %149 = vector.load %arg16[%c0_131, %c0_132] : memref<64x128xbf16, #tpu.memory_space<vmem>>, vector<64x128xbf16>
    %cst_133 = arith.constant dense<0.000000e+00> : vector<128x128xf32>
    %150 = tpu.matmul %148, %149, %cst_133 {dimension_numbers = #tpu.dot_dimension_numbers<[1], [0], [0], [1], [0, 0, 1, 1], [], []>} : vector<128x64xbf16>, vector<64x128xbf16>, vector<128x128xf32> -> vector<128x128xf32>
    %c0_134 = arith.constant 0 : index
    %c0_135 = arith.constant 0 : index
    %151 = vector.load %arg17[%c0_134, %c0_135] : memref<1x128xf32, #tpu.memory_space<vmem>>, vector<1x128xf32>
    %152 = vector.broadcast %151 : vector<1x128xf32> to vector<128x128xf32>
    %153 = arith.addf %150, %152 : vector<128x128xf32>
    %cst_136 = arith.constant 0.000000e+00 : f32
    %154 = vector.broadcast %cst_136 : f32 to vector<128x128xf32>
    %155 = arith.maximumf %153, %154 : vector<128x128xf32>
    %156 = vector.extract_strided_slice %155 {offsets = [0, 0], sizes = [128, 32], strides = [1, 1]} : vector<128x128xf32> to vector<128x32xf32>
    %157 = arith.truncf %156 : vector<128x32xf32> to vector<128x32xbf16>
    %c0_137 = arith.constant 0 : index
    %c0_138 = arith.constant 0 : index
    %158 = vector.load %arg29[%c0_137, %c0_138] : memref<512x32xbf16, #tpu.memory_space<vmem>>, vector<128x32xbf16>
    tpu.vector_store %arg29[%c0_137, %c0_138], %157 {strides = array<i32>} : memref<512x32xbf16, #tpu.memory_space<vmem>>, vector<128x32xbf16>,
    %159 = vector.extract_strided_slice %155 {offsets = [0, 32], sizes = [128, 32], strides = [1, 1]} : vector<128x128xf32> to vector<128x32xf32>
    %160 = arith.truncf %159 : vector<128x32xf32> to vector<128x32xbf16>
    %c128_139 = arith.constant 128 : index
    %c0_140 = arith.constant 0 : index
    %161 = vector.load %arg29[%c128_139, %c0_140] : memref<512x32xbf16, #tpu.memory_space<vmem>>, vector<128x32xbf16>
    tpu.vector_store %arg29[%c128_139, %c0_140], %160 {strides = array<i32>} : memref<512x32xbf16, #tpu.memory_space<vmem>>, vector<128x32xbf16>,
    %162 = vector.extract_strided_slice %155 {offsets = [0, 64], sizes = [128, 32], strides = [1, 1]} : vector<128x128xf32> to vector<128x32xf32>
    %163 = arith.truncf %162 : vector<128x32xf32> to vector<128x32xbf16>
    %c256_141 = arith.constant 256 : index
    %c0_142 = arith.constant 0 : index
    %164 = vector.load %arg29[%c256_141, %c0_142] : memref<512x32xbf16, #tpu.memory_space<vmem>>, vector<128x32xbf16>
    tpu.vector_store %arg29[%c256_141, %c0_142], %163 {strides = array<i32>} : memref<512x32xbf16, #tpu.memory_space<vmem>>, vector<128x32xbf16>,
    %165 = vector.extract_strided_slice %155 {offsets = [0, 96], sizes = [128, 32], strides = [1, 1]} : vector<128x128xf32> to vector<128x32xf32>
    %166 = arith.truncf %165 : vector<128x32xf32> to vector<128x32xbf16>
    %c384_143 = arith.constant 384 : index
    %c0_144 = arith.constant 0 : index
    %167 = vector.load %arg29[%c384_143, %c0_144] : memref<512x32xbf16, #tpu.memory_space<vmem>>, vector<128x32xbf16>
    tpu.vector_store %arg29[%c384_143, %c0_144], %166 {strides = array<i32>} : memref<512x32xbf16, #tpu.memory_space<vmem>>, vector<128x32xbf16>,
    %c0_145 = arith.constant 0 : index
    %c0_146 = arith.constant 0 : index
    %168 = vector.load %arg29[%c0_145, %c0_146] : memref<512x32xbf16, #tpu.memory_space<vmem>>, vector<512x32xbf16>
    %c0_147 = arith.constant 0 : index
    %c0_148 = arith.constant 0 : index
    %169 = vector.load %arg18[%c0_147, %c0_148] : memref<32x64xbf16, #tpu.memory_space<vmem>>, vector<32x64xbf16>
    %cst_149 = arith.constant dense<0.000000e+00> : vector<512x64xf32>
    %170 = tpu.matmul %168, %169, %cst_149 {dimension_numbers = #tpu.dot_dimension_numbers<[1], [0], [0], [1], [0, 0, 1, 1], [], []>} : vector<512x32xbf16>, vector<32x64xbf16>, vector<512x64xf32> -> vector<512x64xf32>
    %c0_150 = arith.constant 0 : index
    %c0_151 = arith.constant 0 : index
    %171 = vector.load %arg19[%c0_150, %c0_151] : memref<1x64xf32, #tpu.memory_space<vmem>>, vector<1x64xf32>
    %172 = vector.broadcast %171 : vector<1x64xf32> to vector<512x64xf32>
    %173 = arith.addf %170, %172 : vector<512x64xf32>
    %cst_152 = arith.constant 0.000000e+00 : f32
    %174 = vector.broadcast %cst_152 : f32 to vector<512x64xf32>
    %175 = arith.maximumf %173, %174 : vector<512x64xf32>
    %176 = arith.truncf %175 : vector<512x64xf32> to vector<512x64xbf16>
    %c0_153 = arith.constant 0 : index
    %c0_154 = arith.constant 0 : index
    %177 = vector.load %arg20[%c0_153, %c0_154] : memref<64x16xbf16, #tpu.memory_space<vmem>>, vector<64x16xbf16>
    %cst_155 = arith.constant dense<0.000000e+00> : vector<512x16xf32>
    %178 = tpu.matmul %176, %177, %cst_155 {dimension_numbers = #tpu.dot_dimension_numbers<[1], [0], [0], [1], [0, 0, 1, 1], [], []>} : vector<512x64xbf16>, vector<64x16xbf16>, vector<512x16xf32> -> vector<512x16xf32>
    %c0_156 = arith.constant 0 : index
    %c0_157 = arith.constant 0 : index
    %179 = vector.load %arg21[%c0_156, %c0_157] : memref<1x16xf32, #tpu.memory_space<vmem>>, vector<1x16xf32>
    %180 = vector.broadcast %179 : vector<1x16xf32> to vector<512x16xf32>
    %181 = arith.addf %178, %180 : vector<512x16xf32>
    %182 = vector.extract_strided_slice %181 {offsets = [0, 0], sizes = [32, 16], strides = [1, 1]} : vector<512x16xf32> to vector<32x16xf32>
    %c0_158 = arith.constant 0 : index
    %c0_159 = arith.constant 0 : index
    %183 = vector.load %arg22[%c0_158, %c0_159] : memref<32x256xf32, #tpu.memory_space<vmem>>, vector<32x16xf32>
    tpu.vector_store %arg22[%c0_158, %c0_159], %182 {strides = array<i32>} : memref<32x256xf32, #tpu.memory_space<vmem>>, vector<32x16xf32>,
    %184 = vector.extract_strided_slice %181 {offsets = [128, 0], sizes = [32, 16], strides = [1, 1]} : vector<512x16xf32> to vector<32x16xf32>
    %c0_160 = arith.constant 0 : index
    %c16_161 = arith.constant 16 : index
    %185 = vector.load %arg22[%c0_160, %c16_161] : memref<32x256xf32, #tpu.memory_space<vmem>>, vector<32x16xf32>
    tpu.vector_store %arg22[%c0_160, %c16_161], %184 {strides = array<i32>} : memref<32x256xf32, #tpu.memory_space<vmem>>, vector<32x16xf32>,
    %186 = vector.extract_strided_slice %181 {offsets = [256, 0], sizes = [32, 16], strides = [1, 1]} : vector<512x16xf32> to vector<32x16xf32>
    %c0_162 = arith.constant 0 : index
    %c32_163 = arith.constant 32 : index
    %187 = vector.load %arg22[%c0_162, %c32_163] : memref<32x256xf32, #tpu.memory_space<vmem>>, vector<32x16xf32>
    tpu.vector_store %arg22[%c0_162, %c32_163], %186 {strides = array<i32>} : memref<32x256xf32, #tpu.memory_space<vmem>>, vector<32x16xf32>,
    %188 = vector.extract_strided_slice %181 {offsets = [384, 0], sizes = [32, 16], strides = [1, 1]} : vector<512x16xf32> to vector<32x16xf32>
    %c0_164 = arith.constant 0 : index
    %c48_165 = arith.constant 48 : index
    %189 = vector.load %arg22[%c0_164, %c48_165] : memref<32x256xf32, #tpu.memory_space<vmem>>, vector<32x16xf32>
    tpu.vector_store %arg22[%c0_164, %c48_165], %188 {strides = array<i32>} : memref<32x256xf32, #tpu.memory_space<vmem>>, vector<32x16xf32>,
    %190 = vector.extract_strided_slice %181 {offsets = [32, 0], sizes = [32, 16], strides = [1, 1]} : vector<512x16xf32> to vector<32x16xf32>
    %c0_166 = arith.constant 0 : index
    %c64_167 = arith.constant 64 : index
    %191 = vector.load %arg22[%c0_166, %c64_167] : memref<32x256xf32, #tpu.memory_space<vmem>>, vector<32x16xf32>
    tpu.vector_store %arg22[%c0_166, %c64_167], %190 {strides = array<i32>} : memref<32x256xf32, #tpu.memory_space<vmem>>, vector<32x16xf32>,
    %192 = vector.extract_strided_slice %181 {offsets = [160, 0], sizes = [32, 16], strides = [1, 1]} : vector<512x16xf32> to vector<32x16xf32>
    %c0_168 = arith.constant 0 : index
    %c80_169 = arith.constant 80 : index
    %193 = vector.load %arg22[%c0_168, %c80_169] : memref<32x256xf32, #tpu.memory_space<vmem>>, vector<32x16xf32>
    tpu.vector_store %arg22[%c0_168, %c80_169], %192 {strides = array<i32>} : memref<32x256xf32, #tpu.memory_space<vmem>>, vector<32x16xf32>,
    %194 = vector.extract_strided_slice %181 {offsets = [288, 0], sizes = [32, 16], strides = [1, 1]} : vector<512x16xf32> to vector<32x16xf32>
    %c0_170 = arith.constant 0 : index
    %c96_171 = arith.constant 96 : index
    %195 = vector.load %arg22[%c0_170, %c96_171] : memref<32x256xf32, #tpu.memory_space<vmem>>, vector<32x16xf32>
    tpu.vector_store %arg22[%c0_170, %c96_171], %194 {strides = array<i32>} : memref<32x256xf32, #tpu.memory_space<vmem>>, vector<32x16xf32>,
    %196 = vector.extract_strided_slice %181 {offsets = [416, 0], sizes = [32, 16], strides = [1, 1]} : vector<512x16xf32> to vector<32x16xf32>
    %c0_172 = arith.constant 0 : index
    %c112_173 = arith.constant 112 : index
    %197 = vector.load %arg22[%c0_172, %c112_173] : memref<32x256xf32, #tpu.memory_space<vmem>>, vector<32x16xf32>
    tpu.vector_store %arg22[%c0_172, %c112_173], %196 {strides = array<i32>} : memref<32x256xf32, #tpu.memory_space<vmem>>, vector<32x16xf32>,
    %198 = vector.extract_strided_slice %181 {offsets = [64, 0], sizes = [32, 16], strides = [1, 1]} : vector<512x16xf32> to vector<32x16xf32>
    %c0_174 = arith.constant 0 : index
    %c128_175 = arith.constant 128 : index
    %199 = vector.load %arg22[%c0_174, %c128_175] : memref<32x256xf32, #tpu.memory_space<vmem>>, vector<32x16xf32>
    tpu.vector_store %arg22[%c0_174, %c128_175], %198 {strides = array<i32>} : memref<32x256xf32, #tpu.memory_space<vmem>>, vector<32x16xf32>,
    %200 = vector.extract_strided_slice %181 {offsets = [192, 0], sizes = [32, 16], strides = [1, 1]} : vector<512x16xf32> to vector<32x16xf32>
    %c0_176 = arith.constant 0 : index
    %c144_177 = arith.constant 144 : index
    %201 = vector.load %arg22[%c0_176, %c144_177] : memref<32x256xf32, #tpu.memory_space<vmem>>, vector<32x16xf32>
    tpu.vector_store %arg22[%c0_176, %c144_177], %200 {strides = array<i32>} : memref<32x256xf32, #tpu.memory_space<vmem>>, vector<32x16xf32>,
    %202 = vector.extract_strided_slice %181 {offsets = [320, 0], sizes = [32, 16], strides = [1, 1]} : vector<512x16xf32> to vector<32x16xf32>
    %c0_178 = arith.constant 0 : index
    %c160_179 = arith.constant 160 : index
    %203 = vector.load %arg22[%c0_178, %c160_179] : memref<32x256xf32, #tpu.memory_space<vmem>>, vector<32x16xf32>
    tpu.vector_store %arg22[%c0_178, %c160_179], %202 {strides = array<i32>} : memref<32x256xf32, #tpu.memory_space<vmem>>, vector<32x16xf32>,
    %204 = vector.extract_strided_slice %181 {offsets = [448, 0], sizes = [32, 16], strides = [1, 1]} : vector<512x16xf32> to vector<32x16xf32>
    %c0_180 = arith.constant 0 : index
    %c176_181 = arith.constant 176 : index
    %205 = vector.load %arg22[%c0_180, %c176_181] : memref<32x256xf32, #tpu.memory_space<vmem>>, vector<32x16xf32>
    tpu.vector_store %arg22[%c0_180, %c176_181], %204 {strides = array<i32>} : memref<32x256xf32, #tpu.memory_space<vmem>>, vector<32x16xf32>,
    %206 = vector.extract_strided_slice %181 {offsets = [96, 0], sizes = [32, 16], strides = [1, 1]} : vector<512x16xf32> to vector<32x16xf32>
    %c0_182 = arith.constant 0 : index
    %c192_183 = arith.constant 192 : index
    %207 = vector.load %arg22[%c0_182, %c192_183] : memref<32x256xf32, #tpu.memory_space<vmem>>, vector<32x16xf32>
    tpu.vector_store %arg22[%c0_182, %c192_183], %206 {strides = array<i32>} : memref<32x256xf32, #tpu.memory_space<vmem>>, vector<32x16xf32>,
    %208 = vector.extract_strided_slice %181 {offsets = [224, 0], sizes = [32, 16], strides = [1, 1]} : vector<512x16xf32> to vector<32x16xf32>
    %c0_184 = arith.constant 0 : index
    %c208_185 = arith.constant 208 : index
    %209 = vector.load %arg22[%c0_184, %c208_185] : memref<32x256xf32, #tpu.memory_space<vmem>>, vector<32x16xf32>
    tpu.vector_store %arg22[%c0_184, %c208_185], %208 {strides = array<i32>} : memref<32x256xf32, #tpu.memory_space<vmem>>, vector<32x16xf32>,
    %210 = vector.extract_strided_slice %181 {offsets = [352, 0], sizes = [32, 16], strides = [1, 1]} : vector<512x16xf32> to vector<32x16xf32>
    %c0_186 = arith.constant 0 : index
    %c224_187 = arith.constant 224 : index
    %211 = vector.load %arg22[%c0_186, %c224_187] : memref<32x256xf32, #tpu.memory_space<vmem>>, vector<32x16xf32>
    tpu.vector_store %arg22[%c0_186, %c224_187], %210 {strides = array<i32>} : memref<32x256xf32, #tpu.memory_space<vmem>>, vector<32x16xf32>,
    %212 = vector.extract_strided_slice %181 {offsets = [480, 0], sizes = [32, 16], strides = [1, 1]} : vector<512x16xf32> to vector<32x16xf32>
    %c0_188 = arith.constant 0 : index
    %c240_189 = arith.constant 240 : index
    %213 = vector.load %arg22[%c0_188, %c240_189] : memref<32x256xf32, #tpu.memory_space<vmem>>, vector<32x16xf32>
    tpu.vector_store %arg22[%c0_188, %c240_189], %212 {strides = array<i32>} : memref<32x256xf32, #tpu.memory_space<vmem>>, vector<32x16xf32>,
    return
  }
  func.func @transform_0(%arg0: i32) -> (i32, i32) {
    %c0_i32 = arith.constant 0 : i32
    %c0_i32_0 = arith.constant 0 : i32
    return %arg0, %c0_i32 : i32, i32
  }
  func.func @transform_1(%arg0: i32) -> (i32, i32) {
    %c0_i32 = arith.constant 0 : i32
    %c0_i32_0 = arith.constant 0 : i32
    %c0_i32_1 = arith.constant 0 : i32
    return %c0_i32, %c0_i32_0 : i32, i32
  }
  func.func @transform_2(%arg0: i32) -> (i32, i32) {
    %c0_i32 = arith.constant 0 : i32
    %c0_i32_0 = arith.constant 0 : i32
    %c0_i32_1 = arith.constant 0 : i32
    return %c0_i32, %c0_i32_0 : i32, i32
  }
  func.func @transform_3(%arg0: i32) -> (i32, i32) {
    %c0_i32 = arith.constant 0 : i32
    %c0_i32_0 = arith.constant 0 : i32
    %c0_i32_1 = arith.constant 0 : i32
    return %c0_i32, %c0_i32_0 : i32, i32
  }
  func.func @transform_4(%arg0: i32) -> (i32, i32) {
    %c0_i32 = arith.constant 0 : i32
    %c0_i32_0 = arith.constant 0 : i32
    %c0_i32_1 = arith.constant 0 : i32
    return %c0_i32, %c0_i32_0 : i32, i32
  }
  func.func @transform_5(%arg0: i32) -> (i32, i32) {
    %c0_i32 = arith.constant 0 : i32
    %c0_i32_0 = arith.constant 0 : i32
    %c0_i32_1 = arith.constant 0 : i32
    return %c0_i32, %c0_i32_0 : i32, i32
  }
  func.func @transform_6(%arg0: i32) -> (i32, i32) {
    %c0_i32 = arith.constant 0 : i32
    %c0_i32_0 = arith.constant 0 : i32
    %c0_i32_1 = arith.constant 0 : i32
    return %c0_i32, %c0_i32_0 : i32, i32
  }
  func.func @transform_7(%arg0: i32) -> (i32, i32) {
    %c0_i32 = arith.constant 0 : i32
    %c0_i32_0 = arith.constant 0 : i32
    %c0_i32_1 = arith.constant 0 : i32
    return %c0_i32, %c0_i32_0 : i32, i32
  }
  func.func @transform_8(%arg0: i32) -> (i32, i32) {
    %c0_i32 = arith.constant 0 : i32
    %c0_i32_0 = arith.constant 0 : i32
    %c0_i32_1 = arith.constant 0 : i32
    return %c0_i32, %c0_i32_0 : i32, i32
  }
  func.func @transform_9(%arg0: i32) -> (i32, i32) {
    %c0_i32 = arith.constant 0 : i32
    %c0_i32_0 = arith.constant 0 : i32
    %c0_i32_1 = arith.constant 0 : i32
    return %c0_i32, %c0_i32_0 : i32, i32
  }
  func.func @transform_10(%arg0: i32) -> (i32, i32) {
    %c0_i32 = arith.constant 0 : i32
    %c0_i32_0 = arith.constant 0 : i32
    %c0_i32_1 = arith.constant 0 : i32
    return %c0_i32, %c0_i32_0 : i32, i32
  }
  func.func @transform_11(%arg0: i32) -> (i32, i32) {
    %c0_i32 = arith.constant 0 : i32
    %c0_i32_0 = arith.constant 0 : i32
    %c0_i32_1 = arith.constant 0 : i32
    return %c0_i32, %c0_i32_0 : i32, i32
  }
  func.func @transform_12(%arg0: i32) -> (i32, i32) {
    %c0_i32 = arith.constant 0 : i32
    %c0_i32_0 = arith.constant 0 : i32
    %c0_i32_1 = arith.constant 0 : i32
    return %c0_i32, %c0_i32_0 : i32, i32
  }
  func.func @transform_13(%arg0: i32) -> (i32, i32) {
    %c0_i32 = arith.constant 0 : i32
    %c0_i32_0 = arith.constant 0 : i32
    %c0_i32_1 = arith.constant 0 : i32
    return %c0_i32, %c0_i32_0 : i32, i32
  }
  func.func @transform_14(%arg0: i32) -> (i32, i32) {
    %c0_i32 = arith.constant 0 : i32
    %c0_i32_0 = arith.constant 0 : i32
    %c0_i32_1 = arith.constant 0 : i32
    return %c0_i32, %c0_i32_0 : i32, i32
  }
  func.func @transform_15(%arg0: i32) -> (i32, i32) {
    %c0_i32 = arith.constant 0 : i32
    %c0_i32_0 = arith.constant 0 : i32
    %c0_i32_1 = arith.constant 0 : i32
    return %c0_i32, %c0_i32_0 : i32, i32
  }
  func.func @transform_16(%arg0: i32) -> (i32, i32) {
    %c0_i32 = arith.constant 0 : i32
    %c0_i32_0 = arith.constant 0 : i32
    %c0_i32_1 = arith.constant 0 : i32
    return %c0_i32, %c0_i32_0 : i32, i32
  }
  func.func @transform_17(%arg0: i32) -> (i32, i32) {
    %c0_i32 = arith.constant 0 : i32
    %c0_i32_0 = arith.constant 0 : i32
    %c0_i32_1 = arith.constant 0 : i32
    return %c0_i32, %c0_i32_0 : i32, i32
  }
  func.func @transform_18(%arg0: i32) -> (i32, i32) {
    %c0_i32 = arith.constant 0 : i32
    %c0_i32_0 = arith.constant 0 : i32
    %c0_i32_1 = arith.constant 0 : i32
    return %c0_i32, %c0_i32_0 : i32, i32
  }
  func.func @transform_19(%arg0: i32) -> (i32, i32) {
    %c0_i32 = arith.constant 0 : i32
    %c0_i32_0 = arith.constant 0 : i32
    %c0_i32_1 = arith.constant 0 : i32
    return %c0_i32, %c0_i32_0 : i32, i32
  }
  func.func @transform_20(%arg0: i32) -> (i32, i32) {
    %c0_i32 = arith.constant 0 : i32
    %c0_i32_0 = arith.constant 0 : i32
    %c0_i32_1 = arith.constant 0 : i32
    return %c0_i32, %c0_i32_0 : i32, i32
  }
  func.func @transform_21(%arg0: i32) -> (i32, i32) {
    %c0_i32 = arith.constant 0 : i32
    %c0_i32_0 = arith.constant 0 : i32
    return %arg0, %c0_i32 : i32, i32
  }
}

</mosaic_0001>

<llo_original>
// kernel: forward.1
$region0: #{forward.1}
  #allocation0 [shape = 'u32[]', space=smem, size = 0x4, offset = 0x4, fixed_abs, tag = 'smem constant byte address 0x4 - core index']
  #allocation1 [shape = 'u32[72,128]{1,0:T(1,128)}', space=vmem, size = 0x9000, scoped, tag = 'internal scratch']
  #allocation2 [shape = 'bf16[512,16]{1,0:T(8,128)(2,1)}', space=vmem, size = 0x20000, scoped, tag = 'scratch operand']
  #allocation3 [shape = 'bf16[128,128]{1,0:T(8,128)(2,1)}', space=vmem, size = 0x8000, scoped, tag = 'scratch operand']
  #allocation4 [shape = 'bf16[32,256]{1,0:T(8,128)(2,1)}', space=vmem, size = 0x4000, scoped, tag = 'scratch operand']
  #allocation5 [shape = 'bf16[8,512]{1,0:T(8,128)(2,1)}', space=vmem, size = 0x2000, scoped, tag = 'scratch operand']
  #allocation6 [shape = 'bf16[32,128]{1,0:T(8,128)(2,1)}', space=vmem, size = 0x2000, scoped, tag = 'scratch operand']
  #allocation7 [shape = 'bf16[128,64]{1,0:T(8,128)(2,1)}', space=vmem, size = 0x8000, scoped, tag = 'scratch operand']
  #allocation8 [shape = 'bf16[512,32]{1,0:T(8,128)(2,1)}', space=vmem, size = 0x20000, scoped, tag = 'scratch operand']
  %s0 = inlined_call_operand.vmem [shape: bf16[32,256], index: 0, kind: input, shape index: {}]
  %s1 = inlined_call_operand.vmem [shape: bf16[16,64], index: 1, kind: input, shape index: {}]
  %s2 = inlined_call_operand.vmem [shape: f32[1,64], index: 2, kind: input, shape index: {}]
  %s3 = inlined_call_operand.vmem [shape: bf16[64,32], index: 3, kind: input, shape index: {}]
  %s4 = inlined_call_operand.vmem [shape: f32[1,32], index: 4, kind: input, shape index: {}]
  %s5 = inlined_call_operand.vmem [shape: bf16[128,64], index: 5, kind: input, shape index: {}]
  %s6 = inlined_call_operand.vmem [shape: f32[1,64], index: 6, kind: input, shape index: {}]
  %s7 = inlined_call_operand.vmem [shape: bf16[256,128], index: 7, kind: input, shape index: {}]
  %s8 = inlined_call_operand.vmem [shape: f32[1,128], index: 8, kind: input, shape index: {}]
  %s9 = inlined_call_operand.vmem [shape: bf16[512,256], index: 9, kind: input, shape index: {}]
  %s10 = inlined_call_operand.vmem [shape: f32[1,256], index: 10, kind: input, shape index: {}]
  %s11 = inlined_call_operand.vmem [shape: bf16[256,512], index: 11, kind: input, shape index: {}]
  %s12 = inlined_call_operand.vmem [shape: f32[1,512], index: 12, kind: input, shape index: {}]
  %s13 = inlined_call_operand.vmem [shape: bf16[128,256], index: 13, kind: input, shape index: {}]
  %s14 = inlined_call_operand.vmem [shape: f32[1,256], index: 14, kind: input, shape index: {}]
  %s15 = inlined_call_operand.vmem [shape: bf16[64,128], index: 15, kind: input, shape index: {}]
  %s16 = inlined_call_operand.vmem [shape: f32[1,128], index: 16, kind: input, shape index: {}]
  %s17 = inlined_call_operand.vmem [shape: bf16[32,64], index: 17, kind: input, shape index: {}]
  %s18 = inlined_call_operand.vmem [shape: f32[1,64], index: 18, kind: input, shape index: {}]
  %s19 = inlined_call_operand.vmem [shape: bf16[64,16], index: 19, kind: input, shape index: {}]
  %s20 = inlined_call_operand.vmem [shape: f32[1,16], index: 20, kind: input, shape index: {}]
  %s21 = inlined_call_operand.vmem [shape: f32[32,256], index: 21, kind: output, shape index: {}]
  %s22 = sld [smem:[#allocation0]]
  $region94: #{forward.1} parent=0
    _
  %s24 = ssub.s32 1, %s22
  %s25 = scalar_select 0, %s24, %s22
  // Predicated region
  $region2: #{forward.1} parent=0 // pred_check
    _
  $region3: #{forward.1} parent=0 // pred_check_branch
    %27 = sbr.rel (0) target = $region5
  $region4: #{forward.1} parent=0 // pred_region
    _
  $region5: #{forward.1} parent=0 // pred_fallthru
    _
  // Predicated region
  $region6: #{forward.1} parent=0 // pred_check
    _
  $region7: #{forward.1} parent=0 // pred_check_branch
    %29 = sbr.rel (0) target = $region9
  $region8: #{forward.1} parent=0 // pred_region
    _
  $region9: #{forward.1} parent=0 // pred_fallthru
    _
  // Predicated region
  $region10: #{forward.1} parent=0 // pred_check
    _
  $region11: #{forward.1} parent=0 // pred_check_branch
    %31 = sbr.rel (0) target = $region13
  $region12: #{forward.1} parent=0 // pred_region
    _
  $region13: #{forward.1} parent=0 // pred_fallthru
    _
  // Predicated region
  $region14: #{forward.1} parent=0 // pred_check
    _
  $region15: #{forward.1} parent=0 // pred_check_branch
    %33 = sbr.rel (0) target = $region17
  $region16: #{forward.1} parent=0 // pred_region
    _
  $region17: #{forward.1} parent=0 // pred_fallthru
    _
  // Predicated region
  $region18: #{forward.1} parent=0 // pred_check
    _
  $region19: #{forward.1} parent=0 // pred_check_branch
    %35 = sbr.rel (0) target = $region21
  $region20: #{forward.1} parent=0 // pred_region
    _
  $region21: #{forward.1} parent=0 // pred_fallthru
    _
  // Predicated region
  $region22: #{forward.1} parent=0 // pred_check
    _
  $region23: #{forward.1} parent=0 // pred_check_branch
    %37 = sbr.rel (0) target = $region25
  $region24: #{forward.1} parent=0 // pred_region
    _
  $region25: #{forward.1} parent=0 // pred_fallthru
    _
  // Predicated region
  $region26: #{forward.1} parent=0 // pred_check
    _
  $region27: #{forward.1} parent=0 // pred_check_branch
    %39 = sbr.rel (0) target = $region29
  $region28: #{forward.1} parent=0 // pred_region
    _
  $region29: #{forward.1} parent=0 // pred_fallthru
    _
  // Predicated region
  $region30: #{forward.1} parent=0 // pred_check
    _
  $region31: #{forward.1} parent=0 // pred_check_branch
    %41 = sbr.rel (0) target = $region33
  $region32: #{forward.1} parent=0 // pred_region
    _
  $region33: #{forward.1} parent=0 // pred_fallthru
    _
  // Predicated region
  $region34: #{forward.1} parent=0 // pred_check
    _
  $region35: #{forward.1} parent=0 // pred_check_branch
    %43 = sbr.rel (0) target = $region37
  $region36: #{forward.1} parent=0 // pred_region
    _
  $region37: #{forward.1} parent=0 // pred_fallthru
    _
  // Predicated region
  $region38: #{forward.1} parent=0 // pred_check
    _
  $region39: #{forward.1} parent=0 // pred_check_branch
    %45 = sbr.rel (0) target = $region41
  $region40: #{forward.1} parent=0 // pred_region
    _
  $region41: #{forward.1} parent=0 // pred_fallthru
    _
  // Predicated region
  $region42: #{forward.1} parent=0 // pred_check
    _
  $region43: #{forward.1} parent=0 // pred_check_branch
    %47 = sbr.rel (0) target = $region45
  $region44: #{forward.1} parent=0 // pred_region
    _
  $region45: #{forward.1} parent=0 // pred_fallthru
    _
  // Predicated region
  $region46: #{forward.1} parent=0 // pred_check
    _
  $region47: #{forward.1} parent=0 // pred_check_branch
    %49 = sbr.rel (0) target = $region49
  $region48: #{forward.1} parent=0 // pred_region
    _
  $region49: #{forward.1} parent=0 // pred_fallthru
    _
  // Predicated region
  $region50: #{forward.1} parent=0 // pred_check
    _
  $region51: #{forward.1} parent=0 // pred_check_branch
    %51 = sbr.rel (0) target = $region53
  $region52: #{forward.1} parent=0 // pred_region
    _
  $region53: #{forward.1} parent=0 // pred_fallthru
    _
  // Predicated region
  $region54: #{forward.1} parent=0 // pred_check
    _
  $region55: #{forward.1} parent=0 // pred_check_branch
    %53 = sbr.rel (0) target = $region57
  $region56: #{forward.1} parent=0 // pred_region
    _
  $region57: #{forward.1} parent=0 // pred_fallthru
    _
  // Predicated region
  $region58: #{forward.1} parent=0 // pred_check
    _
  $region59: #{forward.1} parent=0 // pred_check_branch
    %55 = sbr.rel (0) target = $region61
  $region60: #{forward.1} parent=0 // pred_region
    _
  $region61: #{forward.1} parent=0 // pred_fallthru
    _
  // Predicated region
  $region62: #{forward.1} parent=0 // pred_check
    _
  $region63: #{forward.1} parent=0 // pred_check_branch
    %57 = sbr.rel (0) target = $region65
  $region64: #{forward.1} parent=0 // pred_region
    _
  $region65: #{forward.1} parent=0 // pred_fallthru
    _
  // Predicated region
  $region66: #{forward.1} parent=0 // pred_check
    _
  $region67: #{forward.1} parent=0 // pred_check_branch
    %59 = sbr.rel (0) target = $region69
  $region68: #{forward.1} parent=0 // pred_region
    _
  $region69: #{forward.1} parent=0 // pred_fallthru
    _
  // Predicated region
  $region70: #{forward.1} parent=0 // pred_check
    _
  $region71: #{forward.1} parent=0 // pred_check_branch
    %61 = sbr.rel (0) target = $region73
  $region72: #{forward.1} parent=0 // pred_region
    _
  $region73: #{forward.1} parent=0 // pred_fallthru
    _
  // Predicated region
  $region74: #{forward.1} parent=0 // pred_check
    _
  $region75: #{forward.1} parent=0 // pred_check_branch
    %63 = sbr.rel (0) target = $region77
  $region76: #{forward.1} parent=0 // pred_region
    _
  $region77: #{forward.1} parent=0 // pred_fallthru
    _
  // Predicated region
  $region78: #{forward.1} parent=0 // pred_check
    _
  $region79: #{forward.1} parent=0 // pred_check_branch
    %65 = sbr.rel (0) target = $region81
  $region80: #{forward.1} parent=0 // pred_region
    _
  $region81: #{forward.1} parent=0 // pred_fallthru
    _
  // Predicated region
  $region82: #{forward.1} parent=0 // pred_check
    _
  $region83: #{forward.1} parent=0 // pred_check_branch
    %67 = sbr.rel (0) target = $region85
  $region84: #{forward.1} parent=0 // pred_region
    _
  $region85: #{forward.1} parent=0 // pred_fallthru
    _
  %v69 = vld [vmem:[%s0] sm:$0xf]
  %v70 = vld [vmem:[%s0 + $0x8] sm:$0xf]
  %v71 = vld [vmem:[%s0 + $0x10] sm:$0xf]
  %v72 = vld [vmem:[%s0 + $0x18] sm:$0xf]
  %vm73 = vcmask 125952
  %74 = vst.msk [vmem:[#allocation2] sm:$0xf] %vm73, %v69
  %75 = vst.msk [vmem:[#allocation2 + $0x4] sm:$0xf] %vm73, %v70
  %76 = vst.msk [vmem:[#allocation2 + $0x8] sm:$0xf] %vm73, %v71
  %77 = vst.msk [vmem:[#allocation2 + $0xc] sm:$0xf] %vm73, %v72
  %v78 = vld [vmem:[%s0] sm:$0xf]
  %v79 = vld [vmem:[%s0 + $0x8] sm:$0xf]
  %v80 = vld [vmem:[%s0 + $0x10] sm:$0xf]
  %v81 = vld [vmem:[%s0 + $0x18] sm:$0xf]
  %86 = vrot.lane.b32.xlu0 %v78, 64
  %v87 = vpop.permute.xlu0 %86
  %88 = vrot.lane.b32.xlu0 %v79, 64
  %v89 = vpop.permute.xlu0 %88
  %90 = vrot.lane.b32.xlu0 %v80, 64
  %v91 = vpop.permute.xlu0 %90
  %92 = vrot.lane.b32.xlu0 %v81, 64
  %v93 = vpop.permute.xlu0 %92
  %98 = vst.msk [vmem:[#allocation2 + $0x10] sm:$0xf] %vm73, %v87
  %99 = vst.msk [vmem:[#allocation2 + $0x14] sm:$0xf] %vm73, %v89
  %100 = vst.msk [vmem:[#allocation2 + $0x18] sm:$0xf] %vm73, %v91
  %101 = vst.msk [vmem:[#allocation2 + $0x1c] sm:$0xf] %vm73, %v93
  %v102 = vld [vmem:[%s0 + $0x4] sm:$0xf]
  %v103 = vld [vmem:[%s0 + $0xc] sm:$0xf]
  %v104 = vld [vmem:[%s0 + $0x14] sm:$0xf]
  %v105 = vld [vmem:[%s0 + $0x1c] sm:$0xf]
  %106 = vst.msk [vmem:[#allocation2 + $0x20] sm:$0xf] %vm73, %v102
  %107 = vst.msk [vmem:[#allocation2 + $0x24] sm:$0xf] %vm73, %v103
  %108 = vst.msk [vmem:[#allocation2 + $0x28] sm:$0xf] %vm73, %v104
  %109 = vst.msk [vmem:[#allocation2 + $0x2c] sm:$0xf] %vm73, %v105
  %v110 = vld [vmem:[%s0 + $0x4] sm:$0xf]
  %v111 = vld [vmem:[%s0 + $0xc] sm:$0xf]
  %v112 = vld [vmem:[%s0 + $0x14] sm:$0xf]
  %v113 = vld [vmem:[%s0 + $0x1c] sm:$0xf]
  %118 = vrot.lane.b32.xlu0 %v110, 64
  %v119 = vpop.permute.xlu0 %118
  %120 = vrot.lane.b32.xlu0 %v111, 64
  %v121 = vpop.permute.xlu0 %120
  %122 = vrot.lane.b32.xlu0 %v112, 64
  %v123 = vpop.permute.xlu0 %122
  %124 = vrot.lane.b32.xlu0 %v113, 64
  %v125 = vpop.permute.xlu0 %124
  %130 = vst.msk [vmem:[#allocation2 + $0x30] sm:$0xf] %vm73, %v119
  %131 = vst.msk [vmem:[#allocation2 + $0x34] sm:$0xf] %vm73, %v121
  %132 = vst.msk [vmem:[#allocation2 + $0x38] sm:$0xf] %vm73, %v123
  %133 = vst.msk [vmem:[#allocation2 + $0x3c] sm:$0xf] %vm73, %v125
  %v134 = vld [vmem:[%s0] sm:$0xf]
  %v135 = vld [vmem:[%s0 + $0x8] sm:$0xf]
  %v136 = vld [vmem:[%s0 + $0x10] sm:$0xf]
  %v137 = vld [vmem:[%s0 + $0x18] sm:$0xf]
  %142 = vrot.lane.b32.xlu0 %v134, 112
  %v143 = vpop.permute.xlu0 %142
  %144 = vrot.lane.b32.xlu0 %v135, 112
  %v145 = vpop.permute.xlu0 %144
  %146 = vrot.lane.b32.xlu0 %v136, 112
  %v147 = vpop.permute.xlu0 %146
  %148 = vrot.lane.b32.xlu0 %v137, 112
  %v149 = vpop.permute.xlu0 %148
  %154 = vst.msk [vmem:[#allocation2 + $0x40] sm:$0xf] %vm73, %v143
  %155 = vst.msk [vmem:[#allocation2 + $0x44] sm:$0xf] %vm73, %v145
  %156 = vst.msk [vmem:[#allocation2 + $0x48] sm:$0xf] %vm73, %v147
  %157 = vst.msk [vmem:[#allocation2 + $0x4c] sm:$0xf] %vm73, %v149
  %v158 = vld [vmem:[%s0] sm:$0xf]
  %v159 = vld [vmem:[%s0 + $0x8] sm:$0xf]
  %v160 = vld [vmem:[%s0 + $0x10] sm:$0xf]
  %v161 = vld [vmem:[%s0 + $0x18] sm:$0xf]
  %166 = vrot.lane.b32.xlu0 %v158, 48
  %v167 = vpop.permute.xlu0 %166
  %168 = vrot.lane.b32.xlu0 %v159, 48
  %v169 = vpop.permute.xlu0 %168
  %170 = vrot.lane.b32.xlu0 %v160, 48
  %v171 = vpop.permute.xlu0 %170
  %172 = vrot.lane.b32.xlu0 %v161, 48
  %v173 = vpop.permute.xlu0 %172
  %178 = vst.msk [vmem:[#allocation2 + $0x50] sm:$0xf] %vm73, %v167
  %179 = vst.msk [vmem:[#allocation2 + $0x54] sm:$0xf] %vm73, %v169
  %180 = vst.msk [vmem:[#allocation2 + $0x58] sm:$0xf] %vm73, %v171
  %181 = vst.msk [vmem:[#allocation2 + $0x5c] sm:$0xf] %vm73, %v173
  %v182 = vld [vmem:[%s0 + $0x4] sm:$0xf]
  %v183 = vld [vmem:[%s0 + $0xc] sm:$0xf]
  %v184 = vld [vmem:[%s0 + $0x14] sm:$0xf]
  %v185 = vld [vmem:[%s0 + $0x1c] sm:$0xf]
  %190 = vrot.lane.b32.xlu0 %v182, 112
  %v191 = vpop.permute.xlu0 %190
  %192 = vrot.lane.b32.xlu0 %v183, 112
  %v193 = vpop.permute.xlu0 %192
  %194 = vrot.lane.b32.xlu0 %v184, 112
  %v195 = vpop.permute.xlu0 %194
  %196 = vrot.lane.b32.xlu0 %v185, 112
  %v197 = vpop.permute.xlu0 %196
  %202 = vst.msk [vmem:[#allocation2 + $0x60] sm:$0xf] %vm73, %v191
  %203 = vst.msk [vmem:[#allocation2 + $0x64] sm:$0xf] %vm73, %v193
  %204 = vst.msk [vmem:[#allocation2 + $0x68] sm:$0xf] %vm73, %v195
  %205 = vst.msk [vmem:[#allocation2 + $0x6c] sm:$0xf] %vm73, %v197
  %v206 = vld [vmem:[%s0 + $0x4] sm:$0xf]
  %v207 = vld [vmem:[%s0 + $0xc] sm:$0xf]
  %v208 = vld [vmem:[%s0 + $0x14] sm:$0xf]
  %v209 = vld [vmem:[%s0 + $0x1c] sm:$0xf]
  %214 = vrot.lane.b32.xlu0 %v206, 48
  %v215 = vpop.permute.xlu0 %214
  %216 = vrot.lane.b32.xlu0 %v207, 48
  %v217 = vpop.permute.xlu0 %216
  %218 = vrot.lane.b32.xlu0 %v208, 48
  %v219 = vpop.permute.xlu0 %218
  %220 = vrot.lane.b32.xlu0 %v209, 48
  %v221 = vpop.permute.xlu0 %220
  %226 = vst.msk [vmem:[#allocation2 + $0x70] sm:$0xf] %vm73, %v215
  %227 = vst.msk [vmem:[#allocation2 + $0x74] sm:$0xf] %vm73, %v217
  %228 = vst.msk [vmem:[#allocation2 + $0x78] sm:$0xf] %vm73, %v219
  %229 = vst.msk [vmem:[#allocation2 + $0x7c] sm:$0xf] %vm73, %v221
  %v230 = vld [vmem:[%s0] sm:$0xf]
  %v231 = vld [vmem:[%s0 + $0x8] sm:$0xf]
  %v232 = vld [vmem:[%s0 + $0x10] sm:$0xf]
  %v233 = vld [vmem:[%s0 + $0x18] sm:$0xf]
  %238 = vrot.lane.b32.xlu0 %v230, 96
  %v239 = vpop.permute.xlu0 %238
  %240 = vrot.lane.b32.xlu0 %v231, 96
  %v241 = vpop.permute.xlu0 %240
  %242 = vrot.lane.b32.xlu0 %v232, 96
  %v243 = vpop.permute.xlu0 %242
  %244 = vrot.lane.b32.xlu0 %v233, 96
  %v245 = vpop.permute.xlu0 %244
  %250 = vst.msk [vmem:[#allocation2 + $0x80] sm:$0xf] %vm73, %v239
  %251 = vst.msk [vmem:[#allocation2 + $0x84] sm:$0xf] %vm73, %v241
  %252 = vst.msk [vmem:[#allocation2 + $0x88] sm:$0xf] %vm73, %v243
  %253 = vst.msk [vmem:[#allocation2 + $0x8c] sm:$0xf] %vm73, %v245
  %v254 = vld [vmem:[%s0] sm:$0xf]
  %v255 = vld [vmem:[%s0 + $0x8] sm:$0xf]
  %v256 = vld [vmem:[%s0 + $0x10] sm:$0xf]
  %v257 = vld [vmem:[%s0 + $0x18] sm:$0xf]
  %262 = vrot.lane.b32.xlu0 %v254, 32
  %v263 = vpop.permute.xlu0 %262
  %264 = vrot.lane.b32.xlu0 %v255, 32
  %v265 = vpop.permute.xlu0 %264
  %266 = vrot.lane.b32.xlu0 %v256, 32
  %v267 = vpop.permute.xlu0 %266
  %268 = vrot.lane.b32.xlu0 %v257, 32
  %v269 = vpop.permute.xlu0 %268
  %274 = vst.msk [vmem:[#allocation2 + $0x90] sm:$0xf] %vm73, %v263
  %275 = vst.msk [vmem:[#allocation2 + $0x94] sm:$0xf] %vm73, %v265
  %276 = vst.msk [vmem:[#allocation2 + $0x98] sm:$0xf] %vm73, %v267
  %277 = vst.msk [vmem:[#allocation2 + $0x9c] sm:$0xf] %vm73, %v269
  %v278 = vld [vmem:[%s0 + $0x4] sm:$0xf]
  %v279 = vld [vmem:[%s0 + $0xc] sm:$0xf]
  %v280 = vld [vmem:[%s0 + $0x14] sm:$0xf]
  %v281 = vld [vmem:[%s0 + $0x1c] sm:$0xf]
  %286 = vrot.lane.b32.xlu0 %v278, 96
  %v287 = vpop.permute.xlu0 %286
  %288 = vrot.lane.b32.xlu0 %v279, 96
  %v289 = vpop.permute.xlu0 %288
  %290 = vrot.lane.b32.xlu0 %v280, 96
  %v291 = vpop.permute.xlu0 %290
  %292 = vrot.lane.b32.xlu0 %v281, 96
  %v293 = vpop.permute.xlu0 %292
  %298 = vst.msk [vmem:[#allocation2 + $0xa0] sm:$0xf] %vm73, %v287
  %299 = vst.msk [vmem:[#allocation2 + $0xa4] sm:$0xf] %vm73, %v289
  %300 = vst.msk [vmem:[#allocation2 + $0xa8] sm:$0xf] %vm73, %v291
  %301 = vst.msk [vmem:[#allocation2 + $0xac] sm:$0xf] %vm73, %v293
  %v302 = vld [vmem:[%s0 + $0x4] sm:$0xf]
  %v303 = vld [vmem:[%s0 + $0xc] sm:$0xf]
  %v304 = vld [vmem:[%s0 + $0x14] sm:$0xf]
  %v305 = vld [vmem:[%s0 + $0x1c] sm:$0xf]
  %310 = vrot.lane.b32.xlu0 %v302, 32
  %v311 = vpop.permute.xlu0 %310
  %312 = vrot.lane.b32.xlu0 %v303, 32
  %v313 = vpop.permute.xlu0 %312
  %314 = vrot.lane.b32.xlu0 %v304, 32
  %v315 = vpop.permute.xlu0 %314
  %316 = vrot.lane.b32.xlu0 %v305, 32
  %v317 = vpop.permute.xlu0 %316
  %322 = vst.msk [vmem:[#allocation2 + $0xb0] sm:$0xf] %vm73, %v311
  %323 = vst.msk [vmem:[#allocation2 + $0xb4] sm:$0xf] %vm73, %v313
  %324 = vst.msk [vmem:[#allocation2 + $0xb8] sm:$0xf] %vm73, %v315
  %325 = vst.msk [vmem:[#allocation2 + $0xbc] sm:$0xf] %vm73, %v317
  %v326 = vld [vmem:[%s0] sm:$0xf]
  %v327 = vld [vmem:[%s0 + $0x8] sm:$0xf]
  %v328 = vld [vmem:[%s0 + $0x10] sm:$0xf]
  %v329 = vld [vmem:[%s0 + $0x18] sm:$0xf]
  %334 = vrot.lane.b32.xlu0 %v326, 80
  %v335 = vpop.permute.xlu0 %334
  %336 = vrot.lane.b32.xlu0 %v327, 80
  %v337 = vpop.permute.xlu0 %336
  %338 = vrot.lane.b32.xlu0 %v328, 80
  %v339 = vpop.permute.xlu0 %338
  %340 = vrot.lane.b32.xlu0 %v329, 80
  %v341 = vpop.permute.xlu0 %340
  %346 = vst.msk [vmem:[#allocation2 + $0xc0] sm:$0xf] %vm73, %v335
  %347 = vst.msk [vmem:[#allocation2 + $0xc4] sm:$0xf] %vm73, %v337
  %348 = vst.msk [vmem:[#allocation2 + $0xc8] sm:$0xf] %vm73, %v339
  %349 = vst.msk [vmem:[#allocation2 + $0xcc] sm:$0xf] %vm73, %v341
  %v350 = vld [vmem:[%s0] sm:$0xf]
  %v351 = vld [vmem:[%s0 + $0x8] sm:$0xf]
  %v352 = vld [vmem:[%s0 + $0x10] sm:$0xf]
  %v353 = vld [vmem:[%s0 + $0x18] sm:$0xf]
  %358 = vrot.lane.b32.xlu0 %v350, 16
  %v359 = vpop.permute.xlu0 %358
  %360 = vrot.lane.b32.xlu0 %v351, 16
  %v361 = vpop.permute.xlu0 %360
  %362 = vrot.lane.b32.xlu0 %v352, 16
  %v363 = vpop.permute.xlu0 %362
  %364 = vrot.lane.b32.xlu0 %v353, 16
  %v365 = vpop.permute.xlu0 %364
  %370 = vst.msk [vmem:[#allocation2 + $0xd0] sm:$0xf] %vm73, %v359
  %371 = vst.msk [vmem:[#allocation2 + $0xd4] sm:$0xf] %vm73, %v361
  %372 = vst.msk [vmem:[#allocation2 + $0xd8] sm:$0xf] %vm73, %v363
  %373 = vst.msk [vmem:[#allocation2 + $0xdc] sm:$0xf] %vm73, %v365
  %v374 = vld [vmem:[%s0 + $0x4] sm:$0xf]
  %v375 = vld [vmem:[%s0 + $0xc] sm:$0xf]
  %v376 = vld [vmem:[%s0 + $0x14] sm:$0xf]
  %v377 = vld [vmem:[%s0 + $0x1c] sm:$0xf]
  %382 = vrot.lane.b32.xlu0 %v374, 80
  %v383 = vpop.permute.xlu0 %382
  %384 = vrot.lane.b32.xlu0 %v375, 80
  %v385 = vpop.permute.xlu0 %384
  %386 = vrot.lane.b32.xlu0 %v376, 80
  %v387 = vpop.permute.xlu0 %386
  %388 = vrot.lane.b32.xlu0 %v377, 80
  %v389 = vpop.permute.xlu0 %388
  %394 = vst.msk [vmem:[#allocation2 + $0xe0] sm:$0xf] %vm73, %v383
  %395 = vst.msk [vmem:[#allocation2 + $0xe4] sm:$0xf] %vm73, %v385
  %396 = vst.msk [vmem:[#allocation2 + $0xe8] sm:$0xf] %vm73, %v387
  %397 = vst.msk [vmem:[#allocation2 + $0xec] sm:$0xf] %vm73, %v389
  %v398 = vld [vmem:[%s0 + $0x4] sm:$0xf]
  %v399 = vld [vmem:[%s0 + $0xc] sm:$0xf]
  %v400 = vld [vmem:[%s0 + $0x14] sm:$0xf]
  %v401 = vld [vmem:[%s0 + $0x1c] sm:$0xf]
  %406 = vrot.lane.b32.xlu0 %v398, 16
  %v407 = vpop.permute.xlu0 %406
  %408 = vrot.lane.b32.xlu0 %v399, 16
  %v409 = vpop.permute.xlu0 %408
  %410 = vrot.lane.b32.xlu0 %v400, 16
  %v411 = vpop.permute.xlu0 %410
  %412 = vrot.lane.b32.xlu0 %v401, 16
  %v413 = vpop.permute.xlu0 %412
  %418 = vst.msk [vmem:[#allocation2 + $0xf0] sm:$0xf] %vm73, %v407
  %419 = vst.msk [vmem:[#allocation2 + $0xf4] sm:$0xf] %vm73, %v409
  %420 = vst.msk [vmem:[#allocation2 + $0xf8] sm:$0xf] %vm73, %v411
  %421 = vst.msk [vmem:[#allocation2 + $0xfc] sm:$0xf] %vm73, %v413
  %v422 = vld [vmem:[#allocation2] sm:$0xf]
  %v423 = vld [vmem:[#allocation2 + $0x4] sm:$0xf]
  %v424 = vld [vmem:[#allocation2 + $0x8] sm:$0xf]
  %v425 = vld [vmem:[#allocation2 + $0xc] sm:$0xf]
  %v426 = vld [vmem:[#allocation2 + $0x10] sm:$0xf]
  %v427 = vld [vmem:[#allocation2 + $0x14] sm:$0xf]
  %v428 = vld [vmem:[#allocation2 + $0x18] sm:$0xf]
  %v429 = vld [vmem:[#allocation2 + $0x1c] sm:$0xf]
  %v430 = vld [vmem:[#allocation2 + $0x20] sm:$0xf]
  %v431 = vld [vmem:[#allocation2 + $0x24] sm:$0xf]
  %v432 = vld [vmem:[#allocation2 + $0x28] sm:$0xf]
  %v433 = vld [vmem:[#allocation2 + $0x2c] sm:$0xf]
  %v434 = vld [vmem:[#allocation2 + $0x30] sm:$0xf]
  %v435 = vld [vmem:[#allocation2 + $0x34] sm:$0xf]
  %v436 = vld [vmem:[#allocation2 + $0x38] sm:$0xf]
  %v437 = vld [vmem:[#allocation2 + $0x3c] sm:$0xf]
  %v438 = vld [vmem:[#allocation2 + $0x40] sm:$0xf]
  %v439 = vld [vmem:[#allocation2 + $0x44] sm:$0xf]
  %v440 = vld [vmem:[#allocation2 + $0x48] sm:$0xf]
  %v441 = vld [vmem:[#allocation2 + $0x4c] sm:$0xf]
  %v442 = vld [vmem:[#allocation2 + $0x50] sm:$0xf]
  %v443 = vld [vmem:[#allocation2 + $0x54] sm:$0xf]
  %v444 = vld [vmem:[#allocation2 + $0x58] sm:$0xf]
  %v445 = vld [vmem:[#allocation2 + $0x5c] sm:$0xf]
  %v446 = vld [vmem:[#allocation2 + $0x60] sm:$0xf]
  %v447 = vld [vmem:[#allocation2 + $0x64] sm:$0xf]
  %v448 = vld [vmem:[#allocation2 + $0x68] sm:$0xf]
  %v449 = vld [vmem:[#allocation2 + $0x6c] sm:$0xf]
  %v450 = vld [vmem:[#allocation2 + $0x70] sm:$0xf]
  %v451 = vld [vmem:[#allocation2 + $0x74] sm:$0xf]
  %v452 = vld [vmem:[#allocation2 + $0x78] sm:$0xf]
  %v453 = vld [vmem:[#allocation2 + $0x7c] sm:$0xf]
  %v454 = vld [vmem:[#allocation2 + $0x80] sm:$0xf]
  %v455 = vld [vmem:[#allocation2 + $0x84] sm:$0xf]
  %v456 = vld [vmem:[#allocation2 + $0x88] sm:$0xf]
  %v457 = vld [vmem:[#allocation2 + $0x8c] sm:$0xf]
  %v458 = vld [vmem:[#allocation2 + $0x90] sm:$0xf]
  %v459 = vld [vmem:[#allocation2 + $0x94] sm:$0xf]
  %v460 = vld [vmem:[#allocation2 + $0x98] sm:$0xf]
  %v461 = vld [vmem:[#allocation2 + $0x9c] sm:$0xf]
  %v462 = vld [vmem:[#allocation2 + $0xa0] sm:$0xf]
  %v463 = vld [vmem:[#allocation2 + $0xa4] sm:$0xf]
  %v464 = vld [vmem:[#allocation2 + $0xa8] sm:$0xf]
  %v465 = vld [vmem:[#allocation2 + $0xac] sm:$0xf]
  %v466 = vld [vmem:[#allocation2 + $0xb0] sm:$0xf]
  %v467 = vld [vmem:[#allocation2 + $0xb4] sm:$0xf]
  %v468 = vld [vmem:[#allocation2 + $0xb8] sm:$0xf]
  %v469 = vld [vmem:[#allocation2 + $0xbc] sm:$0xf]
  %v470 = vld [vmem:[#allocation2 + $0xc0] sm:$0xf]
  %v471 = vld [vmem:[#allocation2 + $0xc4] sm:$0xf]
  %v472 = vld [vmem:[#allocation2 + $0xc8] sm:$0xf]
  %v473 = vld [vmem:[#allocation2 + $0xcc] sm:$0xf]
  %v474 = vld [vmem:[#allocation2 + $0xd0] sm:$0xf]
  %v475 = vld [vmem:[#allocation2 + $0xd4] sm:$0xf]
  %v476 = vld [vmem:[#allocation2 + $0xd8] sm:$0xf]
  %v477 = vld [vmem:[#allocation2 + $0xdc] sm:$0xf]
  %v478 = vld [vmem:[#allocation2 + $0xe0] sm:$0xf]
  %v479 = vld [vmem:[#allocation2 + $0xe4] sm:$0xf]
  %v480 = vld [vmem:[#allocation2 + $0xe8] sm:$0xf]
  %v481 = vld [vmem:[#allocation2 + $0xec] sm:$0xf]
  %v482 = vld [vmem:[#allocation2 + $0xf0] sm:$0xf]
  %v483 = vld [vmem:[#allocation2 + $0xf4] sm:$0xf]
  %v484 = vld [vmem:[#allocation2 + $0xf8] sm:$0xf]
  %v485 = vld [vmem:[#allocation2 + $0xfc] sm:$0xf]
  %v486 = vld [vmem:[%s1] sm:$0xf]
  %v487 = vld [vmem:[%s1 + $0x4] sm:$0xf]
  %v488 = vld [vmem:[%s2] sm:$0x1]
  %v490 = vperm.slane %v488, 0
  %v556 = vunpack.c.l.b16 %v422
  %v557 = vunpack.c.l.b16 %v423
  %v558 = vunpack.c.l.b16 %v424
  %v559 = vunpack.c.l.b16 %v425
  %v560 = vunpack.c.l.b16 %v426
  %v561 = vunpack.c.l.b16 %v427
  %v562 = vunpack.c.l.b16 %v428
  %v563 = vunpack.c.l.b16 %v429
  %v564 = vunpack.c.l.b16 %v430
  %v565 = vunpack.c.l.b16 %v431
  %v566 = vunpack.c.l.b16 %v432
  %v567 = vunpack.c.l.b16 %v433
  %v568 = vunpack.c.l.b16 %v434
  %v569 = vunpack.c.l.b16 %v435
  %v570 = vunpack.c.l.b16 %v436
  %v571 = vunpack.c.l.b16 %v437
  %v572 = vunpack.c.l.b16 %v438
  %v573 = vunpack.c.l.b16 %v439
  %v574 = vunpack.c.l.b16 %v440
  %v575 = vunpack.c.l.b16 %v441
  %v576 = vunpack.c.l.b16 %v442
  %v577 = vunpack.c.l.b16 %v443
  %v578 = vunpack.c.l.b16 %v444
  %v579 = vunpack.c.l.b16 %v445
  %v580 = vunpack.c.l.b16 %v446
  %v581 = vunpack.c.l.b16 %v447
  %v582 = vunpack.c.l.b16 %v448
  %v583 = vunpack.c.l.b16 %v449
  %v584 = vunpack.c.l.b16 %v450
  %v585 = vunpack.c.l.b16 %v451
  %v586 = vunpack.c.l.b16 %v452
  %v587 = vunpack.c.l.b16 %v453
  %v588 = vunpack.c.l.b16 %v454
  %v589 = vunpack.c.l.b16 %v455
  %v590 = vunpack.c.l.b16 %v456
  %v591 = vunpack.c.l.b16 %v457
  %v592 = vunpack.c.l.b16 %v458
  %v593 = vunpack.c.l.b16 %v459
  %v594 = vunpack.c.l.b16 %v460
  %v595 = vunpack.c.l.b16 %v461
  %v596 = vunpack.c.l.b16 %v462
  %v597 = vunpack.c.l.b16 %v463
  %v598 = vunpack.c.l.b16 %v464
  %v599 = vunpack.c.l.b16 %v465
  %v600 = vunpack.c.l.b16 %v466
  %v601 = vunpack.c.l.b16 %v467
  %v602 = vunpack.c.l.b16 %v468
  %v603 = vunpack.c.l.b16 %v469
  %v604 = vunpack.c.l.b16 %v470
  %v605 = vunpack.c.l.b16 %v471
  %v606 = vunpack.c.l.b16 %v472
  %v607 = vunpack.c.l.b16 %v473
  %v608 = vunpack.c.l.b16 %v474
  %v609 = vunpack.c.l.b16 %v475
  %v610 = vunpack.c.l.b16 %v476
  %v611 = vunpack.c.l.b16 %v477
  %v612 = vunpack.c.l.b16 %v478
  %v613 = vunpack.c.l.b16 %v479
  %v614 = vunpack.c.l.b16 %v480
  %v615 = vunpack.c.l.b16 %v481
  %v616 = vunpack.c.l.b16 %v482
  %v617 = vunpack.c.l.b16 %v483
  %v618 = vunpack.c.l.b16 %v484
  %v619 = vunpack.c.l.b16 %v485
  %v620 = vpack.c.b16 %v557, %v556
  %v621 = vpack.c.b16 %v559, %v558
  %v622 = vpack.c.b16 %v561, %v560
  %v623 = vpack.c.b16 %v563, %v562
  %v624 = vpack.c.b16 %v565, %v564
  %v625 = vpack.c.b16 %v567, %v566
  %v626 = vpack.c.b16 %v569, %v568
  %v627 = vpack.c.b16 %v571, %v570
  %v628 = vpack.c.b16 %v573, %v572
  %v629 = vpack.c.b16 %v575, %v574
  %v630 = vpack.c.b16 %v577, %v576
  %v631 = vpack.c.b16 %v579, %v578
  %v632 = vpack.c.b16 %v581, %v580
  %v633 = vpack.c.b16 %v583, %v582
  %v634 = vpack.c.b16 %v585, %v584
  %v635 = vpack.c.b16 %v587, %v586
  %v636 = vpack.c.b16 %v589, %v588
  %v637 = vpack.c.b16 %v591, %v590
  %v638 = vpack.c.b16 %v593, %v592
  %v639 = vpack.c.b16 %v595, %v594
  %v640 = vpack.c.b16 %v597, %v596
  %v641 = vpack.c.b16 %v599, %v598
  %v642 = vpack.c.b16 %v601, %v600
  %v643 = vpack.c.b16 %v603, %v602
  %v644 = vpack.c.b16 %v605, %v604
  %v645 = vpack.c.b16 %v607, %v606
  %v646 = vpack.c.b16 %v609, %v608
  %v647 = vpack.c.b16 %v611, %v610
  %v648 = vpack.c.b16 %v613, %v612
  %v649 = vpack.c.b16 %v615, %v614
  %v650 = vpack.c.b16 %v617, %v616
  %v651 = vpack.c.b16 %v619, %v618
  %v654 = vunpack.c.l.b16 %v486
  %v655 = vunpack.c.l.b16 %v487
  %v656 = vpack.c.b16 %v655, %v654
  %vm658 = vcmask 130048
  %v660 = vsel %vm658, %v620, 0
  %v663 = vsel %vm658, %v621, 0
  %v666 = vsel %vm658, %v622, 0
  %v669 = vsel %vm658, %v623, 0
  %v672 = vsel %vm658, %v624, 0
  %v675 = vsel %vm658, %v625, 0
  %v678 = vsel %vm658, %v626, 0
  %v681 = vsel %vm658, %v627, 0
  %v684 = vsel %vm658, %v628, 0
  %v687 = vsel %vm658, %v629, 0
  %v690 = vsel %vm658, %v630, 0
  %v693 = vsel %vm658, %v631, 0
  %v696 = vsel %vm658, %v632, 0
  %v699 = vsel %vm658, %v633, 0
  %v702 = vsel %vm658, %v634, 0
  %v705 = vsel %vm658, %v635, 0
  %v708 = vsel %vm658, %v636, 0
  %v711 = vsel %vm658, %v637, 0
  %v714 = vsel %vm658, %v638, 0
  %v717 = vsel %vm658, %v639, 0
  %v720 = vsel %vm658, %v640, 0
  %v723 = vsel %vm658, %v641, 0
  %v726 = vsel %vm658, %v642, 0
  %v729 = vsel %vm658, %v643, 0
  %v732 = vsel %vm658, %v644, 0
  %v735 = vsel %vm658, %v645, 0
  %v738 = vsel %vm658, %v646, 0
  %v741 = vsel %vm658, %v647, 0
  %v744 = vsel %vm658, %v648, 0
  %v747 = vsel %vm658, %v649, 0
  %v750 = vsel %vm658, %v650, 0
  %v753 = vsel %vm658, %v651, 0
  %755 = vmatpush.bf16.msra.mxu0 0
  %756 = vmatpush.bf16.msra.mxu0 0
  %757 = vmatpush.bf16.msra.mxu0 0
  %758 = vmatpush.bf16.msra.mxu0 0
  %759 = vmatpush.bf16.msra.mxu0 0
  %760 = vmatpush.bf16.msra.mxu0 0
  %761 = vmatpush.bf16.msra.mxu0 0
  %762 = vmatpush.bf16.msra.mxu0 %v656
  %763 = vmatmul.bf16.gmra.mxu0 %v660
  %v764 = vpop.f32.mrf.mxu0
  %v765 = vadd.f32 %v490, %v764
  %v766 = vpop.f32.mrf.mxu0
  %v767 = vadd.f32 %v490, %v766
  %768 = vmatmul.bf16.gmra.mxu0 %v663
  %v769 = vpop.f32.mrf.mxu0
  %v770 = vadd.f32 %v490, %v769
  %v771 = vpop.f32.mrf.mxu0
  %v772 = vadd.f32 %v490, %v771
  %773 = vmatmul.bf16.gmra.mxu0 %v666
  %v774 = vpop.f32.mrf.mxu0
  %v775 = vadd.f32 %v490, %v774
  %v776 = vpop.f32.mrf.mxu0
  %v777 = vadd.f32 %v490, %v776
  %778 = vmatmul.bf16.gmra.mxu0 %v669
  %v779 = vpop.f32.mrf.mxu0
  %v780 = vadd.f32 %v490, %v779
  %v781 = vpop.f32.mrf.mxu0
  %v782 = vadd.f32 %v490, %v781
  %783 = vmatmul.bf16.gmra.mxu0 %v672
  %v784 = vpop.f32.mrf.mxu0
  %v785 = vadd.f32 %v490, %v784
  %v786 = vpop.f32.mrf.mxu0
  %v787 = vadd.f32 %v490, %v786
  %788 = vmatmul.bf16.gmra.mxu0 %v675
  %v789 = vpop.f32.mrf.mxu0
  %v790 = vadd.f32 %v490, %v789
  %v791 = vpop.f32.mrf.mxu0
  %v792 = vadd.f32 %v490, %v791
  %793 = vmatmul.bf16.gmra.mxu0 %v678
  %v794 = vpop.f32.mrf.mxu0
  %v795 = vadd.f32 %v490, %v794
  %v796 = vpop.f32.mrf.mxu0
  %v797 = vadd.f32 %v490, %v796
  %798 = vmatmul.bf16.gmra.mxu0 %v681
  %v799 = vpop.f32.mrf.mxu0
  %v800 = vadd.f32 %v490, %v799
  %v801 = vpop.f32.mrf.mxu0
  %v802 = vadd.f32 %v490, %v801
  %803 = vmatmul.bf16.gmra.mxu0 %v684
  %v804 = vpop.f32.mrf.mxu0
  %v805 = vadd.f32 %v490, %v804
  %v806 = vpop.f32.mrf.mxu0
  %v807 = vadd.f32 %v490, %v806
  %808 = vmatmul.bf16.gmra.mxu0 %v687
  %v809 = vpop.f32.mrf.mxu0
  %v810 = vadd.f32 %v490, %v809
  %v811 = vpop.f32.mrf.mxu0
  %v812 = vadd.f32 %v490, %v811
  %813 = vmatmul.bf16.gmra.mxu0 %v690
  %v814 = vpop.f32.mrf.mxu0
  %v815 = vadd.f32 %v490, %v814
  %v816 = vpop.f32.mrf.mxu0
  %v817 = vadd.f32 %v490, %v816
  %818 = vmatmul.bf16.gmra.mxu0 %v693
  %v819 = vpop.f32.mrf.mxu0
  %v820 = vadd.f32 %v490, %v819
  %v821 = vpop.f32.mrf.mxu0
  %v822 = vadd.f32 %v490, %v821
  %823 = vmatmul.bf16.gmra.mxu0 %v696
  %v824 = vpop.f32.mrf.mxu0
  %v825 = vadd.f32 %v490, %v824
  %v826 = vpop.f32.mrf.mxu0
  %v827 = vadd.f32 %v490, %v826
  %828 = vmatmul.bf16.gmra.mxu0 %v699
  %v829 = vpop.f32.mrf.mxu0
  %v830 = vadd.f32 %v490, %v829
  %v831 = vpop.f32.mrf.mxu0
  %v832 = vadd.f32 %v490, %v831
  %833 = vmatmul.bf16.gmra.mxu0 %v702
  %v834 = vpop.f32.mrf.mxu0
  %v835 = vadd.f32 %v490, %v834
  %v836 = vpop.f32.mrf.mxu0
  %v837 = vadd.f32 %v490, %v836
  %838 = vmatmul.bf16.gmra.mxu0 %v705
  %v839 = vpop.f32.mrf.mxu0
  %v840 = vadd.f32 %v490, %v839
  %v841 = vpop.f32.mrf.mxu0
  %v842 = vadd.f32 %v490, %v841
  %843 = vmatmul.bf16.gmra.mxu0 %v708
  %v844 = vpop.f32.mrf.mxu0
  %v845 = vadd.f32 %v490, %v844
  %v846 = vpop.f32.mrf.mxu0
  %v847 = vadd.f32 %v490, %v846
  %848 = vmatmul.bf16.gmra.mxu0 %v711
  %v849 = vpop.f32.mrf.mxu0
  %v850 = vadd.f32 %v490, %v849
  %v851 = vpop.f32.mrf.mxu0
  %v852 = vadd.f32 %v490, %v851
  %853 = vmatmul.bf16.gmra.mxu0 %v714
  %v854 = vpop.f32.mrf.mxu0
  %v855 = vadd.f32 %v490, %v854
  %v856 = vpop.f32.mrf.mxu0
  %v857 = vadd.f32 %v490, %v856
  %858 = vmatmul.bf16.gmra.mxu0 %v717
  %v859 = vpop.f32.mrf.mxu0
  %v860 = vadd.f32 %v490, %v859
  %v861 = vpop.f32.mrf.mxu0
  %v862 = vadd.f32 %v490, %v861
  %863 = vmatmul.bf16.gmra.mxu0 %v720
  %v864 = vpop.f32.mrf.mxu0
  %v865 = vadd.f32 %v490, %v864
  %v866 = vpop.f32.mrf.mxu0
  %v867 = vadd.f32 %v490, %v866
  %868 = vmatmul.bf16.gmra.mxu0 %v723
  %v869 = vpop.f32.mrf.mxu0
  %v870 = vadd.f32 %v490, %v869
  %v871 = vpop.f32.mrf.mxu0
  %v872 = vadd.f32 %v490, %v871
  %873 = vmatmul.bf16.gmra.mxu0 %v726
  %v874 = vpop.f32.mrf.mxu0
  %v875 = vadd.f32 %v490, %v874
  %v876 = vpop.f32.mrf.mxu0
  %v877 = vadd.f32 %v490, %v876
  %878 = vmatmul.bf16.gmra.mxu0 %v729
  %v879 = vpop.f32.mrf.mxu0
  %v880 = vadd.f32 %v490, %v879
  %v881 = vpop.f32.mrf.mxu0
  %v882 = vadd.f32 %v490, %v881
  %883 = vmatmul.bf16.gmra.mxu0 %v732
  %v884 = vpop.f32.mrf.mxu0
  %v885 = vadd.f32 %v490, %v884
  %v886 = vpop.f32.mrf.mxu0
  %v887 = vadd.f32 %v490, %v886
  %888 = vmatmul.bf16.gmra.mxu0 %v735
  %v889 = vpop.f32.mrf.mxu0
  %v890 = vadd.f32 %v490, %v889
  %v891 = vpop.f32.mrf.mxu0
  %v892 = vadd.f32 %v490, %v891
  %893 = vmatmul.bf16.gmra.mxu0 %v738
  %v894 = vpop.f32.mrf.mxu0
  %v895 = vadd.f32 %v490, %v894
  %v896 = vpop.f32.mrf.mxu0
  %v897 = vadd.f32 %v490, %v896
  %898 = vmatmul.bf16.gmra.mxu0 %v741
  %v899 = vpop.f32.mrf.mxu0
  %v900 = vadd.f32 %v490, %v899
  %v901 = vpop.f32.mrf.mxu0
  %v902 = vadd.f32 %v490, %v901
  %903 = vmatmul.bf16.gmra.mxu0 %v744
  %v904 = vpop.f32.mrf.mxu0
  %v905 = vadd.f32 %v490, %v904
  %v906 = vpop.f32.mrf.mxu0
  %v907 = vadd.f32 %v490, %v906
  %908 = vmatmul.bf16.gmra.mxu0 %v747
  %v909 = vpop.f32.mrf.mxu0
  %v910 = vadd.f32 %v490, %v909
  %v911 = vpop.f32.mrf.mxu0
  %v912 = vadd.f32 %v490, %v911
  %913 = vmatmul.bf16.gmra.mxu0 %v750
  %v914 = vpop.f32.mrf.mxu0
  %v915 = vadd.f32 %v490, %v914
  %v916 = vpop.f32.mrf.mxu0
  %v917 = vadd.f32 %v490, %v916
  %918 = vmatmul.bf16.gmra.mxu0 %v753
  %v919 = vpop.f32.mrf.mxu0
  %v920 = vadd.f32 %v490, %v919
  %v921 = vpop.f32.mrf.mxu0
  %v922 = vadd.f32 %v490, %v921
  %923 = vdwg.mxu0
  %v924 = vmax.f32 %v765, 0.0
  %v925 = vmax.f32 %v767, 0.0
  %v926 = vmax.f32 %v770, 0.0
  %v927 = vmax.f32 %v772, 0.0
  %v928 = vmax.f32 %v775, 0.0
  %v929 = vmax.f32 %v777, 0.0
  %v930 = vmax.f32 %v780, 0.0
  %v931 = vmax.f32 %v782, 0.0
  %v932 = vmax.f32 %v785, 0.0
  %v933 = vmax.f32 %v787, 0.0
  %v934 = vmax.f32 %v790, 0.0
  %v935 = vmax.f32 %v792, 0.0
  %v936 = vmax.f32 %v795, 0.0
  %v937 = vmax.f32 %v797, 0.0
  %v938 = vmax.f32 %v800, 0.0
  %v939 = vmax.f32 %v802, 0.0
  %v940 = vmax.f32 %v805, 0.0
  %v941 = vmax.f32 %v807, 0.0
  %v942 = vmax.f32 %v810, 0.0
  %v943 = vmax.f32 %v812, 0.0
  %v944 = vmax.f32 %v815, 0.0
  %v945 = vmax.f32 %v817, 0.0
  %v946 = vmax.f32 %v820, 0.0
  %v947 = vmax.f32 %v822, 0.0
  %v948 = vmax.f32 %v825, 0.0
  %v949 = vmax.f32 %v827, 0.0
  %v950 = vmax.f32 %v830, 0.0
  %v951 = vmax.f32 %v832, 0.0
  %v952 = vmax.f32 %v835, 0.0
  %v953 = vmax.f32 %v837, 0.0
  %v954 = vmax.f32 %v840, 0.0
  %v955 = vmax.f32 %v842, 0.0
  %v956 = vmax.f32 %v845, 0.0
  %v957 = vmax.f32 %v847, 0.0
  %v958 = vmax.f32 %v850, 0.0
  %v959 = vmax.f32 %v852, 0.0
  %v960 = vmax.f32 %v855, 0.0
  %v961 = vmax.f32 %v857, 0.0
  %v962 = vmax.f32 %v860, 0.0
  %v963 = vmax.f32 %v862, 0.0
  %v964 = vmax.f32 %v865, 0.0
  %v965 = vmax.f32 %v867, 0.0
  %v966 = vmax.f32 %v870, 0.0
  %v967 = vmax.f32 %v872, 0.0
  %v968 = vmax.f32 %v875, 0.0
  %v969 = vmax.f32 %v877, 0.0
  %v970 = vmax.f32 %v880, 0.0
  %v971 = vmax.f32 %v882, 0.0
  %v972 = vmax.f32 %v885, 0.0
  %v973 = vmax.f32 %v887, 0.0
  %v974 = vmax.f32 %v890, 0.0
  %v975 = vmax.f32 %v892, 0.0
  %v976 = vmax.f32 %v895, 0.0
  %v977 = vmax.f32 %v897, 0.0
  %v978 = vmax.f32 %v900, 0.0
  %v979 = vmax.f32 %v902, 0.0
  %v980 = vmax.f32 %v905, 0.0
  %v981 = vmax.f32 %v907, 0.0
  %v982 = vmax.f32 %v910, 0.0
  %v983 = vmax.f32 %v912, 0.0
  %v984 = vmax.f32 %v915, 0.0
  %v985 = vmax.f32 %v917, 0.0
  %v986 = vmax.f32 %v920, 0.0
  %v987 = vmax.f32 %v922, 0.0
  %v988 = vpack.c.bf16 %v925, %v924
  %v989 = vpack.c.bf16 %v927, %v926
  %v990 = vpack.c.bf16 %v929, %v928
  %v991 = vpack.c.bf16 %v931, %v930
  %v992 = vpack.c.bf16 %v933, %v932
  %v993 = vpack.c.bf16 %v935, %v934
  %v994 = vpack.c.bf16 %v937, %v936
  %v995 = vpack.c.bf16 %v939, %v938
  %v996 = vpack.c.bf16 %v941, %v940
  %v997 = vpack.c.bf16 %v943, %v942
  %v998 = vpack.c.bf16 %v945, %v944
  %v999 = vpack.c.bf16 %v947, %v946
  %v1000 = vpack.c.bf16 %v949, %v948
  %v1001 = vpack.c.bf16 %v951, %v950
  %v1002 = vpack.c.bf16 %v953, %v952
  %v1003 = vpack.c.bf16 %v955, %v954
  %v1004 = vpack.c.bf16 %v957, %v956
  %v1005 = vpack.c.bf16 %v959, %v958
  %v1006 = vpack.c.bf16 %v961, %v960
  %v1007 = vpack.c.bf16 %v963, %v962
  %v1008 = vpack.c.bf16 %v965, %v964
  %v1009 = vpack.c.bf16 %v967, %v966
  %v1010 = vpack.c.bf16 %v969, %v968
  %v1011 = vpack.c.bf16 %v971, %v970
  %v1012 = vpack.c.bf16 %v973, %v972
  %v1013 = vpack.c.bf16 %v975, %v974
  %v1014 = vpack.c.bf16 %v977, %v976
  %v1015 = vpack.c.bf16 %v979, %v978
  %v1016 = vpack.c.bf16 %v981, %v980
  %v1017 = vpack.c.bf16 %v983, %v982
  %v1018 = vpack.c.bf16 %v985, %v984
  %v1019 = vpack.c.bf16 %v987, %v986
  %v1020 = vld [vmem:[%s3] sm:$0xf]
  %v1021 = vld [vmem:[%s3 + $0x4] sm:$0xf]
  %v1022 = vld [vmem:[%s3 + $0x8] sm:$0xf]
  %v1023 = vld [vmem:[%s3 + $0xc] sm:$0xf]
  %v1024 = vld [vmem:[%s3 + $0x10] sm:$0xf]
  %v1025 = vld [vmem:[%s3 + $0x14] sm:$0xf]
  %v1026 = vld [vmem:[%s3 + $0x18] sm:$0xf]
  %v1027 = vld [vmem:[%s3 + $0x1c] sm:$0xf]
  %v1028 = vld [vmem:[%s4] sm:$0x1]
  %v1030 = vperm.slane %v1028, 0
  %v1040 = vunpack.c.l.b16 %v1020
  %v1041 = vunpack.c.l.b16 %v1021
  %v1042 = vunpack.c.l.b16 %v1022
  %v1043 = vunpack.c.l.b16 %v1023
  %v1044 = vunpack.c.l.b16 %v1024
  %v1045 = vunpack.c.l.b16 %v1025
  %v1046 = vunpack.c.l.b16 %v1026
  %v1047 = vunpack.c.l.b16 %v1027
  %v1048 = vpack.c.b16 %v1041, %v1040
  %v1049 = vpack.c.b16 %v1043, %v1042
  %v1050 = vpack.c.b16 %v1045, %v1044
  %v1051 = vpack.c.b16 %v1047, %v1046
  %vm1056 = vcmask 523264
  %v1058 = vsel %vm1056, %v988, 0
  %v1061 = vsel %vm1056, %v989, 0
  %v1064 = vsel %vm1056, %v990, 0
  %v1067 = vsel %vm1056, %v991, 0
  %v1070 = vsel %vm1056, %v992, 0
  %v1073 = vsel %vm1056, %v993, 0
  %v1076 = vsel %vm1056, %v994, 0
  %v1079 = vsel %vm1056, %v995, 0
  %v1082 = vsel %vm1056, %v996, 0
  %v1085 = vsel %vm1056, %v997, 0
  %v1088 = vsel %vm1056, %v998, 0
  %v1091 = vsel %vm1056, %v999, 0
  %v1094 = vsel %vm1056, %v1000, 0
  %v1097 = vsel %vm1056, %v1001, 0
  %v1100 = vsel %vm1056, %v1002, 0
  %v1103 = vsel %vm1056, %v1003, 0
  %v1106 = vsel %vm1056, %v1004, 0
  %v1109 = vsel %vm1056, %v1005, 0
  %v1112 = vsel %vm1056, %v1006, 0
  %v1115 = vsel %vm1056, %v1007, 0
  %v1118 = vsel %vm1056, %v1008, 0
  %v1121 = vsel %vm1056, %v1009, 0
  %v1124 = vsel %vm1056, %v1010, 0
  %v1127 = vsel %vm1056, %v1011, 0
  %v1130 = vsel %vm1056, %v1012, 0
  %v1133 = vsel %vm1056, %v1013, 0
  %v1136 = vsel %vm1056, %v1014, 0
  %v1139 = vsel %vm1056, %v1015, 0
  %v1142 = vsel %vm1056, %v1016, 0
  %v1145 = vsel %vm1056, %v1017, 0
  %v1148 = vsel %vm1056, %v1018, 0
  %v1151 = vsel %vm1056, %v1019, 0
  %1153 = vmatpush.bf16.msra.mxu0 0
  %1154 = vmatpush.bf16.msra.mxu0 0
  %1155 = vmatpush.bf16.msra.mxu0 0
  %1156 = vmatpush.bf16.msra.mxu0 0
  %1157 = vmatpush.bf16.msra.mxu0 %v1051
  %1158 = vmatpush.bf16.msra.mxu0 %v1050
  %1159 = vmatpush.bf16.msra.mxu0 %v1049
  %1160 = vmatpush.bf16.msra.mxu0 %v1048
  %1161 = vmatmul.bf16.gmra.mxu0 %v1058
  %v1162 = vpop.f32.mrf.mxu0
  %v1163 = vadd.f32 %v1030, %v1162
  %v1164 = vpop.f32.mrf.mxu0
  %v1165 = vadd.f32 %v1030, %v1164
  %1166 = vmatmul.bf16.gmra.mxu0 %v1061
  %v1167 = vpop.f32.mrf.mxu0
  %v1168 = vadd.f32 %v1030, %v1167
  %v1169 = vpop.f32.mrf.mxu0
  %v1170 = vadd.f32 %v1030, %v1169
  %1171 = vmatmul.bf16.gmra.mxu0 %v1064
  %v1172 = vpop.f32.mrf.mxu0
  %v1173 = vadd.f32 %v1030, %v1172
  %v1174 = vpop.f32.mrf.mxu0
  %v1175 = vadd.f32 %v1030, %v1174
  %1176 = vmatmul.bf16.gmra.mxu0 %v1067
  %v1177 = vpop.f32.mrf.mxu0
  %v1178 = vadd.f32 %v1030, %v1177
  %v1179 = vpop.f32.mrf.mxu0
  %v1180 = vadd.f32 %v1030, %v1179
  %1181 = vmatmul.bf16.gmra.mxu0 %v1070
  %v1182 = vpop.f32.mrf.mxu0
  %v1183 = vadd.f32 %v1030, %v1182
  %v1184 = vpop.f32.mrf.mxu0
  %v1185 = vadd.f32 %v1030, %v1184
  %1186 = vmatmul.bf16.gmra.mxu0 %v1073
  %v1187 = vpop.f32.mrf.mxu0
  %v1188 = vadd.f32 %v1030, %v1187
  %v1189 = vpop.f32.mrf.mxu0
  %v1190 = vadd.f32 %v1030, %v1189
  %1191 = vmatmul.bf16.gmra.mxu0 %v1076
  %v1192 = vpop.f32.mrf.mxu0
  %v1193 = vadd.f32 %v1030, %v1192
  %v1194 = vpop.f32.mrf.mxu0
  %v1195 = vadd.f32 %v1030, %v1194
  %1196 = vmatmul.bf16.gmra.mxu0 %v1079
  %v1197 = vpop.f32.mrf.mxu0
  %v1198 = vadd.f32 %v1030, %v1197
  %v1199 = vpop.f32.mrf.mxu0
  %v1200 = vadd.f32 %v1030, %v1199
  %1201 = vmatmul.bf16.gmra.mxu0 %v1082
  %v1202 = vpop.f32.mrf.mxu0
  %v1203 = vadd.f32 %v1030, %v1202
  %v1204 = vpop.f32.mrf.mxu0
  %v1205 = vadd.f32 %v1030, %v1204
  %1206 = vmatmul.bf16.gmra.mxu0 %v1085
  %v1207 = vpop.f32.mrf.mxu0
  %v1208 = vadd.f32 %v1030, %v1207
  %v1209 = vpop.f32.mrf.mxu0
  %v1210 = vadd.f32 %v1030, %v1209
  %1211 = vmatmul.bf16.gmra.mxu0 %v1088
  %v1212 = vpop.f32.mrf.mxu0
  %v1213 = vadd.f32 %v1030, %v1212
  %v1214 = vpop.f32.mrf.mxu0
  %v1215 = vadd.f32 %v1030, %v1214
  %1216 = vmatmul.bf16.gmra.mxu0 %v1091
  %v1217 = vpop.f32.mrf.mxu0
  %v1218 = vadd.f32 %v1030, %v1217
  %v1219 = vpop.f32.mrf.mxu0
  %v1220 = vadd.f32 %v1030, %v1219
  %1221 = vmatmul.bf16.gmra.mxu0 %v1094
  %v1222 = vpop.f32.mrf.mxu0
  %v1223 = vadd.f32 %v1030, %v1222
  %v1224 = vpop.f32.mrf.mxu0
  %v1225 = vadd.f32 %v1030, %v1224
  %1226 = vmatmul.bf16.gmra.mxu0 %v1097
  %v1227 = vpop.f32.mrf.mxu0
  %v1228 = vadd.f32 %v1030, %v1227
  %v1229 = vpop.f32.mrf.mxu0
  %v1230 = vadd.f32 %v1030, %v1229
  %1231 = vmatmul.bf16.gmra.mxu0 %v1100
  %v1232 = vpop.f32.mrf.mxu0
  %v1233 = vadd.f32 %v1030, %v1232
  %v1234 = vpop.f32.mrf.mxu0
  %v1235 = vadd.f32 %v1030, %v1234
  %1236 = vmatmul.bf16.gmra.mxu0 %v1103
  %v1237 = vpop.f32.mrf.mxu0
  %v1238 = vadd.f32 %v1030, %v1237
  %v1239 = vpop.f32.mrf.mxu0
  %v1240 = vadd.f32 %v1030, %v1239
  %1241 = vmatmul.bf16.gmra.mxu0 %v1106
  %v1242 = vpop.f32.mrf.mxu0
  %v1243 = vadd.f32 %v1030, %v1242
  %v1244 = vpop.f32.mrf.mxu0
  %v1245 = vadd.f32 %v1030, %v1244
  %1246 = vmatmul.bf16.gmra.mxu0 %v1109
  %v1247 = vpop.f32.mrf.mxu0
  %v1248 = vadd.f32 %v1030, %v1247
  %v1249 = vpop.f32.mrf.mxu0
  %v1250 = vadd.f32 %v1030, %v1249
  %1251 = vmatmul.bf16.gmra.mxu0 %v1112
  %v1252 = vpop.f32.mrf.mxu0
  %v1253 = vadd.f32 %v1030, %v1252
  %v1254 = vpop.f32.mrf.mxu0
  %v1255 = vadd.f32 %v1030, %v1254
  %1256 = vmatmul.bf16.gmra.mxu0 %v1115
  %v1257 = vpop.f32.mrf.mxu0
  %v1258 = vadd.f32 %v1030, %v1257
  %v1259 = vpop.f32.mrf.mxu0
  %v1260 = vadd.f32 %v1030, %v1259
  %1261 = vmatmul.bf16.gmra.mxu0 %v1118
  %v1262 = vpop.f32.mrf.mxu0
  %v1263 = vadd.f32 %v1030, %v1262
  %v1264 = vpop.f32.mrf.mxu0
  %v1265 = vadd.f32 %v1030, %v1264
  %1266 = vmatmul.bf16.gmra.mxu0 %v1121
  %v1267 = vpop.f32.mrf.mxu0
  %v1268 = vadd.f32 %v1030, %v1267
  %v1269 = vpop.f32.mrf.mxu0
  %v1270 = vadd.f32 %v1030, %v1269
  %1271 = vmatmul.bf16.gmra.mxu0 %v1124
  %v1272 = vpop.f32.mrf.mxu0
  %v1273 = vadd.f32 %v1030, %v1272
  %v1274 = vpop.f32.mrf.mxu0
  %v1275 = vadd.f32 %v1030, %v1274
  %1276 = vmatmul.bf16.gmra.mxu0 %v1127
  %v1277 = vpop.f32.mrf.mxu0
  %v1278 = vadd.f32 %v1030, %v1277
  %v1279 = vpop.f32.mrf.mxu0
  %v1280 = vadd.f32 %v1030, %v1279
  %1281 = vmatmul.bf16.gmra.mxu0 %v1130
  %v1282 = vpop.f32.mrf.mxu0
  %v1283 = vadd.f32 %v1030, %v1282
  %v1284 = vpop.f32.mrf.mxu0
  %v1285 = vadd.f32 %v1030, %v1284
  %1286 = vmatmul.bf16.gmra.mxu0 %v1133
  %v1287 = vpop.f32.mrf.mxu0
  %v1288 = vadd.f32 %v1030, %v1287
  %v1289 = vpop.f32.mrf.mxu0
  %v1290 = vadd.f32 %v1030, %v1289
  %1291 = vmatmul.bf16.gmra.mxu0 %v1136
  %v1292 = vpop.f32.mrf.mxu0
  %v1293 = vadd.f32 %v1030, %v1292
  %v1294 = vpop.f32.mrf.mxu0
  %v1295 = vadd.f32 %v1030, %v1294
  %1296 = vmatmul.bf16.gmra.mxu0 %v1139
  %v1297 = vpop.f32.mrf.mxu0
  %v1298 = vadd.f32 %v1030, %v1297
  %v1299 = vpop.f32.mrf.mxu0
  %v1300 = vadd.f32 %v1030, %v1299
  %1301 = vmatmul.bf16.gmra.mxu0 %v1142
  %v1302 = vpop.f32.mrf.mxu0
  %v1303 = vadd.f32 %v1030, %v1302
  %v1304 = vpop.f32.mrf.mxu0
  %v1305 = vadd.f32 %v1030, %v1304
  %1306 = vmatmul.bf16.gmra.mxu0 %v1145
  %v1307 = vpop.f32.mrf.mxu0
  %v1308 = vadd.f32 %v1030, %v1307
  %v1309 = vpop.f32.mrf.mxu0
  %v1310 = vadd.f32 %v1030, %v1309
  %1311 = vmatmul.bf16.gmra.mxu0 %v1148
  %v1312 = vpop.f32.mrf.mxu0
  %v1313 = vadd.f32 %v1030, %v1312
  %v1314 = vpop.f32.mrf.mxu0
  %v1315 = vadd.f32 %v1030, %v1314
  %1316 = vmatmul.bf16.gmra.mxu0 %v1151
  %v1317 = vpop.f32.mrf.mxu0
  %v1318 = vadd.f32 %v1030, %v1317
  %v1319 = vpop.f32.mrf.mxu0
  %v1320 = vadd.f32 %v1030, %v1319
  %1321 = vdwg.mxu0
  %v1322 = vmax.f32 %v1163, 0.0
  %v1323 = vmax.f32 %v1165, 0.0
  %v1324 = vmax.f32 %v1168, 0.0
  %v1325 = vmax.f32 %v1170, 0.0
  %v1326 = vmax.f32 %v1173, 0.0
  %v1327 = vmax.f32 %v1175, 0.0
  %v1328 = vmax.f32 %v1178, 0.0
  %v1329 = vmax.f32 %v1180, 0.0
  %v1330 = vmax.f32 %v1183, 0.0
  %v1331 = vmax.f32 %v1185, 0.0
  %v1332 = vmax.f32 %v1188, 0.0
  %v1333 = vmax.f32 %v1190, 0.0
  %v1334 = vmax.f32 %v1193, 0.0
  %v1335 = vmax.f32 %v1195, 0.0
  %v1336 = vmax.f32 %v1198, 0.0
  %v1337 = vmax.f32 %v1200, 0.0
  %v1338 = vmax.f32 %v1203, 0.0
  %v1339 = vmax.f32 %v1205, 0.0
  %v1340 = vmax.f32 %v1208, 0.0
  %v1341 = vmax.f32 %v1210, 0.0
  %v1342 = vmax.f32 %v1213, 0.0
  %v1343 = vmax.f32 %v1215, 0.0
  %v1344 = vmax.f32 %v1218, 0.0
  %v1345 = vmax.f32 %v1220, 0.0
  %v1346 = vmax.f32 %v1223, 0.0
  %v1347 = vmax.f32 %v1225, 0.0
  %v1348 = vmax.f32 %v1228, 0.0
  %v1349 = vmax.f32 %v1230, 0.0
  %v1350 = vmax.f32 %v1233, 0.0
  %v1351 = vmax.f32 %v1235, 0.0
  %v1352 = vmax.f32 %v1238, 0.0
  %v1353 = vmax.f32 %v1240, 0.0
  %v1354 = vmax.f32 %v1243, 0.0
  %v1355 = vmax.f32 %v1245, 0.0
  %v1356 = vmax.f32 %v1248, 0.0
  %v1357 = vmax.f32 %v1250, 0.0
  %v1358 = vmax.f32 %v1253, 0.0
  %v1359 = vmax.f32 %v1255, 0.0
  %v1360 = vmax.f32 %v1258, 0.0
  %v1361 = vmax.f32 %v1260, 0.0
  %v1362 = vmax.f32 %v1263, 0.0
  %v1363 = vmax.f32 %v1265, 0.0
  %v1364 = vmax.f32 %v1268, 0.0
  %v1365 = vmax.f32 %v1270, 0.0
  %v1366 = vmax.f32 %v1273, 0.0
  %v1367 = vmax.f32 %v1275, 0.0
  %v1368 = vmax.f32 %v1278, 0.0
  %v1369 = vmax.f32 %v1280, 0.0
  %v1370 = vmax.f32 %v1283, 0.0
  %v1371 = vmax.f32 %v1285, 0.0
  %v1372 = vmax.f32 %v1288, 0.0
  %v1373 = vmax.f32 %v1290, 0.0
  %v1374 = vmax.f32 %v1293, 0.0
  %v1375 = vmax.f32 %v1295, 0.0
  %v1376 = vmax.f32 %v1298, 0.0
  %v1377 = vmax.f32 %v1300, 0.0
  %v1378 = vmax.f32 %v1303, 0.0
  %v1379 = vmax.f32 %v1305, 0.0
  %v1380 = vmax.f32 %v1308, 0.0
  %v1381 = vmax.f32 %v1310, 0.0
  %v1382 = vmax.f32 %v1313, 0.0
  %v1383 = vmax.f32 %v1315, 0.0
  %v1384 = vmax.f32 %v1318, 0.0
  %v1385 = vmax.f32 %v1320, 0.0
  %v1386 = vpack.c.bf16 %v1322, %v1322
  %v1387 = vpack.c.bf16 %v1323, %v1323
  %v1388 = vpack.c.bf16 %v1324, %v1324
  %v1389 = vpack.c.bf16 %v1325, %v1325
  %v1390 = vpack.c.bf16 %v1326, %v1326
  %v1391 = vpack.c.bf16 %v1327, %v1327
  %v1392 = vpack.c.bf16 %v1328, %v1328
  %v1393 = vpack.c.bf16 %v1329, %v1329
  %v1394 = vpack.c.bf16 %v1330, %v1330
  %v1395 = vpack.c.bf16 %v1331, %v1331
  %v1396 = vpack.c.bf16 %v1332, %v1332
  %v1397 = vpack.c.bf16 %v1333, %v1333
  %v1398 = vpack.c.bf16 %v1334, %v1334
  %v1399 = vpack.c.bf16 %v1335, %v1335
  %v1400 = vpack.c.bf16 %v1336, %v1336
  %v1401 = vpack.c.bf16 %v1337, %v1337
  %vm1402 = vcmask 257024
  %1403 = vst.msk [vmem:[#allocation3] sm:$0xf] %vm1402, %v1386
  %1404 = vst.msk [vmem:[#allocation3 + $0x4] sm:$0xf] %vm1402, %v1387
  %1405 = vst.msk [vmem:[#allocation3 + $0x8] sm:$0xf] %vm1402, %v1388
  %1406 = vst.msk [vmem:[#allocation3 + $0xc] sm:$0xf] %vm1402, %v1389
  %1407 = vst.msk [vmem:[#allocation3 + $0x10] sm:$0xf] %vm1402, %v1390
  %1408 = vst.msk [vmem:[#allocation3 + $0x14] sm:$0xf] %vm1402, %v1391
  %1409 = vst.msk [vmem:[#allocation3 + $0x18] sm:$0xf] %vm1402, %v1392
  %1410 = vst.msk [vmem:[#allocation3 + $0x1c] sm:$0xf] %vm1402, %v1393
  %1411 = vst.msk [vmem:[#allocation3 + $0x20] sm:$0xf] %vm1402, %v1394
  %1412 = vst.msk [vmem:[#allocation3 + $0x24] sm:$0xf] %vm1402, %v1395
  %1413 = vst.msk [vmem:[#allocation3 + $0x28] sm:$0xf] %vm1402, %v1396
  %1414 = vst.msk [vmem:[#allocation3 + $0x2c] sm:$0xf] %vm1402, %v1397
  %1415 = vst.msk [vmem:[#allocation3 + $0x30] sm:$0xf] %vm1402, %v1398
  %1416 = vst.msk [vmem:[#allocation3 + $0x34] sm:$0xf] %vm1402, %v1399
  %1417 = vst.msk [vmem:[#allocation3 + $0x38] sm:$0xf] %vm1402, %v1400
  %1418 = vst.msk [vmem:[#allocation3 + $0x3c] sm:$0xf] %vm1402, %v1401
  %v1419 = vpack.c.bf16 %v1338, %v1338
  %v1420 = vpack.c.bf16 %v1339, %v1339
  %v1421 = vpack.c.bf16 %v1340, %v1340
  %v1422 = vpack.c.bf16 %v1341, %v1341
  %v1423 = vpack.c.bf16 %v1342, %v1342
  %v1424 = vpack.c.bf16 %v1343, %v1343
  %v1425 = vpack.c.bf16 %v1344, %v1344
  %v1426 = vpack.c.bf16 %v1345, %v1345
  %v1427 = vpack.c.bf16 %v1346, %v1346
  %v1428 = vpack.c.bf16 %v1347, %v1347
  %v1429 = vpack.c.bf16 %v1348, %v1348
  %v1430 = vpack.c.bf16 %v1349, %v1349
  %v1431 = vpack.c.bf16 %v1350, %v1350
  %v1432 = vpack.c.bf16 %v1351, %v1351
  %v1433 = vpack.c.bf16 %v1352, %v1352
  %v1434 = vpack.c.bf16 %v1353, %v1353
  %1451 = vrot.lane.b32.xlu0 %v1419, 32
  %v1452 = vpop.permute.xlu0 %1451
  %1453 = vrot.lane.b32.xlu0 %v1420, 32
  %v1454 = vpop.permute.xlu0 %1453
  %1455 = vrot.lane.b32.xlu0 %v1421, 32
  %v1456 = vpop.permute.xlu0 %1455
  %1457 = vrot.lane.b32.xlu0 %v1422, 32
  %v1458 = vpop.permute.xlu0 %1457
  %1459 = vrot.lane.b32.xlu0 %v1423, 32
  %v1460 = vpop.permute.xlu0 %1459
  %1461 = vrot.lane.b32.xlu0 %v1424, 32
  %v1462 = vpop.permute.xlu0 %1461
  %1463 = vrot.lane.b32.xlu0 %v1425, 32
  %v1464 = vpop.permute.xlu0 %1463
  %1465 = vrot.lane.b32.xlu0 %v1426, 32
  %v1466 = vpop.permute.xlu0 %1465
  %1467 = vrot.lane.b32.xlu0 %v1427, 32
  %v1468 = vpop.permute.xlu0 %1467
  %1469 = vrot.lane.b32.xlu0 %v1428, 32
  %v1470 = vpop.permute.xlu0 %1469
  %1471 = vrot.lane.b32.xlu0 %v1429, 32
  %v1472 = vpop.permute.xlu0 %1471
  %1473 = vrot.lane.b32.xlu0 %v1430, 32
  %v1474 = vpop.permute.xlu0 %1473
  %1475 = vrot.lane.b32.xlu0 %v1431, 32
  %v1476 = vpop.permute.xlu0 %1475
  %1477 = vrot.lane.b32.xlu0 %v1432, 32
  %v1478 = vpop.permute.xlu0 %1477
  %1479 = vrot.lane.b32.xlu0 %v1433, 32
  %v1480 = vpop.permute.xlu0 %1479
  %1481 = vrot.lane.b32.xlu0 %v1434, 32
  %v1482 = vpop.permute.xlu0 %1481
  %vm1499 = vcmask 519424
  %1500 = vst.msk [vmem:[#allocation3] sm:$0xf] %vm1499, %v1452
  %1501 = vst.msk [vmem:[#allocation3 + $0x4] sm:$0xf] %vm1499, %v1454
  %1502 = vst.msk [vmem:[#allocation3 + $0x8] sm:$0xf] %vm1499, %v1456
  %1503 = vst.msk [vmem:[#allocation3 + $0xc] sm:$0xf] %vm1499, %v1458
  %1504 = vst.msk [vmem:[#allocation3 + $0x10] sm:$0xf] %vm1499, %v1460
  %1505 = vst.msk [vmem:[#allocation3 + $0x14] sm:$0xf] %vm1499, %v1462
  %1506 = vst.msk [vmem:[#allocation3 + $0x18] sm:$0xf] %vm1499, %v1464
  %1507 = vst.msk [vmem:[#allocation3 + $0x1c] sm:$0xf] %vm1499, %v1466
  %1508 = vst.msk [vmem:[#allocation3 + $0x20] sm:$0xf] %vm1499, %v1468
  %1509 = vst.msk [vmem:[#allocation3 + $0x24] sm:$0xf] %vm1499, %v1470
  %1510 = vst.msk [vmem:[#allocation3 + $0x28] sm:$0xf] %vm1499, %v1472
  %1511 = vst.msk [vmem:[#allocation3 + $0x2c] sm:$0xf] %vm1499, %v1474
  %1512 = vst.msk [vmem:[#allocation3 + $0x30] sm:$0xf] %vm1499, %v1476
  %1513 = vst.msk [vmem:[#allocation3 + $0x34] sm:$0xf] %vm1499, %v1478
  %1514 = vst.msk [vmem:[#allocation3 + $0x38] sm:$0xf] %vm1499, %v1480
  %1515 = vst.msk [vmem:[#allocation3 + $0x3c] sm:$0xf] %vm1499, %v1482
  %v1516 = vpack.c.bf16 %v1354, %v1354
  %v1517 = vpack.c.bf16 %v1355, %v1355
  %v1518 = vpack.c.bf16 %v1356, %v1356
  %v1519 = vpack.c.bf16 %v1357, %v1357
  %v1520 = vpack.c.bf16 %v1358, %v1358
  %v1521 = vpack.c.bf16 %v1359, %v1359
  %v1522 = vpack.c.bf16 %v1360, %v1360
  %v1523 = vpack.c.bf16 %v1361, %v1361
  %v1524 = vpack.c.bf16 %v1362, %v1362
  %v1525 = vpack.c.bf16 %v1363, %v1363
  %v1526 = vpack.c.bf16 %v1364, %v1364
  %v1527 = vpack.c.bf16 %v1365, %v1365
  %v1528 = vpack.c.bf16 %v1366, %v1366
  %v1529 = vpack.c.bf16 %v1367, %v1367
  %v1530 = vpack.c.bf16 %v1368, %v1368
  %v1531 = vpack.c.bf16 %v1369, %v1369
  %1548 = vrot.lane.b32.xlu0 %v1516, 64
  %v1549 = vpop.permute.xlu0 %1548
  %1550 = vrot.lane.b32.xlu0 %v1517, 64
  %v1551 = vpop.permute.xlu0 %1550
  %1552 = vrot.lane.b32.xlu0 %v1518, 64
  %v1553 = vpop.permute.xlu0 %1552
  %1554 = vrot.lane.b32.xlu0 %v1519, 64
  %v1555 = vpop.permute.xlu0 %1554
  %1556 = vrot.lane.b32.xlu0 %v1520, 64
  %v1557 = vpop.permute.xlu0 %1556
  %1558 = vrot.lane.b32.xlu0 %v1521, 64
  %v1559 = vpop.permute.xlu0 %1558
  %1560 = vrot.lane.b32.xlu0 %v1522, 64
  %v1561 = vpop.permute.xlu0 %1560
  %1562 = vrot.lane.b32.xlu0 %v1523, 64
  %v1563 = vpop.permute.xlu0 %1562
  %1564 = vrot.lane.b32.xlu0 %v1524, 64
  %v1565 = vpop.permute.xlu0 %1564
  %1566 = vrot.lane.b32.xlu0 %v1525, 64
  %v1567 = vpop.permute.xlu0 %1566
  %1568 = vrot.lane.b32.xlu0 %v1526, 64
  %v1569 = vpop.permute.xlu0 %1568
  %1570 = vrot.lane.b32.xlu0 %v1527, 64
  %v1571 = vpop.permute.xlu0 %1570
  %1572 = vrot.lane.b32.xlu0 %v1528, 64
  %v1573 = vpop.permute.xlu0 %1572
  %1574 = vrot.lane.b32.xlu0 %v1529, 64
  %v1575 = vpop.permute.xlu0 %1574
  %1576 = vrot.lane.b32.xlu0 %v1530, 64
  %v1577 = vpop.permute.xlu0 %1576
  %1578 = vrot.lane.b32.xlu0 %v1531, 64
  %v1579 = vpop.permute.xlu0 %1578
  %vm1596 = vcmask 781824
  %1597 = vst.msk [vmem:[#allocation3] sm:$0xf] %vm1596, %v1549
  %1598 = vst.msk [vmem:[#allocation3 + $0x4] sm:$0xf] %vm1596, %v1551
  %1599 = vst.msk [vmem:[#allocation3 + $0x8] sm:$0xf] %vm1596, %v1553
  %1600 = vst.msk [vmem:[#allocation3 + $0xc] sm:$0xf] %vm1596, %v1555
  %1601 = vst.msk [vmem:[#allocation3 + $0x10] sm:$0xf] %vm1596, %v1557
  %1602 = vst.msk [vmem:[#allocation3 + $0x14] sm:$0xf] %vm1596, %v1559
  %1603 = vst.msk [vmem:[#allocation3 + $0x18] sm:$0xf] %vm1596, %v1561
  %1604 = vst.msk [vmem:[#allocation3 + $0x1c] sm:$0xf] %vm1596, %v1563
  %1605 = vst.msk [vmem:[#allocation3 + $0x20] sm:$0xf] %vm1596, %v1565
  %1606 = vst.msk [vmem:[#allocation3 + $0x24] sm:$0xf] %vm1596, %v1567
  %1607 = vst.msk [vmem:[#allocation3 + $0x28] sm:$0xf] %vm1596, %v1569
  %1608 = vst.msk [vmem:[#allocation3 + $0x2c] sm:$0xf] %vm1596, %v1571
  %1609 = vst.msk [vmem:[#allocation3 + $0x30] sm:$0xf] %vm1596, %v1573
  %1610 = vst.msk [vmem:[#allocation3 + $0x34] sm:$0xf] %vm1596, %v1575
  %1611 = vst.msk [vmem:[#allocation3 + $0x38] sm:$0xf] %vm1596, %v1577
  %1612 = vst.msk [vmem:[#allocation3 + $0x3c] sm:$0xf] %vm1596, %v1579
  %v1613 = vpack.c.bf16 %v1370, %v1370
  %v1614 = vpack.c.bf16 %v1371, %v1371
  %v1615 = vpack.c.bf16 %v1372, %v1372
  %v1616 = vpack.c.bf16 %v1373, %v1373
  %v1617 = vpack.c.bf16 %v1374, %v1374
  %v1618 = vpack.c.bf16 %v1375, %v1375
  %v1619 = vpack.c.bf16 %v1376, %v1376
  %v1620 = vpack.c.bf16 %v1377, %v1377
  %v1621 = vpack.c.bf16 %v1378, %v1378
  %v1622 = vpack.c.bf16 %v1379, %v1379
  %v1623 = vpack.c.bf16 %v1380, %v1380
  %v1624 = vpack.c.bf16 %v1381, %v1381
  %v1625 = vpack.c.bf16 %v1382, %v1382
  %v1626 = vpack.c.bf16 %v1383, %v1383
  %v1627 = vpack.c.bf16 %v1384, %v1384
  %v1628 = vpack.c.bf16 %v1385, %v1385
  %1645 = vrot.lane.b32.xlu0 %v1613, 96
  %v1646 = vpop.permute.xlu0 %1645
  %1647 = vrot.lane.b32.xlu0 %v1614, 96
  %v1648 = vpop.permute.xlu0 %1647
  %1649 = vrot.lane.b32.xlu0 %v1615, 96
  %v1650 = vpop.permute.xlu0 %1649
  %1651 = vrot.lane.b32.xlu0 %v1616, 96
  %v1652 = vpop.permute.xlu0 %1651
  %1653 = vrot.lane.b32.xlu0 %v1617, 96
  %v1654 = vpop.permute.xlu0 %1653
  %1655 = vrot.lane.b32.xlu0 %v1618, 96
  %v1656 = vpop.permute.xlu0 %1655
  %1657 = vrot.lane.b32.xlu0 %v1619, 96
  %v1658 = vpop.permute.xlu0 %1657
  %1659 = vrot.lane.b32.xlu0 %v1620, 96
  %v1660 = vpop.permute.xlu0 %1659
  %1661 = vrot.lane.b32.xlu0 %v1621, 96
  %v1662 = vpop.permute.xlu0 %1661
  %1663 = vrot.lane.b32.xlu0 %v1622, 96
  %v1664 = vpop.permute.xlu0 %1663
  %1665 = vrot.lane.b32.xlu0 %v1623, 96
  %v1666 = vpop.permute.xlu0 %1665
  %1667 = vrot.lane.b32.xlu0 %v1624, 96
  %v1668 = vpop.permute.xlu0 %1667
  %1669 = vrot.lane.b32.xlu0 %v1625, 96
  %v1670 = vpop.permute.xlu0 %1669
  %1671 = vrot.lane.b32.xlu0 %v1626, 96
  %v1672 = vpop.permute.xlu0 %1671
  %1673 = vrot.lane.b32.xlu0 %v1627, 96
  %v1674 = vpop.permute.xlu0 %1673
  %1675 = vrot.lane.b32.xlu0 %v1628, 96
  %v1676 = vpop.permute.xlu0 %1675
  %vm1693 = vcmask 1044224
  %1694 = vst.msk [vmem:[#allocation3] sm:$0xf] %vm1693, %v1646
  %1695 = vst.msk [vmem:[#allocation3 + $0x4] sm:$0xf] %vm1693, %v1648
  %1696 = vst.msk [vmem:[#allocation3 + $0x8] sm:$0xf] %vm1693, %v1650
  %1697 = vst.msk [vmem:[#allocation3 + $0xc] sm:$0xf] %vm1693, %v1652
  %1698 = vst.msk [vmem:[#allocation3 + $0x10] sm:$0xf] %vm1693, %v1654
  %1699 = vst.msk [vmem:[#allocation3 + $0x14] sm:$0xf] %vm1693, %v1656
  %1700 = vst.msk [vmem:[#allocation3 + $0x18] sm:$0xf] %vm1693, %v1658
  %1701 = vst.msk [vmem:[#allocation3 + $0x1c] sm:$0xf] %vm1693, %v1660
  %1702 = vst.msk [vmem:[#allocation3 + $0x20] sm:$0xf] %vm1693, %v1662
  %1703 = vst.msk [vmem:[#allocation3 + $0x24] sm:$0xf] %vm1693, %v1664
  %1704 = vst.msk [vmem:[#allocation3 + $0x28] sm:$0xf] %vm1693, %v1666
  %1705 = vst.msk [vmem:[#allocation3 + $0x2c] sm:$0xf] %vm1693, %v1668
  %1706 = vst.msk [vmem:[#allocation3 + $0x30] sm:$0xf] %vm1693, %v1670
  %1707 = vst.msk [vmem:[#allocation3 + $0x34] sm:$0xf] %vm1693, %v1672
  %1708 = vst.msk [vmem:[#allocation3 + $0x38] sm:$0xf] %vm1693, %v1674
  %1709 = vst.msk [vmem:[#allocation3 + $0x3c] sm:$0xf] %vm1693, %v1676
  %v1710 = vld [vmem:[#allocation3] sm:$0xf]
  %v1711 = vld [vmem:[#allocation3 + $0x4] sm:$0xf]
  %v1712 = vld [vmem:[#allocation3 + $0x8] sm:$0xf]
  %v1713 = vld [vmem:[#allocation3 + $0xc] sm:$0xf]
  %v1714 = vld [vmem:[#allocation3 + $0x10] sm:$0xf]
  %v1715 = vld [vmem:[#allocation3 + $0x14] sm:$0xf]
  %v1716 = vld [vmem:[#allocation3 + $0x18] sm:$0xf]
  %v1717 = vld [vmem:[#allocation3 + $0x1c] sm:$0xf]
  %v1718 = vld [vmem:[#allocation3 + $0x20] sm:$0xf]
  %v1719 = vld [vmem:[#allocation3 + $0x24] sm:$0xf]
  %v1720 = vld [vmem:[#allocation3 + $0x28] sm:$0xf]
  %v1721 = vld [vmem:[#allocation3 + $0x2c] sm:$0xf]
  %v1722 = vld [vmem:[#allocation3 + $0x30] sm:$0xf]
  %v1723 = vld [vmem:[#allocation3 + $0x34] sm:$0xf]
  %v1724 = vld [vmem:[#allocation3 + $0x38] sm:$0xf]
  %v1725 = vld [vmem:[#allocation3 + $0x3c] sm:$0xf]
  %v1726 = vld [vmem:[%s5] sm:$0xf]
  %v1727 = vld [vmem:[%s5 + $0x4] sm:$0xf]
  %v1728 = vld [vmem:[%s5 + $0x8] sm:$0xf]
  %v1729 = vld [vmem:[%s5 + $0xc] sm:$0xf]
  %v1730 = vld [vmem:[%s5 + $0x10] sm:$0xf]
  %v1731 = vld [vmem:[%s5 + $0x14] sm:$0xf]
  %v1732 = vld [vmem:[%s5 + $0x18] sm:$0xf]
  %v1733 = vld [vmem:[%s5 + $0x1c] sm:$0xf]
  %v1734 = vld [vmem:[%s5 + $0x20] sm:$0xf]
  %v1735 = vld [vmem:[%s5 + $0x24] sm:$0xf]
  %v1736 = vld [vmem:[%s5 + $0x28] sm:$0xf]
  %v1737 = vld [vmem:[%s5 + $0x2c] sm:$0xf]
  %v1738 = vld [vmem:[%s5 + $0x30] sm:$0xf]
  %v1739 = vld [vmem:[%s5 + $0x34] sm:$0xf]
  %v1740 = vld [vmem:[%s5 + $0x38] sm:$0xf]
  %v1741 = vld [vmem:[%s5 + $0x3c] sm:$0xf]
  %v1742 = vld [vmem:[%s6] sm:$0x1]
  %v1744 = vperm.slane %v1742, 0
  %v1762 = vunpack.c.l.b16 %v1710
  %v1763 = vunpack.c.l.b16 %v1711
  %v1764 = vunpack.c.l.b16 %v1712
  %v1765 = vunpack.c.l.b16 %v1713
  %v1766 = vunpack.c.l.b16 %v1714
  %v1767 = vunpack.c.l.b16 %v1715
  %v1768 = vunpack.c.l.b16 %v1716
  %v1769 = vunpack.c.l.b16 %v1717
  %v1770 = vunpack.c.l.b16 %v1718
  %v1771 = vunpack.c.l.b16 %v1719
  %v1772 = vunpack.c.l.b16 %v1720
  %v1773 = vunpack.c.l.b16 %v1721
  %v1774 = vunpack.c.l.b16 %v1722
  %v1775 = vunpack.c.l.b16 %v1723
  %v1776 = vunpack.c.l.b16 %v1724
  %v1777 = vunpack.c.l.b16 %v1725
  %v1778 = vpack.c.b16 %v1763, %v1762
  %v1779 = vpack.c.b16 %v1765, %v1764
  %v1780 = vpack.c.b16 %v1767, %v1766
  %v1781 = vpack.c.b16 %v1769, %v1768
  %v1782 = vpack.c.b16 %v1771, %v1770
  %v1783 = vpack.c.b16 %v1773, %v1772
  %v1784 = vpack.c.b16 %v1775, %v1774
  %v1785 = vpack.c.b16 %v1777, %v1776
  %v1810 = vunpack.c.l.b16 %v1726
  %v1811 = vunpack.c.l.b16 %v1727
  %v1812 = vunpack.c.l.b16 %v1728
  %v1813 = vunpack.c.l.b16 %v1729
  %v1814 = vunpack.c.l.b16 %v1730
  %v1815 = vunpack.c.l.b16 %v1731
  %v1816 = vunpack.c.l.b16 %v1732
  %v1817 = vunpack.c.l.b16 %v1733
  %v1818 = vunpack.c.l.b16 %v1734
  %v1819 = vunpack.c.l.b16 %v1735
  %v1820 = vunpack.c.l.b16 %v1736
  %v1821 = vunpack.c.l.b16 %v1737
  %v1822 = vunpack.c.l.b16 %v1738
  %v1823 = vunpack.c.l.b16 %v1739
  %v1824 = vunpack.c.l.b16 %v1740
  %v1825 = vunpack.c.l.b16 %v1741
  %v1826 = vpack.c.b16 %v1811, %v1810
  %v1827 = vpack.c.b16 %v1813, %v1812
  %v1828 = vpack.c.b16 %v1815, %v1814
  %v1829 = vpack.c.b16 %v1817, %v1816
  %v1830 = vpack.c.b16 %v1819, %v1818
  %v1831 = vpack.c.b16 %v1821, %v1820
  %v1832 = vpack.c.b16 %v1823, %v1822
  %v1833 = vpack.c.b16 %v1825, %v1824
  %1842 = vmatpush.bf16.msra.mxu0 %v1833
  %1843 = vmatpush.bf16.msra.mxu0 %v1832
  %1844 = vmatpush.bf16.msra.mxu0 %v1831
  %1845 = vmatpush.bf16.msra.mxu0 %v1830
  %1846 = vmatpush.bf16.msra.mxu0 %v1829
  %1847 = vmatpush.bf16.msra.mxu0 %v1828
  %1848 = vmatpush.bf16.msra.mxu0 %v1827
  %1849 = vmatpush.bf16.msra.mxu0 %v1826
  %1850 = vmatmul.bf16.gmra.mxu0 %v1778
  %v1851 = vpop.f32.mrf.mxu0
  %v1852 = vadd.f32 %v1744, %v1851
  %v1853 = vpop.f32.mrf.mxu0
  %v1854 = vadd.f32 %v1744, %v1853
  %1855 = vmatmul.bf16.gmra.mxu0 %v1779
  %v1856 = vpop.f32.mrf.mxu0
  %v1857 = vadd.f32 %v1744, %v1856
  %v1858 = vpop.f32.mrf.mxu0
  %v1859 = vadd.f32 %v1744, %v1858
  %1860 = vmatmul.bf16.gmra.mxu0 %v1780
  %v1861 = vpop.f32.mrf.mxu0
  %v1862 = vadd.f32 %v1744, %v1861
  %v1863 = vpop.f32.mrf.mxu0
  %v1864 = vadd.f32 %v1744, %v1863
  %1865 = vmatmul.bf16.gmra.mxu0 %v1781
  %v1866 = vpop.f32.mrf.mxu0
  %v1867 = vadd.f32 %v1744, %v1866
  %v1868 = vpop.f32.mrf.mxu0
  %v1869 = vadd.f32 %v1744, %v1868
  %1870 = vmatmul.bf16.gmra.mxu0 %v1782
  %v1871 = vpop.f32.mrf.mxu0
  %v1872 = vadd.f32 %v1744, %v1871
  %v1873 = vpop.f32.mrf.mxu0
  %v1874 = vadd.f32 %v1744, %v1873
  %1875 = vmatmul.bf16.gmra.mxu0 %v1783
  %v1876 = vpop.f32.mrf.mxu0
  %v1877 = vadd.f32 %v1744, %v1876
  %v1878 = vpop.f32.mrf.mxu0
  %v1879 = vadd.f32 %v1744, %v1878
  %1880 = vmatmul.bf16.gmra.mxu0 %v1784
  %v1881 = vpop.f32.mrf.mxu0
  %v1882 = vadd.f32 %v1744, %v1881
  %v1883 = vpop.f32.mrf.mxu0
  %v1884 = vadd.f32 %v1744, %v1883
  %1885 = vmatmul.bf16.gmra.mxu0 %v1785
  %v1886 = vpop.f32.mrf.mxu0
  %v1887 = vadd.f32 %v1744, %v1886
  %v1888 = vpop.f32.mrf.mxu0
  %v1889 = vadd.f32 %v1744, %v1888
  %1890 = vdwg.mxu0
  %v1891 = vmax.f32 %v1852, 0.0
  %v1892 = vmax.f32 %v1854, 0.0
  %v1893 = vmax.f32 %v1857, 0.0
  %v1894 = vmax.f32 %v1859, 0.0
  %v1895 = vmax.f32 %v1862, 0.0
  %v1896 = vmax.f32 %v1864, 0.0
  %v1897 = vmax.f32 %v1867, 0.0
  %v1898 = vmax.f32 %v1869, 0.0
  %v1899 = vmax.f32 %v1872, 0.0
  %v1900 = vmax.f32 %v1874, 0.0
  %v1901 = vmax.f32 %v1877, 0.0
  %v1902 = vmax.f32 %v1879, 0.0
  %v1903 = vmax.f32 %v1882, 0.0
  %v1904 = vmax.f32 %v1884, 0.0
  %v1905 = vmax.f32 %v1887, 0.0
  %v1906 = vmax.f32 %v1889, 0.0
  %v1907 = vpack.c.bf16 %v1891, %v1891
  %v1908 = vpack.c.bf16 %v1892, %v1892
  %v1909 = vpack.c.bf16 %v1893, %v1893
  %v1910 = vpack.c.bf16 %v1894, %v1894
  %vm1911 = vcmask 519168
  %1912 = vst.msk [vmem:[#allocation4] sm:$0xf] %vm1911, %v1907
  %1913 = vst.msk [vmem:[#allocation4 + $0x8] sm:$0xf] %vm1911, %v1908
  %1914 = vst.msk [vmem:[#allocation4 + $0x10] sm:$0xf] %vm1911, %v1909
  %1915 = vst.msk [vmem:[#allocation4 + $0x18] sm:$0xf] %vm1911, %v1910
  %v1916 = vpack.c.bf16 %v1895, %v1895
  %v1917 = vpack.c.bf16 %v1896, %v1896
  %v1918 = vpack.c.bf16 %v1897, %v1897
  %v1919 = vpack.c.bf16 %v1898, %v1898
  %1924 = vrot.lane.b32.xlu0 %v1916, 64
  %v1925 = vpop.permute.xlu0 %1924
  %1926 = vrot.lane.b32.xlu0 %v1917, 64
  %v1927 = vpop.permute.xlu0 %1926
  %1928 = vrot.lane.b32.xlu0 %v1918, 64
  %v1929 = vpop.permute.xlu0 %1928
  %1930 = vrot.lane.b32.xlu0 %v1919, 64
  %v1931 = vpop.permute.xlu0 %1930
  %vm1936 = vcmask 1043968
  %1937 = vst.msk [vmem:[#allocation4] sm:$0xf] %vm1936, %v1925
  %1938 = vst.msk [vmem:[#allocation4 + $0x8] sm:$0xf] %vm1936, %v1927
  %1939 = vst.msk [vmem:[#allocation4 + $0x10] sm:$0xf] %vm1936, %v1929
  %1940 = vst.msk [vmem:[#allocation4 + $0x18] sm:$0xf] %vm1936, %v1931
  %v1941 = vpack.c.bf16 %v1899, %v1899
  %v1942 = vpack.c.bf16 %v1900, %v1900
  %v1943 = vpack.c.bf16 %v1901, %v1901
  %v1944 = vpack.c.bf16 %v1902, %v1902
  %1945 = vst.msk [vmem:[#allocation4 + $0x4] sm:$0xf] %vm1911, %v1941
  %1946 = vst.msk [vmem:[#allocation4 + $0xc] sm:$0xf] %vm1911, %v1942
  %1947 = vst.msk [vmem:[#allocation4 + $0x14] sm:$0xf] %vm1911, %v1943
  %1948 = vst.msk [vmem:[#allocation4 + $0x1c] sm:$0xf] %vm1911, %v1944
  %v1949 = vpack.c.bf16 %v1903, %v1903
  %v1950 = vpack.c.bf16 %v1904, %v1904
  %v1951 = vpack.c.bf16 %v1905, %v1905
  %v1952 = vpack.c.bf16 %v1906, %v1906
  %1957 = vrot.lane.b32.xlu0 %v1949, 64
  %v1958 = vpop.permute.xlu0 %1957
  %1959 = vrot.lane.b32.xlu0 %v1950, 64
  %v1960 = vpop.permute.xlu0 %1959
  %1961 = vrot.lane.b32.xlu0 %v1951, 64
  %v1962 = vpop.permute.xlu0 %1961
  %1963 = vrot.lane.b32.xlu0 %v1952, 64
  %v1964 = vpop.permute.xlu0 %1963
  %1969 = vst.msk [vmem:[#allocation4 + $0x4] sm:$0xf] %vm1936, %v1958
  %1970 = vst.msk [vmem:[#allocation4 + $0xc] sm:$0xf] %vm1936, %v1960
  %1971 = vst.msk [vmem:[#allocation4 + $0x14] sm:$0xf] %vm1936, %v1962
  %1972 = vst.msk [vmem:[#allocation4 + $0x1c] sm:$0xf] %vm1936, %v1964
  %v1973 = vld [vmem:[#allocation4] sm:$0xff]
  %v1974 = vld [vmem:[#allocation4 + $0x8] sm:$0xff]
  %v1975 = vld [vmem:[#allocation4 + $0x10] sm:$0xff]
  %v1976 = vld [vmem:[#allocation4 + $0x18] sm:$0xff]
  %v1977 = vld [vmem:[%s7] sm:$0xf]
  %v1978 = vld [vmem:[%s7 + $0x4] sm:$0xf]
  %v1979 = vld [vmem:[%s7 + $0x8] sm:$0xf]
  %v1980 = vld [vmem:[%s7 + $0xc] sm:$0xf]
  %v1981 = vld [vmem:[%s7 + $0x10] sm:$0xf]
  %v1982 = vld [vmem:[%s7 + $0x14] sm:$0xf]
  %v1983 = vld [vmem:[%s7 + $0x18] sm:$0xf]
  %v1984 = vld [vmem:[%s7 + $0x1c] sm:$0xf]
  %v1985 = vld [vmem:[%s7 + $0x20] sm:$0xf]
  %v1986 = vld [vmem:[%s7 + $0x24] sm:$0xf]
  %v1987 = vld [vmem:[%s7 + $0x28] sm:$0xf]
  %v1988 = vld [vmem:[%s7 + $0x2c] sm:$0xf]
  %v1989 = vld [vmem:[%s7 + $0x30] sm:$0xf]
  %v1990 = vld [vmem:[%s7 + $0x34] sm:$0xf]
  %v1991 = vld [vmem:[%s7 + $0x38] sm:$0xf]
  %v1992 = vld [vmem:[%s7 + $0x3c] sm:$0xf]
  %v1993 = vld [vmem:[%s7 + $0x40] sm:$0xf]
  %v1994 = vld [vmem:[%s7 + $0x44] sm:$0xf]
  %v1995 = vld [vmem:[%s7 + $0x48] sm:$0xf]
  %v1996 = vld [vmem:[%s7 + $0x4c] sm:$0xf]
  %v1997 = vld [vmem:[%s7 + $0x50] sm:$0xf]
  %v1998 = vld [vmem:[%s7 + $0x54] sm:$0xf]
  %v1999 = vld [vmem:[%s7 + $0x58] sm:$0xf]
  %v2000 = vld [vmem:[%s7 + $0x5c] sm:$0xf]
  %v2001 = vld [vmem:[%s7 + $0x60] sm:$0xf]
  %v2002 = vld [vmem:[%s7 + $0x64] sm:$0xf]
  %v2003 = vld [vmem:[%s7 + $0x68] sm:$0xf]
  %v2004 = vld [vmem:[%s7 + $0x6c] sm:$0xf]
  %v2005 = vld [vmem:[%s7 + $0x70] sm:$0xf]
  %v2006 = vld [vmem:[%s7 + $0x74] sm:$0xf]
  %v2007 = vld [vmem:[%s7 + $0x78] sm:$0xf]
  %v2008 = vld [vmem:[%s7 + $0x7c] sm:$0xf]
  %v2009 = vld [vmem:[%s8] sm:$0x1]
  %v2011 = vperm.slane %v2009, 0
  %v2017 = vunpack.c.l.b16 %v1973
  %v2018 = vunpack.c.h.b16 %v1973
  %v2019 = vunpack.c.l.b16 %v1974
  %v2020 = vunpack.c.h.b16 %v1974
  %v2021 = vunpack.c.l.b16 %v1975
  %v2022 = vunpack.c.h.b16 %v1975
  %v2023 = vunpack.c.l.b16 %v1976
  %v2024 = vunpack.c.h.b16 %v1976
  %v2025 = vpack.c.b16 %v2019, %v2017
  %v2026 = vpack.c.b16 %v2020, %v2018
  %v2027 = vpack.c.b16 %v2023, %v2021
  %v2028 = vpack.c.b16 %v2024, %v2022
  %v2065 = vunpack.c.l.b16 %v1977
  %v2066 = vunpack.c.l.b16 %v1978
  %v2067 = vunpack.c.l.b16 %v1979
  %v2068 = vunpack.c.l.b16 %v1980
  %v2069 = vunpack.c.l.b16 %v1981
  %v2070 = vunpack.c.l.b16 %v1982
  %v2071 = vunpack.c.l.b16 %v1983
  %v2072 = vunpack.c.l.b16 %v1984
  %v2073 = vunpack.c.l.b16 %v1985
  %v2074 = vunpack.c.l.b16 %v1986
  %v2075 = vunpack.c.l.b16 %v1987
  %v2076 = vunpack.c.l.b16 %v1988
  %v2077 = vunpack.c.l.b16 %v1989
  %v2078 = vunpack.c.l.b16 %v1990
  %v2079 = vunpack.c.l.b16 %v1991
  %v2080 = vunpack.c.l.b16 %v1992
  %v2081 = vunpack.c.l.b16 %v1993
  %v2082 = vunpack.c.l.b16 %v1994
  %v2083 = vunpack.c.l.b16 %v1995
  %v2084 = vunpack.c.l.b16 %v1996
  %v2085 = vunpack.c.l.b16 %v1997
  %v2086 = vunpack.c.l.b16 %v1998
  %v2087 = vunpack.c.l.b16 %v1999
  %v2088 = vunpack.c.l.b16 %v2000
  %v2089 = vunpack.c.l.b16 %v2001
  %v2090 = vunpack.c.l.b16 %v2002
  %v2091 = vunpack.c.l.b16 %v2003
  %v2092 = vunpack.c.l.b16 %v2004
  %v2093 = vunpack.c.l.b16 %v2005
  %v2094 = vunpack.c.l.b16 %v2006
  %v2095 = vunpack.c.l.b16 %v2007
  %v2096 = vunpack.c.l.b16 %v2008
  %v2097 = vpack.c.b16 %v2066, %v2065
  %v2098 = vpack.c.b16 %v2068, %v2067
  %v2099 = vpack.c.b16 %v2070, %v2069
  %v2100 = vpack.c.b16 %v2072, %v2071
  %v2101 = vpack.c.b16 %v2074, %v2073
  %v2102 = vpack.c.b16 %v2076, %v2075
  %v2103 = vpack.c.b16 %v2078, %v2077
  %v2104 = vpack.c.b16 %v2080, %v2079
  %v2105 = vpack.c.b16 %v2082, %v2081
  %v2106 = vpack.c.b16 %v2084, %v2083
  %v2107 = vpack.c.b16 %v2086, %v2085
  %v2108 = vpack.c.b16 %v2088, %v2087
  %v2109 = vpack.c.b16 %v2090, %v2089
  %v2110 = vpack.c.b16 %v2092, %v2091
  %v2111 = vpack.c.b16 %v2094, %v2093
  %v2112 = vpack.c.b16 %v2096, %v2095
  %2129 = vmatpush.bf16.msra.mxu0 %v2104
  %2130 = vmatpush.bf16.msra.mxu0 %v2103
  %2131 = vmatpush.bf16.msra.mxu0 %v2102
  %2132 = vmatpush.bf16.msra.mxu0 %v2101
  %2133 = vmatpush.bf16.msra.mxu0 %v2100
  %2134 = vmatpush.bf16.msra.mxu0 %v2099
  %2135 = vmatpush.bf16.msra.mxu0 %v2098
  %2136 = vmatpush.bf16.msra.mxu0 %v2097
  %2137 = vmatmul.bf16.gmra.mxu0 %v2025
  %v2138 = vpop.f32.mrf.mxu0
  %v2139 = vadd.f32 %v2011, %v2138
  %v2140 = vpop.f32.mrf.mxu0
  %v2141 = vadd.f32 %v2011, %v2140
  %2142 = vmatmul.bf16.gmra.mxu0 %v2027
  %v2143 = vpop.f32.mrf.mxu0
  %v2144 = vadd.f32 %v2011, %v2143
  %v2145 = vpop.f32.mrf.mxu0
  %v2146 = vadd.f32 %v2011, %v2145
  %2147 = vdwg.mxu0
  %2148 = vmatpush.bf16.msra.mxu0 %v2112
  %2149 = vmatpush.bf16.msra.mxu0 %v2111
  %2150 = vmatpush.bf16.msra.mxu0 %v2110
  %2151 = vmatpush.bf16.msra.mxu0 %v2109
  %2152 = vmatpush.bf16.msra.mxu0 %v2108
  %2153 = vmatpush.bf16.msra.mxu0 %v2107
  %2154 = vmatpush.bf16.msra.mxu0 %v2106
  %2155 = vmatpush.bf16.msra.mxu0 %v2105
  %2156 = vmatmul.bf16.gmra.mxu0 %v2026
  %v2157 = vpop.f32.mrf.mxu0
  %v2158 = vadd.f32 %v2139, %v2157
  %v2159 = vpop.f32.mrf.mxu0
  %v2160 = vadd.f32 %v2141, %v2159
  %2161 = vmatmul.bf16.gmra.mxu0 %v2028
  %v2162 = vpop.f32.mrf.mxu0
  %v2163 = vadd.f32 %v2144, %v2162
  %v2164 = vpop.f32.mrf.mxu0
  %v2165 = vadd.f32 %v2146, %v2164
  %2166 = vdwg.mxu0
  %v2167 = vmax.f32 %v2158, 0.0
  %v2168 = vmax.f32 %v2160, 0.0
  %v2169 = vmax.f32 %v2163, 0.0
  %v2170 = vmax.f32 %v2165, 0.0
  %v2171 = vpack.c.bf16 %v2167, %v2167
  %2172 = vst [vmem:[#allocation5] sm:$0xf] %v2171
  %v2173 = vpack.c.bf16 %v2168, %v2168
  %2174 = vst [vmem:[#allocation5 + $0x4] sm:$0xf] %v2173
  %v2175 = vpack.c.bf16 %v2169, %v2169
  %2176 = vst [vmem:[#allocation5 + $0x8] sm:$0xf] %v2175
  %v2177 = vpack.c.bf16 %v2170, %v2170
  %2178 = vst [vmem:[#allocation5 + $0xc] sm:$0xf] %v2177
  %v2179 = vld [vmem:[#allocation5] sm:$0xff]
  %v2180 = vld [vmem:[#allocation5 + $0x8] sm:$0xff]
  %v2181 = vld [vmem:[%s9] sm:$0xff]
  %v2182 = vld [vmem:[%s9 + $0x8] sm:$0xff]
  %v2183 = vld [vmem:[%s9 + $0x10] sm:$0xff]
  %v2184 = vld [vmem:[%s9 + $0x18] sm:$0xff]
  %v2185 = vld [vmem:[%s9 + $0x20] sm:$0xff]
  %v2186 = vld [vmem:[%s9 + $0x28] sm:$0xff]
  %v2187 = vld [vmem:[%s9 + $0x30] sm:$0xff]
  %v2188 = vld [vmem:[%s9 + $0x38] sm:$0xff]
  %v2189 = vld [vmem:[%s9 + $0x40] sm:$0xff]
  %v2190 = vld [vmem:[%s9 + $0x48] sm:$0xff]
  %v2191 = vld [vmem:[%s9 + $0x50] sm:$0xff]
  %v2192 = vld [vmem:[%s9 + $0x58] sm:$0xff]
  %v2193 = vld [vmem:[%s9 + $0x60] sm:$0xff]
  %v2194 = vld [vmem:[%s9 + $0x68] sm:$0xff]
  %v2195 = vld [vmem:[%s9 + $0x70] sm:$0xff]
  %v2196 = vld [vmem:[%s9 + $0x78] sm:$0xff]
  %v2197 = vld [vmem:[%s9 + $0x80] sm:$0xff]
  %v2198 = vld [vmem:[%s9 + $0x88] sm:$0xff]
  %v2199 = vld [vmem:[%s9 + $0x90] sm:$0xff]
  %v2200 = vld [vmem:[%s9 + $0x98] sm:$0xff]
  %v2201 = vld [vmem:[%s9 + $0xa0] sm:$0xff]
  %v2202 = vld [vmem:[%s9 + $0xa8] sm:$0xff]
  %v2203 = vld [vmem:[%s9 + $0xb0] sm:$0xff]
  %v2204 = vld [vmem:[%s9 + $0xb8] sm:$0xff]
  %v2205 = vld [vmem:[%s9 + $0xc0] sm:$0xff]
  %v2206 = vld [vmem:[%s9 + $0xc8] sm:$0xff]
  %v2207 = vld [vmem:[%s9 + $0xd0] sm:$0xff]
  %v2208 = vld [vmem:[%s9 + $0xd8] sm:$0xff]
  %v2209 = vld [vmem:[%s9 + $0xe0] sm:$0xff]
  %v2210 = vld [vmem:[%s9 + $0xe8] sm:$0xff]
  %v2211 = vld [vmem:[%s9 + $0xf0] sm:$0xff]
  %v2212 = vld [vmem:[%s9 + $0xf8] sm:$0xff]
  %v2213 = vld [vmem:[%s9 + $0x100] sm:$0xff]
  %v2214 = vld [vmem:[%s9 + $0x108] sm:$0xff]
  %v2215 = vld [vmem:[%s9 + $0x110] sm:$0xff]
  %v2216 = vld [vmem:[%s9 + $0x118] sm:$0xff]
  %v2217 = vld [vmem:[%s9 + $0x120] sm:$0xff]
  %v2218 = vld [vmem:[%s9 + $0x128] sm:$0xff]
  %v2219 = vld [vmem:[%s9 + $0x130] sm:$0xff]
  %v2220 = vld [vmem:[%s9 + $0x138] sm:$0xff]
  %v2221 = vld [vmem:[%s9 + $0x140] sm:$0xff]
  %v2222 = vld [vmem:[%s9 + $0x148] sm:$0xff]
  %v2223 = vld [vmem:[%s9 + $0x150] sm:$0xff]
  %v2224 = vld [vmem:[%s9 + $0x158] sm:$0xff]
  %v2225 = vld [vmem:[%s9 + $0x160] sm:$0xff]
  %v2226 = vld [vmem:[%s9 + $0x168] sm:$0xff]
  %v2227 = vld [vmem:[%s9 + $0x170] sm:$0xff]
  %v2228 = vld [vmem:[%s9 + $0x178] sm:$0xff]
  %v2229 = vld [vmem:[%s9 + $0x180] sm:$0xff]
  %v2230 = vld [vmem:[%s9 + $0x188] sm:$0xff]
  %v2231 = vld [vmem:[%s9 + $0x190] sm:$0xff]
  %v2232 = vld [vmem:[%s9 + $0x198] sm:$0xff]
  %v2233 = vld [vmem:[%s9 + $0x1a0] sm:$0xff]
  %v2234 = vld [vmem:[%s9 + $0x1a8] sm:$0xff]
  %v2235 = vld [vmem:[%s9 + $0x1b0] sm:$0xff]
  %v2236 = vld [vmem:[%s9 + $0x1b8] sm:$0xff]
  %v2237 = vld [vmem:[%s9 + $0x1c0] sm:$0xff]
  %v2238 = vld [vmem:[%s9 + $0x1c8] sm:$0xff]
  %v2239 = vld [vmem:[%s9 + $0x1d0] sm:$0xff]
  %v2240 = vld [vmem:[%s9 + $0x1d8] sm:$0xff]
  %v2241 = vld [vmem:[%s9 + $0x1e0] sm:$0xff]
  %v2242 = vld [vmem:[%s9 + $0x1e8] sm:$0xff]
  %v2243 = vld [vmem:[%s9 + $0x1f0] sm:$0xff]
  %v2244 = vld [vmem:[%s9 + $0x1f8] sm:$0xff]
  %v2245 = vld [vmem:[%s10] sm:$0x3]
  %v2247 = vperm.slane %v2245, 0
  %v2248 = vperm.slane %v2245, 1
  %v2253 = vunpack.c.l.b16 %v2179
  %v2254 = vunpack.c.h.b16 %v2179
  %v2255 = vunpack.c.l.b16 %v2180
  %v2256 = vunpack.c.h.b16 %v2180
  %v2257 = vpack.c.b16 %v2253, %v2253
  %v2258 = vpack.c.b16 %v2254, %v2254
  %v2259 = vpack.c.b16 %v2255, %v2255
  %v2260 = vpack.c.b16 %v2256, %v2256
  %v2329 = vunpack.c.l.b16 %v2181
  %v2330 = vunpack.c.h.b16 %v2181
  %v2331 = vunpack.c.l.b16 %v2182
  %v2332 = vunpack.c.h.b16 %v2182
  %v2333 = vunpack.c.l.b16 %v2183
  %v2334 = vunpack.c.h.b16 %v2183
  %v2335 = vunpack.c.l.b16 %v2184
  %v2336 = vunpack.c.h.b16 %v2184
  %v2337 = vunpack.c.l.b16 %v2185
  %v2338 = vunpack.c.h.b16 %v2185
  %v2339 = vunpack.c.l.b16 %v2186
  %v2340 = vunpack.c.h.b16 %v2186
  %v2341 = vunpack.c.l.b16 %v2187
  %v2342 = vunpack.c.h.b16 %v2187
  %v2343 = vunpack.c.l.b16 %v2188
  %v2344 = vunpack.c.h.b16 %v2188
  %v2345 = vunpack.c.l.b16 %v2189
  %v2346 = vunpack.c.h.b16 %v2189
  %v2347 = vunpack.c.l.b16 %v2190
  %v2348 = vunpack.c.h.b16 %v2190
  %v2349 = vunpack.c.l.b16 %v2191
  %v2350 = vunpack.c.h.b16 %v2191
  %v2351 = vunpack.c.l.b16 %v2192
  %v2352 = vunpack.c.h.b16 %v2192
  %v2353 = vunpack.c.l.b16 %v2193
  %v2354 = vunpack.c.h.b16 %v2193
  %v2355 = vunpack.c.l.b16 %v2194
  %v2356 = vunpack.c.h.b16 %v2194
  %v2357 = vunpack.c.l.b16 %v2195
  %v2358 = vunpack.c.h.b16 %v2195
  %v2359 = vunpack.c.l.b16 %v2196
  %v2360 = vunpack.c.h.b16 %v2196
  %v2361 = vunpack.c.l.b16 %v2197
  %v2362 = vunpack.c.h.b16 %v2197
  %v2363 = vunpack.c.l.b16 %v2198
  %v2364 = vunpack.c.h.b16 %v2198
  %v2365 = vunpack.c.l.b16 %v2199
  %v2366 = vunpack.c.h.b16 %v2199
  %v2367 = vunpack.c.l.b16 %v2200
  %v2368 = vunpack.c.h.b16 %v2200
  %v2369 = vunpack.c.l.b16 %v2201
  %v2370 = vunpack.c.h.b16 %v2201
  %v2371 = vunpack.c.l.b16 %v2202
  %v2372 = vunpack.c.h.b16 %v2202
  %v2373 = vunpack.c.l.b16 %v2203
  %v2374 = vunpack.c.h.b16 %v2203
  %v2375 = vunpack.c.l.b16 %v2204
  %v2376 = vunpack.c.h.b16 %v2204
  %v2377 = vunpack.c.l.b16 %v2205
  %v2378 = vunpack.c.h.b16 %v2205
  %v2379 = vunpack.c.l.b16 %v2206
  %v2380 = vunpack.c.h.b16 %v2206
  %v2381 = vunpack.c.l.b16 %v2207
  %v2382 = vunpack.c.h.b16 %v2207
  %v2383 = vunpack.c.l.b16 %v2208
  %v2384 = vunpack.c.h.b16 %v2208
  %v2385 = vunpack.c.l.b16 %v2209
  %v2386 = vunpack.c.h.b16 %v2209
  %v2387 = vunpack.c.l.b16 %v2210
  %v2388 = vunpack.c.h.b16 %v2210
  %v2389 = vunpack.c.l.b16 %v2211
  %v2390 = vunpack.c.h.b16 %v2211
  %v2391 = vunpack.c.l.b16 %v2212
  %v2392 = vunpack.c.h.b16 %v2212
  %v2393 = vunpack.c.l.b16 %v2213
  %v2394 = vunpack.c.h.b16 %v2213
  %v2395 = vunpack.c.l.b16 %v2214
  %v2396 = vunpack.c.h.b16 %v2214
  %v2397 = vunpack.c.l.b16 %v2215
  %v2398 = vunpack.c.h.b16 %v2215
  %v2399 = vunpack.c.l.b16 %v2216
  %v2400 = vunpack.c.h.b16 %v2216
  %v2401 = vunpack.c.l.b16 %v2217
  %v2402 = vunpack.c.h.b16 %v2217
  %v2403 = vunpack.c.l.b16 %v2218
  %v2404 = vunpack.c.h.b16 %v2218
  %v2405 = vunpack.c.l.b16 %v2219
  %v2406 = vunpack.c.h.b16 %v2219
  %v2407 = vunpack.c.l.b16 %v2220
  %v2408 = vunpack.c.h.b16 %v2220
  %v2409 = vunpack.c.l.b16 %v2221
  %v2410 = vunpack.c.h.b16 %v2221
  %v2411 = vunpack.c.l.b16 %v2222
  %v2412 = vunpack.c.h.b16 %v2222
  %v2413 = vunpack.c.l.b16 %v2223
  %v2414 = vunpack.c.h.b16 %v2223
  %v2415 = vunpack.c.l.b16 %v2224
  %v2416 = vunpack.c.h.b16 %v2224
  %v2417 = vunpack.c.l.b16 %v2225
  %v2418 = vunpack.c.h.b16 %v2225
  %v2419 = vunpack.c.l.b16 %v2226
  %v2420 = vunpack.c.h.b16 %v2226
  %v2421 = vunpack.c.l.b16 %v2227
  %v2422 = vunpack.c.h.b16 %v2227
  %v2423 = vunpack.c.l.b16 %v2228
  %v2424 = vunpack.c.h.b16 %v2228
  %v2425 = vunpack.c.l.b16 %v2229
  %v2426 = vunpack.c.h.b16 %v2229
  %v2427 = vunpack.c.l.b16 %v2230
  %v2428 = vunpack.c.h.b16 %v2230
  %v2429 = vunpack.c.l.b16 %v2231
  %v2430 = vunpack.c.h.b16 %v2231
  %v2431 = vunpack.c.l.b16 %v2232
  %v2432 = vunpack.c.h.b16 %v2232
  %v2433 = vunpack.c.l.b16 %v2233
  %v2434 = vunpack.c.h.b16 %v2233
  %v2435 = vunpack.c.l.b16 %v2234
  %v2436 = vunpack.c.h.b16 %v2234
  %v2437 = vunpack.c.l.b16 %v2235
  %v2438 = vunpack.c.h.b16 %v2235
  %v2439 = vunpack.c.l.b16 %v2236
  %v2440 = vunpack.c.h.b16 %v2236
  %v2441 = vunpack.c.l.b16 %v2237
  %v2442 = vunpack.c.h.b16 %v2237
  %v2443 = vunpack.c.l.b16 %v2238
  %v2444 = vunpack.c.h.b16 %v2238
  %v2445 = vunpack.c.l.b16 %v2239
  %v2446 = vunpack.c.h.b16 %v2239
  %v2447 = vunpack.c.l.b16 %v2240
  %v2448 = vunpack.c.h.b16 %v2240
  %v2449 = vunpack.c.l.b16 %v2241
  %v2450 = vunpack.c.h.b16 %v2241
  %v2451 = vunpack.c.l.b16 %v2242
  %v2452 = vunpack.c.h.b16 %v2242
  %v2453 = vunpack.c.l.b16 %v2243
  %v2454 = vunpack.c.h.b16 %v2243
  %v2455 = vunpack.c.l.b16 %v2244
  %v2456 = vunpack.c.h.b16 %v2244
  %v2457 = vpack.c.b16 %v2331, %v2329
  %v2458 = vpack.c.b16 %v2332, %v2330
  %v2459 = vpack.c.b16 %v2335, %v2333
  %v2460 = vpack.c.b16 %v2336, %v2334
  %v2461 = vpack.c.b16 %v2339, %v2337
  %v2462 = vpack.c.b16 %v2340, %v2338
  %v2463 = vpack.c.b16 %v2343, %v2341
  %v2464 = vpack.c.b16 %v2344, %v2342
  %v2465 = vpack.c.b16 %v2347, %v2345
  %v2466 = vpack.c.b16 %v2348, %v2346
  %v2467 = vpack.c.b16 %v2351, %v2349
  %v2468 = vpack.c.b16 %v2352, %v2350
  %v2469 = vpack.c.b16 %v2355, %v2353
  %v2470 = vpack.c.b16 %v2356, %v2354
  %v2471 = vpack.c.b16 %v2359, %v2357
  %v2472 = vpack.c.b16 %v2360, %v2358
  %v2473 = vpack.c.b16 %v2363, %v2361
  %v2474 = vpack.c.b16 %v2364, %v2362
  %v2475 = vpack.c.b16 %v2367, %v2365
  %v2476 = vpack.c.b16 %v2368, %v2366
  %v2477 = vpack.c.b16 %v2371, %v2369
  %v2478 = vpack.c.b16 %v2372, %v2370
  %v2479 = vpack.c.b16 %v2375, %v2373
  %v2480 = vpack.c.b16 %v2376, %v2374
  %v2481 = vpack.c.b16 %v2379, %v2377
  %v2482 = vpack.c.b16 %v2380, %v2378
  %v2483 = vpack.c.b16 %v2383, %v2381
  %v2484 = vpack.c.b16 %v2384, %v2382
  %v2485 = vpack.c.b16 %v2387, %v2385
  %v2486 = vpack.c.b16 %v2388, %v2386
  %v2487 = vpack.c.b16 %v2391, %v2389
  %v2488 = vpack.c.b16 %v2392, %v2390
  %v2489 = vpack.c.b16 %v2395, %v2393
  %v2490 = vpack.c.b16 %v2396, %v2394
  %v2491 = vpack.c.b16 %v2399, %v2397
  %v2492 = vpack.c.b16 %v2400, %v2398
  %v2493 = vpack.c.b16 %v2403, %v2401
  %v2494 = vpack.c.b16 %v2404, %v2402
  %v2495 = vpack.c.b16 %v2407, %v2405
  %v2496 = vpack.c.b16 %v2408, %v2406
  %v2497 = vpack.c.b16 %v2411, %v2409
  %v2498 = vpack.c.b16 %v2412, %v2410
  %v2499 = vpack.c.b16 %v2415, %v2413
  %v2500 = vpack.c.b16 %v2416, %v2414
  %v2501 = vpack.c.b16 %v2419, %v2417
  %v2502 = vpack.c.b16 %v2420, %v2418
  %v2503 = vpack.c.b16 %v2423, %v2421
  %v2504 = vpack.c.b16 %v2424, %v2422
  %v2505 = vpack.c.b16 %v2427, %v2425
  %v2506 = vpack.c.b16 %v2428, %v2426
  %v2507 = vpack.c.b16 %v2431, %v2429
  %v2508 = vpack.c.b16 %v2432, %v2430
  %v2509 = vpack.c.b16 %v2435, %v2433
  %v2510 = vpack.c.b16 %v2436, %v2434
  %v2511 = vpack.c.b16 %v2439, %v2437
  %v2512 = vpack.c.b16 %v2440, %v2438
  %v2513 = vpack.c.b16 %v2443, %v2441
  %v2514 = vpack.c.b16 %v2444, %v2442
  %v2515 = vpack.c.b16 %v2447, %v2445
  %v2516 = vpack.c.b16 %v2448, %v2446
  %v2517 = vpack.c.b16 %v2451, %v2449
  %v2518 = vpack.c.b16 %v2452, %v2450
  %v2519 = vpack.c.b16 %v2455, %v2453
  %v2520 = vpack.c.b16 %v2456, %v2454
  %2585 = vmatpush.bf16.msra.mxu0 %v2471
  %2586 = vmatpush.bf16.msra.mxu0 %v2469
  %2587 = vmatpush.bf16.msra.mxu0 %v2467
  %2588 = vmatpush.bf16.msra.mxu0 %v2465
  %2589 = vmatpush.bf16.msra.mxu0 %v2463
  %2590 = vmatpush.bf16.msra.mxu0 %v2461
  %2591 = vmatpush.bf16.msra.mxu0 %v2459
  %2592 = vmatpush.bf16.msra.mxu0 %v2457
  %2593 = vmatmul.bf16.gmra.mxu0 %v2257
  %v2594 = vpop.f32.mrf.mxu0
  %v2595 = vadd.f32 %v2247, %v2594
  %v2596 = vpop.f32.mrf.mxu0
  %2597 = vdwg.mxu0
  %2598 = vmatpush.bf16.msra.mxu0 %v2487
  %2599 = vmatpush.bf16.msra.mxu0 %v2485
  %2600 = vmatpush.bf16.msra.mxu0 %v2483
  %2601 = vmatpush.bf16.msra.mxu0 %v2481
  %2602 = vmatpush.bf16.msra.mxu0 %v2479
  %2603 = vmatpush.bf16.msra.mxu0 %v2477
  %2604 = vmatpush.bf16.msra.mxu0 %v2475
  %2605 = vmatpush.bf16.msra.mxu0 %v2473
  %2606 = vmatmul.bf16.gmra.mxu0 %v2258
  %v2607 = vpop.f32.mrf.mxu0
  %v2608 = vadd.f32 %v2595, %v2607
  %v2609 = vpop.f32.mrf.mxu0
  %2610 = vdwg.mxu0
  %2611 = vmatpush.bf16.msra.mxu0 %v2503
  %2612 = vmatpush.bf16.msra.mxu0 %v2501
  %2613 = vmatpush.bf16.msra.mxu0 %v2499
  %2614 = vmatpush.bf16.msra.mxu0 %v2497
  %2615 = vmatpush.bf16.msra.mxu0 %v2495
  %2616 = vmatpush.bf16.msra.mxu0 %v2493
  %2617 = vmatpush.bf16.msra.mxu0 %v2491
  %2618 = vmatpush.bf16.msra.mxu0 %v2489
  %2619 = vmatmul.bf16.gmra.mxu0 %v2259
  %v2620 = vpop.f32.mrf.mxu0
  %v2621 = vadd.f32 %v2608, %v2620
  %v2622 = vpop.f32.mrf.mxu0
  %2623 = vdwg.mxu0
  %2624 = vmatpush.bf16.msra.mxu0 %v2519
  %2625 = vmatpush.bf16.msra.mxu0 %v2517
  %2626 = vmatpush.bf16.msra.mxu0 %v2515
  %2627 = vmatpush.bf16.msra.mxu0 %v2513
  %2628 = vmatpush.bf16.msra.mxu0 %v2511
  %2629 = vmatpush.bf16.msra.mxu0 %v2509
  %2630 = vmatpush.bf16.msra.mxu0 %v2507
  %2631 = vmatpush.bf16.msra.mxu0 %v2505
  %2632 = vmatmul.bf16.gmra.mxu0 %v2260
  %v2633 = vpop.f32.mrf.mxu0
  %v2634 = vadd.f32 %v2621, %v2633
  %v2635 = vpop.f32.mrf.mxu0
  %2636 = vdwg.mxu0
  %2637 = vmatpush.bf16.msra.mxu0 %v2472
  %2638 = vmatpush.bf16.msra.mxu0 %v2470
  %2639 = vmatpush.bf16.msra.mxu0 %v2468
  %2640 = vmatpush.bf16.msra.mxu0 %v2466
  %2641 = vmatpush.bf16.msra.mxu0 %v2464
  %2642 = vmatpush.bf16.msra.mxu0 %v2462
  %2643 = vmatpush.bf16.msra.mxu0 %v2460
  %2644 = vmatpush.bf16.msra.mxu0 %v2458
  %2645 = vmatmul.bf16.gmra.mxu0 %v2257
  %v2646 = vpop.f32.mrf.mxu0
  %v2647 = vadd.f32 %v2248, %v2646
  %v2648 = vpop.f32.mrf.mxu0
  %2649 = vdwg.mxu0
  %2650 = vmatpush.bf16.msra.mxu0 %v2488
  %2651 = vmatpush.bf16.msra.mxu0 %v2486
  %2652 = vmatpush.bf16.msra.mxu0 %v2484
  %2653 = vmatpush.bf16.msra.mxu0 %v2482
  %2654 = vmatpush.bf16.msra.mxu0 %v2480
  %2655 = vmatpush.bf16.msra.mxu0 %v2478
  %2656 = vmatpush.bf16.msra.mxu0 %v2476
  %2657 = vmatpush.bf16.msra.mxu0 %v2474
  %2658 = vmatmul.bf16.gmra.mxu0 %v2258
  %v2659 = vpop.f32.mrf.mxu0
  %v2660 = vadd.f32 %v2647, %v2659
  %v2661 = vpop.f32.mrf.mxu0
  %2662 = vdwg.mxu0
  %2663 = vmatpush.bf16.msra.mxu0 %v2504
  %2664 = vmatpush.bf16.msra.mxu0 %v2502
  %2665 = vmatpush.bf16.msra.mxu0 %v2500
  %2666 = vmatpush.bf16.msra.mxu0 %v2498
  %2667 = vmatpush.bf16.msra.mxu0 %v2496
  %2668 = vmatpush.bf16.msra.mxu0 %v2494
  %2669 = vmatpush.bf16.msra.mxu0 %v2492
  %2670 = vmatpush.bf16.msra.mxu0 %v2490
  %2671 = vmatmul.bf16.gmra.mxu0 %v2259
  %v2672 = vpop.f32.mrf.mxu0
  %v2673 = vadd.f32 %v2660, %v2672
  %v2674 = vpop.f32.mrf.mxu0
  %2675 = vdwg.mxu0
  %2676 = vmatpush.bf16.msra.mxu0 %v2520
  %2677 = vmatpush.bf16.msra.mxu0 %v2518
  %2678 = vmatpush.bf16.msra.mxu0 %v2516
  %2679 = vmatpush.bf16.msra.mxu0 %v2514
  %2680 = vmatpush.bf16.msra.mxu0 %v2512
  %2681 = vmatpush.bf16.msra.mxu0 %v2510
  %2682 = vmatpush.bf16.msra.mxu0 %v2508
  %2683 = vmatpush.bf16.msra.mxu0 %v2506
  %2684 = vmatmul.bf16.gmra.mxu0 %v2260
  %v2685 = vpop.f32.mrf.mxu0
  %v2686 = vadd.f32 %v2673, %v2685
  %v2687 = vpop.f32.mrf.mxu0
  %2688 = vdwg.mxu0
  %v2689 = vmax.f32 %v2634, 0.0
  %v2690 = vmax.f32 %v2686, 0.0
  %v2691 = vpack.c.bf16 %v2689, %v2689
  %v2692 = vpack.c.bf16 %v2690, %v2690
  %v2693 = vld [vmem:[%s11] sm:$0xff]
  %v2694 = vld [vmem:[%s11 + $0x8] sm:$0xff]
  %v2695 = vld [vmem:[%s11 + $0x10] sm:$0xff]
  %v2696 = vld [vmem:[%s11 + $0x18] sm:$0xff]
  %v2697 = vld [vmem:[%s11 + $0x20] sm:$0xff]
  %v2698 = vld [vmem:[%s11 + $0x28] sm:$0xff]
  %v2699 = vld [vmem:[%s11 + $0x30] sm:$0xff]
  %v2700 = vld [vmem:[%s11 + $0x38] sm:$0xff]
  %v2701 = vld [vmem:[%s11 + $0x40] sm:$0xff]
  %v2702 = vld [vmem:[%s11 + $0x48] sm:$0xff]
  %v2703 = vld [vmem:[%s11 + $0x50] sm:$0xff]
  %v2704 = vld [vmem:[%s11 + $0x58] sm:$0xff]
  %v2705 = vld [vmem:[%s11 + $0x60] sm:$0xff]
  %v2706 = vld [vmem:[%s11 + $0x68] sm:$0xff]
  %v2707 = vld [vmem:[%s11 + $0x70] sm:$0xff]
  %v2708 = vld [vmem:[%s11 + $0x78] sm:$0xff]
  %v2709 = vld [vmem:[%s11 + $0x80] sm:$0xff]
  %v2710 = vld [vmem:[%s11 + $0x88] sm:$0xff]
  %v2711 = vld [vmem:[%s11 + $0x90] sm:$0xff]
  %v2712 = vld [vmem:[%s11 + $0x98] sm:$0xff]
  %v2713 = vld [vmem:[%s11 + $0xa0] sm:$0xff]
  %v2714 = vld [vmem:[%s11 + $0xa8] sm:$0xff]
  %v2715 = vld [vmem:[%s11 + $0xb0] sm:$0xff]
  %v2716 = vld [vmem:[%s11 + $0xb8] sm:$0xff]
  %v2717 = vld [vmem:[%s11 + $0xc0] sm:$0xff]
  %v2718 = vld [vmem:[%s11 + $0xc8] sm:$0xff]
  %v2719 = vld [vmem:[%s11 + $0xd0] sm:$0xff]
  %v2720 = vld [vmem:[%s11 + $0xd8] sm:$0xff]
  %v2721 = vld [vmem:[%s11 + $0xe0] sm:$0xff]
  %v2722 = vld [vmem:[%s11 + $0xe8] sm:$0xff]
  %v2723 = vld [vmem:[%s11 + $0xf0] sm:$0xff]
  %v2724 = vld [vmem:[%s11 + $0xf8] sm:$0xff]
  %v2725 = vld [vmem:[%s11 + $0x100] sm:$0xff]
  %v2726 = vld [vmem:[%s11 + $0x108] sm:$0xff]
  %v2727 = vld [vmem:[%s11 + $0x110] sm:$0xff]
  %v2728 = vld [vmem:[%s11 + $0x118] sm:$0xff]
  %v2729 = vld [vmem:[%s11 + $0x120] sm:$0xff]
  %v2730 = vld [vmem:[%s11 + $0x128] sm:$0xff]
  %v2731 = vld [vmem:[%s11 + $0x130] sm:$0xff]
  %v2732 = vld [vmem:[%s11 + $0x138] sm:$0xff]
  %v2733 = vld [vmem:[%s11 + $0x140] sm:$0xff]
  %v2734 = vld [vmem:[%s11 + $0x148] sm:$0xff]
  %v2735 = vld [vmem:[%s11 + $0x150] sm:$0xff]
  %v2736 = vld [vmem:[%s11 + $0x158] sm:$0xff]
  %v2737 = vld [vmem:[%s11 + $0x160] sm:$0xff]
  %v2738 = vld [vmem:[%s11 + $0x168] sm:$0xff]
  %v2739 = vld [vmem:[%s11 + $0x170] sm:$0xff]
  %v2740 = vld [vmem:[%s11 + $0x178] sm:$0xff]
  %v2741 = vld [vmem:[%s11 + $0x180] sm:$0xff]
  %v2742 = vld [vmem:[%s11 + $0x188] sm:$0xff]
  %v2743 = vld [vmem:[%s11 + $0x190] sm:$0xff]
  %v2744 = vld [vmem:[%s11 + $0x198] sm:$0xff]
  %v2745 = vld [vmem:[%s11 + $0x1a0] sm:$0xff]
  %v2746 = vld [vmem:[%s11 + $0x1a8] sm:$0xff]
  %v2747 = vld [vmem:[%s11 + $0x1b0] sm:$0xff]
  %v2748 = vld [vmem:[%s11 + $0x1b8] sm:$0xff]
  %v2749 = vld [vmem:[%s11 + $0x1c0] sm:$0xff]
  %v2750 = vld [vmem:[%s11 + $0x1c8] sm:$0xff]
  %v2751 = vld [vmem:[%s11 + $0x1d0] sm:$0xff]
  %v2752 = vld [vmem:[%s11 + $0x1d8] sm:$0xff]
  %v2753 = vld [vmem:[%s11 + $0x1e0] sm:$0xff]
  %v2754 = vld [vmem:[%s11 + $0x1e8] sm:$0xff]
  %v2755 = vld [vmem:[%s11 + $0x1f0] sm:$0xff]
  %v2756 = vld [vmem:[%s11 + $0x1f8] sm:$0xff]
  %v2757 = vld [vmem:[%s12] sm:$0xf]
  %v2759 = vperm.slane %v2757, 0
  %v2760 = vperm.slane %v2757, 1
  %v2761 = vperm.slane %v2757, 2
  %v2762 = vperm.slane %v2757, 3
  %v2831 = vunpack.c.l.b16 %v2693
  %v2832 = vunpack.c.h.b16 %v2693
  %v2833 = vunpack.c.l.b16 %v2694
  %v2834 = vunpack.c.h.b16 %v2694
  %v2835 = vunpack.c.l.b16 %v2695
  %v2836 = vunpack.c.h.b16 %v2695
  %v2837 = vunpack.c.l.b16 %v2696
  %v2838 = vunpack.c.h.b16 %v2696
  %v2839 = vunpack.c.l.b16 %v2697
  %v2840 = vunpack.c.h.b16 %v2697
  %v2841 = vunpack.c.l.b16 %v2698
  %v2842 = vunpack.c.h.b16 %v2698
  %v2843 = vunpack.c.l.b16 %v2699
  %v2844 = vunpack.c.h.b16 %v2699
  %v2845 = vunpack.c.l.b16 %v2700
  %v2846 = vunpack.c.h.b16 %v2700
  %v2847 = vunpack.c.l.b16 %v2701
  %v2848 = vunpack.c.h.b16 %v2701
  %v2849 = vunpack.c.l.b16 %v2702
  %v2850 = vunpack.c.h.b16 %v2702
  %v2851 = vunpack.c.l.b16 %v2703
  %v2852 = vunpack.c.h.b16 %v2703
  %v2853 = vunpack.c.l.b16 %v2704
  %v2854 = vunpack.c.h.b16 %v2704
  %v2855 = vunpack.c.l.b16 %v2705
  %v2856 = vunpack.c.h.b16 %v2705
  %v2857 = vunpack.c.l.b16 %v2706
  %v2858 = vunpack.c.h.b16 %v2706
  %v2859 = vunpack.c.l.b16 %v2707
  %v2860 = vunpack.c.h.b16 %v2707
  %v2861 = vunpack.c.l.b16 %v2708
  %v2862 = vunpack.c.h.b16 %v2708
  %v2863 = vunpack.c.l.b16 %v2709
  %v2864 = vunpack.c.h.b16 %v2709
  %v2865 = vunpack.c.l.b16 %v2710
  %v2866 = vunpack.c.h.b16 %v2710
  %v2867 = vunpack.c.l.b16 %v2711
  %v2868 = vunpack.c.h.b16 %v2711
  %v2869 = vunpack.c.l.b16 %v2712
  %v2870 = vunpack.c.h.b16 %v2712
  %v2871 = vunpack.c.l.b16 %v2713
  %v2872 = vunpack.c.h.b16 %v2713
  %v2873 = vunpack.c.l.b16 %v2714
  %v2874 = vunpack.c.h.b16 %v2714
  %v2875 = vunpack.c.l.b16 %v2715
  %v2876 = vunpack.c.h.b16 %v2715
  %v2877 = vunpack.c.l.b16 %v2716
  %v2878 = vunpack.c.h.b16 %v2716
  %v2879 = vunpack.c.l.b16 %v2717
  %v2880 = vunpack.c.h.b16 %v2717
  %v2881 = vunpack.c.l.b16 %v2718
  %v2882 = vunpack.c.h.b16 %v2718
  %v2883 = vunpack.c.l.b16 %v2719
  %v2884 = vunpack.c.h.b16 %v2719
  %v2885 = vunpack.c.l.b16 %v2720
  %v2886 = vunpack.c.h.b16 %v2720
  %v2887 = vunpack.c.l.b16 %v2721
  %v2888 = vunpack.c.h.b16 %v2721
  %v2889 = vunpack.c.l.b16 %v2722
  %v2890 = vunpack.c.h.b16 %v2722
  %v2891 = vunpack.c.l.b16 %v2723
  %v2892 = vunpack.c.h.b16 %v2723
  %v2893 = vunpack.c.l.b16 %v2724
  %v2894 = vunpack.c.h.b16 %v2724
  %v2895 = vunpack.c.l.b16 %v2725
  %v2896 = vunpack.c.h.b16 %v2725
  %v2897 = vunpack.c.l.b16 %v2726
  %v2898 = vunpack.c.h.b16 %v2726
  %v2899 = vunpack.c.l.b16 %v2727
  %v2900 = vunpack.c.h.b16 %v2727
  %v2901 = vunpack.c.l.b16 %v2728
  %v2902 = vunpack.c.h.b16 %v2728
  %v2903 = vunpack.c.l.b16 %v2729
  %v2904 = vunpack.c.h.b16 %v2729
  %v2905 = vunpack.c.l.b16 %v2730
  %v2906 = vunpack.c.h.b16 %v2730
  %v2907 = vunpack.c.l.b16 %v2731
  %v2908 = vunpack.c.h.b16 %v2731
  %v2909 = vunpack.c.l.b16 %v2732
  %v2910 = vunpack.c.h.b16 %v2732
  %v2911 = vunpack.c.l.b16 %v2733
  %v2912 = vunpack.c.h.b16 %v2733
  %v2913 = vunpack.c.l.b16 %v2734
  %v2914 = vunpack.c.h.b16 %v2734
  %v2915 = vunpack.c.l.b16 %v2735
  %v2916 = vunpack.c.h.b16 %v2735
  %v2917 = vunpack.c.l.b16 %v2736
  %v2918 = vunpack.c.h.b16 %v2736
  %v2919 = vunpack.c.l.b16 %v2737
  %v2920 = vunpack.c.h.b16 %v2737
  %v2921 = vunpack.c.l.b16 %v2738
  %v2922 = vunpack.c.h.b16 %v2738
  %v2923 = vunpack.c.l.b16 %v2739
  %v2924 = vunpack.c.h.b16 %v2739
  %v2925 = vunpack.c.l.b16 %v2740
  %v2926 = vunpack.c.h.b16 %v2740
  %v2927 = vunpack.c.l.b16 %v2741
  %v2928 = vunpack.c.h.b16 %v2741
  %v2929 = vunpack.c.l.b16 %v2742
  %v2930 = vunpack.c.h.b16 %v2742
  %v2931 = vunpack.c.l.b16 %v2743
  %v2932 = vunpack.c.h.b16 %v2743
  %v2933 = vunpack.c.l.b16 %v2744
  %v2934 = vunpack.c.h.b16 %v2744
  %v2935 = vunpack.c.l.b16 %v2745
  %v2936 = vunpack.c.h.b16 %v2745
  %v2937 = vunpack.c.l.b16 %v2746
  %v2938 = vunpack.c.h.b16 %v2746
  %v2939 = vunpack.c.l.b16 %v2747
  %v2940 = vunpack.c.h.b16 %v2747
  %v2941 = vunpack.c.l.b16 %v2748
  %v2942 = vunpack.c.h.b16 %v2748
  %v2943 = vunpack.c.l.b16 %v2749
  %v2944 = vunpack.c.h.b16 %v2749
  %v2945 = vunpack.c.l.b16 %v2750
  %v2946 = vunpack.c.h.b16 %v2750
  %v2947 = vunpack.c.l.b16 %v2751
  %v2948 = vunpack.c.h.b16 %v2751
  %v2949 = vunpack.c.l.b16 %v2752
  %v2950 = vunpack.c.h.b16 %v2752
  %v2951 = vunpack.c.l.b16 %v2753
  %v2952 = vunpack.c.h.b16 %v2753
  %v2953 = vunpack.c.l.b16 %v2754
  %v2954 = vunpack.c.h.b16 %v2754
  %v2955 = vunpack.c.l.b16 %v2755
  %v2956 = vunpack.c.h.b16 %v2755
  %v2957 = vunpack.c.l.b16 %v2756
  %v2958 = vunpack.c.h.b16 %v2756
  %v2959 = vpack.c.b16 %v2835, %v2831
  %v2960 = vpack.c.b16 %v2836, %v2832
  %v2961 = vpack.c.b16 %v2837, %v2833
  %v2962 = vpack.c.b16 %v2838, %v2834
  %v2963 = vpack.c.b16 %v2843, %v2839
  %v2964 = vpack.c.b16 %v2844, %v2840
  %v2965 = vpack.c.b16 %v2845, %v2841
  %v2966 = vpack.c.b16 %v2846, %v2842
  %v2967 = vpack.c.b16 %v2851, %v2847
  %v2968 = vpack.c.b16 %v2852, %v2848
  %v2969 = vpack.c.b16 %v2853, %v2849
  %v2970 = vpack.c.b16 %v2854, %v2850
  %v2971 = vpack.c.b16 %v2859, %v2855
  %v2972 = vpack.c.b16 %v2860, %v2856
  %v2973 = vpack.c.b16 %v2861, %v2857
  %v2974 = vpack.c.b16 %v2862, %v2858
  %v2975 = vpack.c.b16 %v2867, %v2863
  %v2976 = vpack.c.b16 %v2868, %v2864
  %v2977 = vpack.c.b16 %v2869, %v2865
  %v2978 = vpack.c.b16 %v2870, %v2866
  %v2979 = vpack.c.b16 %v2875, %v2871
  %v2980 = vpack.c.b16 %v2876, %v2872
  %v2981 = vpack.c.b16 %v2877, %v2873
  %v2982 = vpack.c.b16 %v2878, %v2874
  %v2983 = vpack.c.b16 %v2883, %v2879
  %v2984 = vpack.c.b16 %v2884, %v2880
  %v2985 = vpack.c.b16 %v2885, %v2881
  %v2986 = vpack.c.b16 %v2886, %v2882
  %v2987 = vpack.c.b16 %v2891, %v2887
  %v2988 = vpack.c.b16 %v2892, %v2888
  %v2989 = vpack.c.b16 %v2893, %v2889
  %v2990 = vpack.c.b16 %v2894, %v2890
  %v2991 = vpack.c.b16 %v2899, %v2895
  %v2992 = vpack.c.b16 %v2900, %v2896
  %v2993 = vpack.c.b16 %v2901, %v2897
  %v2994 = vpack.c.b16 %v2902, %v2898
  %v2995 = vpack.c.b16 %v2907, %v2903
  %v2996 = vpack.c.b16 %v2908, %v2904
  %v2997 = vpack.c.b16 %v2909, %v2905
  %v2998 = vpack.c.b16 %v2910, %v2906
  %v2999 = vpack.c.b16 %v2915, %v2911
  %v3000 = vpack.c.b16 %v2916, %v2912
  %v3001 = vpack.c.b16 %v2917, %v2913
  %v3002 = vpack.c.b16 %v2918, %v2914
  %v3003 = vpack.c.b16 %v2923, %v2919
  %v3004 = vpack.c.b16 %v2924, %v2920
  %v3005 = vpack.c.b16 %v2925, %v2921
  %v3006 = vpack.c.b16 %v2926, %v2922
  %v3007 = vpack.c.b16 %v2931, %v2927
  %v3008 = vpack.c.b16 %v2932, %v2928
  %v3009 = vpack.c.b16 %v2933, %v2929
  %v3010 = vpack.c.b16 %v2934, %v2930
  %v3011 = vpack.c.b16 %v2939, %v2935
  %v3012 = vpack.c.b16 %v2940, %v2936
  %v3013 = vpack.c.b16 %v2941, %v2937
  %v3014 = vpack.c.b16 %v2942, %v2938
  %v3015 = vpack.c.b16 %v2947, %v2943
  %v3016 = vpack.c.b16 %v2948, %v2944
  %v3017 = vpack.c.b16 %v2949, %v2945
  %v3018 = vpack.c.b16 %v2950, %v2946
  %v3019 = vpack.c.b16 %v2955, %v2951
  %v3020 = vpack.c.b16 %v2956, %v2952
  %v3021 = vpack.c.b16 %v2957, %v2953
  %v3022 = vpack.c.b16 %v2958, %v2954
  %3087 = vmatpush.bf16.msra.mxu0 %v2987
  %3088 = vmatpush.bf16.msra.mxu0 %v2983
  %3089 = vmatpush.bf16.msra.mxu0 %v2979
  %3090 = vmatpush.bf16.msra.mxu0 %v2975
  %3091 = vmatpush.bf16.msra.mxu0 %v2971
  %3092 = vmatpush.bf16.msra.mxu0 %v2967
  %3093 = vmatpush.bf16.msra.mxu0 %v2963
  %3094 = vmatpush.bf16.msra.mxu0 %v2959
  %3095 = vmatmul.bf16.gmra.mxu0 %v2691
  %v3096 = vpop.f32.mrf.mxu0
  %v3097 = vadd.f32 %v2759, %v3096
  %v3098 = vpop.f32.mrf.mxu0
  %3099 = vdwg.mxu0
  %3100 = vmatpush.bf16.msra.mxu0 %v3019
  %3101 = vmatpush.bf16.msra.mxu0 %v3015
  %3102 = vmatpush.bf16.msra.mxu0 %v3011
  %3103 = vmatpush.bf16.msra.mxu0 %v3007
  %3104 = vmatpush.bf16.msra.mxu0 %v3003
  %3105 = vmatpush.bf16.msra.mxu0 %v2999
  %3106 = vmatpush.bf16.msra.mxu0 %v2995
  %3107 = vmatpush.bf16.msra.mxu0 %v2991
  %3108 = vmatmul.bf16.gmra.mxu0 %v2692
  %v3109 = vpop.f32.mrf.mxu0
  %v3110 = vadd.f32 %v3097, %v3109
  %v3111 = vpop.f32.mrf.mxu0
  %3112 = vdwg.mxu0
  %3113 = vmatpush.bf16.msra.mxu0 %v2988
  %3114 = vmatpush.bf16.msra.mxu0 %v2984
  %3115 = vmatpush.bf16.msra.mxu0 %v2980
  %3116 = vmatpush.bf16.msra.mxu0 %v2976
  %3117 = vmatpush.bf16.msra.mxu0 %v2972
  %3118 = vmatpush.bf16.msra.mxu0 %v2968
  %3119 = vmatpush.bf16.msra.mxu0 %v2964
  %3120 = vmatpush.bf16.msra.mxu0 %v2960
  %3121 = vmatmul.bf16.gmra.mxu0 %v2691
  %v3122 = vpop.f32.mrf.mxu0
  %v3123 = vadd.f32 %v2760, %v3122
  %v3124 = vpop.f32.mrf.mxu0
  %3125 = vdwg.mxu0
  %3126 = vmatpush.bf16.msra.mxu0 %v3020
  %3127 = vmatpush.bf16.msra.mxu0 %v3016
  %3128 = vmatpush.bf16.msra.mxu0 %v3012
  %3129 = vmatpush.bf16.msra.mxu0 %v3008
  %3130 = vmatpush.bf16.msra.mxu0 %v3004
  %3131 = vmatpush.bf16.msra.mxu0 %v3000
  %3132 = vmatpush.bf16.msra.mxu0 %v2996
  %3133 = vmatpush.bf16.msra.mxu0 %v2992
  %3134 = vmatmul.bf16.gmra.mxu0 %v2692
  %v3135 = vpop.f32.mrf.mxu0
  %v3136 = vadd.f32 %v3123, %v3135
  %v3137 = vpop.f32.mrf.mxu0
  %3138 = vdwg.mxu0
  %3139 = vmatpush.bf16.msra.mxu0 %v2989
  %3140 = vmatpush.bf16.msra.mxu0 %v2985
  %3141 = vmatpush.bf16.msra.mxu0 %v2981
  %3142 = vmatpush.bf16.msra.mxu0 %v2977
  %3143 = vmatpush.bf16.msra.mxu0 %v2973
  %3144 = vmatpush.bf16.msra.mxu0 %v2969
  %3145 = vmatpush.bf16.msra.mxu0 %v2965
  %3146 = vmatpush.bf16.msra.mxu0 %v2961
  %3147 = vmatmul.bf16.gmra.mxu0 %v2691
  %v3148 = vpop.f32.mrf.mxu0
  %v3149 = vadd.f32 %v2761, %v3148
  %v3150 = vpop.f32.mrf.mxu0
  %3151 = vdwg.mxu0
  %3152 = vmatpush.bf16.msra.mxu0 %v3021
  %3153 = vmatpush.bf16.msra.mxu0 %v3017
  %3154 = vmatpush.bf16.msra.mxu0 %v3013
  %3155 = vmatpush.bf16.msra.mxu0 %v3009
  %3156 = vmatpush.bf16.msra.mxu0 %v3005
  %3157 = vmatpush.bf16.msra.mxu0 %v3001
  %3158 = vmatpush.bf16.msra.mxu0 %v2997
  %3159 = vmatpush.bf16.msra.mxu0 %v2993
  %3160 = vmatmul.bf16.gmra.mxu0 %v2692
  %v3161 = vpop.f32.mrf.mxu0
  %v3162 = vadd.f32 %v3149, %v3161
  %v3163 = vpop.f32.mrf.mxu0
  %3164 = vdwg.mxu0
  %3165 = vmatpush.bf16.msra.mxu0 %v2990
  %3166 = vmatpush.bf16.msra.mxu0 %v2986
  %3167 = vmatpush.bf16.msra.mxu0 %v2982
  %3168 = vmatpush.bf16.msra.mxu0 %v2978
  %3169 = vmatpush.bf16.msra.mxu0 %v2974
  %3170 = vmatpush.bf16.msra.mxu0 %v2970
  %3171 = vmatpush.bf16.msra.mxu0 %v2966
  %3172 = vmatpush.bf16.msra.mxu0 %v2962
  %3173 = vmatmul.bf16.gmra.mxu0 %v2691
  %v3174 = vpop.f32.mrf.mxu0
  %v3175 = vadd.f32 %v2762, %v3174
  %v3176 = vpop.f32.mrf.mxu0
  %3177 = vdwg.mxu0
  %3178 = vmatpush.bf16.msra.mxu0 %v3022
  %3179 = vmatpush.bf16.msra.mxu0 %v3018
  %3180 = vmatpush.bf16.msra.mxu0 %v3014
  %3181 = vmatpush.bf16.msra.mxu0 %v3010
  %3182 = vmatpush.bf16.msra.mxu0 %v3006
  %3183 = vmatpush.bf16.msra.mxu0 %v3002
  %3184 = vmatpush.bf16.msra.mxu0 %v2998
  %3185 = vmatpush.bf16.msra.mxu0 %v2994
  %3186 = vmatmul.bf16.gmra.mxu0 %v2692
  %v3187 = vpop.f32.mrf.mxu0
  %v3188 = vadd.f32 %v3175, %v3187
  %v3189 = vpop.f32.mrf.mxu0
  %3190 = vdwg.mxu0
  %v3191 = vmax.f32 %v3110, 0.0
  %v3192 = vmax.f32 %v3136, 0.0
  %v3193 = vmax.f32 %v3162, 0.0
  %v3194 = vmax.f32 %v3188, 0.0
  %v3195 = vpack.c.bf16 %v3191, %v3191
  %3196 = vst [vmem:[#allocation6] sm:$0xf] %v3195
  %v3197 = vpack.c.bf16 %v3192, %v3192
  %3198 = vst [vmem:[#allocation6 + $0x4] sm:$0xf] %v3197
  %v3199 = vpack.c.bf16 %v3193, %v3193
  %3200 = vst [vmem:[#allocation6 + $0x8] sm:$0xf] %v3199
  %v3201 = vpack.c.bf16 %v3194, %v3194
  %3202 = vst [vmem:[#allocation6 + $0xc] sm:$0xf] %v3201
  %v3203 = vld [vmem:[#allocation6] sm:$0xf]
  %v3204 = vld [vmem:[#allocation6 + $0x4] sm:$0xf]
  %v3205 = vld [vmem:[#allocation6 + $0x8] sm:$0xf]
  %v3206 = vld [vmem:[#allocation6 + $0xc] sm:$0xf]
  %v3207 = vld [vmem:[%s13] sm:$0xff]
  %v3208 = vld [vmem:[%s13 + $0x8] sm:$0xff]
  %v3209 = vld [vmem:[%s13 + $0x10] sm:$0xff]
  %v3210 = vld [vmem:[%s13 + $0x18] sm:$0xff]
  %v3211 = vld [vmem:[%s13 + $0x20] sm:$0xff]
  %v3212 = vld [vmem:[%s13 + $0x28] sm:$0xff]
  %v3213 = vld [vmem:[%s13 + $0x30] sm:$0xff]
  %v3214 = vld [vmem:[%s13 + $0x38] sm:$0xff]
  %v3215 = vld [vmem:[%s13 + $0x40] sm:$0xff]
  %v3216 = vld [vmem:[%s13 + $0x48] sm:$0xff]
  %v3217 = vld [vmem:[%s13 + $0x50] sm:$0xff]
  %v3218 = vld [vmem:[%s13 + $0x58] sm:$0xff]
  %v3219 = vld [vmem:[%s13 + $0x60] sm:$0xff]
  %v3220 = vld [vmem:[%s13 + $0x68] sm:$0xff]
  %v3221 = vld [vmem:[%s13 + $0x70] sm:$0xff]
  %v3222 = vld [vmem:[%s13 + $0x78] sm:$0xff]
  %v3223 = vld [vmem:[%s14] sm:$0x3]
  %v3225 = vperm.slane %v3223, 0
  %v3226 = vperm.slane %v3223, 1
  %v3233 = vunpack.c.l.b16 %v3203
  %v3234 = vunpack.c.l.b16 %v3204
  %v3235 = vunpack.c.l.b16 %v3205
  %v3236 = vunpack.c.l.b16 %v3206
  %v3237 = vpack.c.b16 %v3234, %v3233
  %v3238 = vpack.c.b16 %v3236, %v3235
  %v3257 = vunpack.c.l.b16 %v3207
  %v3258 = vunpack.c.h.b16 %v3207
  %v3259 = vunpack.c.l.b16 %v3208
  %v3260 = vunpack.c.h.b16 %v3208
  %v3261 = vunpack.c.l.b16 %v3209
  %v3262 = vunpack.c.h.b16 %v3209
  %v3263 = vunpack.c.l.b16 %v3210
  %v3264 = vunpack.c.h.b16 %v3210
  %v3265 = vunpack.c.l.b16 %v3211
  %v3266 = vunpack.c.h.b16 %v3211
  %v3267 = vunpack.c.l.b16 %v3212
  %v3268 = vunpack.c.h.b16 %v3212
  %v3269 = vunpack.c.l.b16 %v3213
  %v3270 = vunpack.c.h.b16 %v3213
  %v3271 = vunpack.c.l.b16 %v3214
  %v3272 = vunpack.c.h.b16 %v3214
  %v3273 = vunpack.c.l.b16 %v3215
  %v3274 = vunpack.c.h.b16 %v3215
  %v3275 = vunpack.c.l.b16 %v3216
  %v3276 = vunpack.c.h.b16 %v3216
  %v3277 = vunpack.c.l.b16 %v3217
  %v3278 = vunpack.c.h.b16 %v3217
  %v3279 = vunpack.c.l.b16 %v3218
  %v3280 = vunpack.c.h.b16 %v3218
  %v3281 = vunpack.c.l.b16 %v3219
  %v3282 = vunpack.c.h.b16 %v3219
  %v3283 = vunpack.c.l.b16 %v3220
  %v3284 = vunpack.c.h.b16 %v3220
  %v3285 = vunpack.c.l.b16 %v3221
  %v3286 = vunpack.c.h.b16 %v3221
  %v3287 = vunpack.c.l.b16 %v3222
  %v3288 = vunpack.c.h.b16 %v3222
  %v3289 = vpack.c.b16 %v3259, %v3257
  %v3290 = vpack.c.b16 %v3260, %v3258
  %v3291 = vpack.c.b16 %v3263, %v3261
  %v3292 = vpack.c.b16 %v3264, %v3262
  %v3293 = vpack.c.b16 %v3267, %v3265
  %v3294 = vpack.c.b16 %v3268, %v3266
  %v3295 = vpack.c.b16 %v3271, %v3269
  %v3296 = vpack.c.b16 %v3272, %v3270
  %v3297 = vpack.c.b16 %v3275, %v3273
  %v3298 = vpack.c.b16 %v3276, %v3274
  %v3299 = vpack.c.b16 %v3279, %v3277
  %v3300 = vpack.c.b16 %v3280, %v3278
  %v3301 = vpack.c.b16 %v3283, %v3281
  %v3302 = vpack.c.b16 %v3284, %v3282
  %v3303 = vpack.c.b16 %v3287, %v3285
  %v3304 = vpack.c.b16 %v3288, %v3286
  %3321 = vmatpush.bf16.msra.mxu0 %v3303
  %3322 = vmatpush.bf16.msra.mxu0 %v3301
  %3323 = vmatpush.bf16.msra.mxu0 %v3299
  %3324 = vmatpush.bf16.msra.mxu0 %v3297
  %3325 = vmatpush.bf16.msra.mxu0 %v3295
  %3326 = vmatpush.bf16.msra.mxu0 %v3293
  %3327 = vmatpush.bf16.msra.mxu0 %v3291
  %3328 = vmatpush.bf16.msra.mxu0 %v3289
  %3329 = vmatmul.bf16.gmra.mxu0 %v3237
  %v3330 = vpop.f32.mrf.mxu0
  %v3331 = vadd.f32 %v3225, %v3330
  %v3332 = vpop.f32.mrf.mxu0
  %v3333 = vadd.f32 %v3225, %v3332
  %3334 = vmatmul.bf16.gmra.mxu0 %v3238
  %v3335 = vpop.f32.mrf.mxu0
  %v3336 = vadd.f32 %v3225, %v3335
  %v3337 = vpop.f32.mrf.mxu0
  %v3338 = vadd.f32 %v3225, %v3337
  %3339 = vdwg.mxu0
  %3340 = vmatpush.bf16.msra.mxu0 %v3304
  %3341 = vmatpush.bf16.msra.mxu0 %v3302
  %3342 = vmatpush.bf16.msra.mxu0 %v3300
  %3343 = vmatpush.bf16.msra.mxu0 %v3298
  %3344 = vmatpush.bf16.msra.mxu0 %v3296
  %3345 = vmatpush.bf16.msra.mxu0 %v3294
  %3346 = vmatpush.bf16.msra.mxu0 %v3292
  %3347 = vmatpush.bf16.msra.mxu0 %v3290
  %3348 = vmatmul.bf16.gmra.mxu0 %v3237
  %v3349 = vpop.f32.mrf.mxu0
  %v3350 = vadd.f32 %v3226, %v3349
  %v3351 = vpop.f32.mrf.mxu0
  %v3352 = vadd.f32 %v3226, %v3351
  %3353 = vmatmul.bf16.gmra.mxu0 %v3238
  %v3354 = vpop.f32.mrf.mxu0
  %v3355 = vadd.f32 %v3226, %v3354
  %v3356 = vpop.f32.mrf.mxu0
  %v3357 = vadd.f32 %v3226, %v3356
  %3358 = vdwg.mxu0
  %v3359 = vmax.f32 %v3331, 0.0
  %v3360 = vmax.f32 %v3350, 0.0
  %v3361 = vmax.f32 %v3333, 0.0
  %v3362 = vmax.f32 %v3352, 0.0
  %v3363 = vmax.f32 %v3336, 0.0
  %v3364 = vmax.f32 %v3355, 0.0
  %v3365 = vmax.f32 %v3338, 0.0
  %v3366 = vmax.f32 %v3357, 0.0
  %v3367 = vpack.c.bf16 %v3359, %v3359
  %v3368 = vpack.c.bf16 %v3361, %v3361
  %v3369 = vpack.c.bf16 %v3363, %v3363
  %v3370 = vpack.c.bf16 %v3365, %v3365
  %3371 = vst.msk [vmem:[#allocation7] sm:$0xf] %vm1911, %v3367
  %3372 = vst.msk [vmem:[#allocation7 + $0x4] sm:$0xf] %vm1911, %v3368
  %3373 = vst.msk [vmem:[#allocation7 + $0x8] sm:$0xf] %vm1911, %v3369
  %3374 = vst.msk [vmem:[#allocation7 + $0xc] sm:$0xf] %vm1911, %v3370
  %3379 = vrot.lane.b32.xlu0 %v3367, 64
  %v3380 = vpop.permute.xlu0 %3379
  %3381 = vrot.lane.b32.xlu0 %v3368, 64
  %v3382 = vpop.permute.xlu0 %3381
  %3383 = vrot.lane.b32.xlu0 %v3369, 64
  %v3384 = vpop.permute.xlu0 %3383
  %3385 = vrot.lane.b32.xlu0 %v3370, 64
  %v3386 = vpop.permute.xlu0 %3385
  %3391 = vst.msk [vmem:[#allocation7 + $0x10] sm:$0xf] %vm1911, %v3380
  %3392 = vst.msk [vmem:[#allocation7 + $0x14] sm:$0xf] %vm1911, %v3382
  %3393 = vst.msk [vmem:[#allocation7 + $0x18] sm:$0xf] %vm1911, %v3384
  %3394 = vst.msk [vmem:[#allocation7 + $0x1c] sm:$0xf] %vm1911, %v3386
  %v3395 = vpack.c.bf16 %v3360, %v3360
  %v3396 = vpack.c.bf16 %v3362, %v3362
  %v3397 = vpack.c.bf16 %v3364, %v3364
  %v3398 = vpack.c.bf16 %v3366, %v3366
  %3399 = vst.msk [vmem:[#allocation7 + $0x20] sm:$0xf] %vm1911, %v3395
  %3400 = vst.msk [vmem:[#allocation7 + $0x24] sm:$0xf] %vm1911, %v3396
  %3401 = vst.msk [vmem:[#allocation7 + $0x28] sm:$0xf] %vm1911, %v3397
  %3402 = vst.msk [vmem:[#allocation7 + $0x2c] sm:$0xf] %vm1911, %v3398
  %3407 = vrot.lane.b32.xlu0 %v3395, 64
  %v3408 = vpop.permute.xlu0 %3407
  %3409 = vrot.lane.b32.xlu0 %v3396, 64
  %v3410 = vpop.permute.xlu0 %3409
  %3411 = vrot.lane.b32.xlu0 %v3397, 64
  %v3412 = vpop.permute.xlu0 %3411
  %3413 = vrot.lane.b32.xlu0 %v3398, 64
  %v3414 = vpop.permute.xlu0 %3413
  %3419 = vst.msk [vmem:[#allocation7 + $0x30] sm:$0xf] %vm1911, %v3408
  %3420 = vst.msk [vmem:[#allocation7 + $0x34] sm:$0xf] %vm1911, %v3410
  %3421 = vst.msk [vmem:[#allocation7 + $0x38] sm:$0xf] %vm1911, %v3412
  %3422 = vst.msk [vmem:[#allocation7 + $0x3c] sm:$0xf] %vm1911, %v3414
  %v3423 = vld [vmem:[#allocation7] sm:$0xf]
  %v3424 = vld [vmem:[#allocation7 + $0x4] sm:$0xf]
  %v3425 = vld [vmem:[#allocation7 + $0x8] sm:$0xf]
  %v3426 = vld [vmem:[#allocation7 + $0xc] sm:$0xf]
  %v3427 = vld [vmem:[#allocation7 + $0x10] sm:$0xf]
  %v3428 = vld [vmem:[#allocation7 + $0x14] sm:$0xf]
  %v3429 = vld [vmem:[#allocation7 + $0x18] sm:$0xf]
  %v3430 = vld [vmem:[#allocation7 + $0x1c] sm:$0xf]
  %v3431 = vld [vmem:[#allocation7 + $0x20] sm:$0xf]
  %v3432 = vld [vmem:[#allocation7 + $0x24] sm:$0xf]
  %v3433 = vld [vmem:[#allocation7 + $0x28] sm:$0xf]
  %v3434 = vld [vmem:[#allocation7 + $0x2c] sm:$0xf]
  %v3435 = vld [vmem:[#allocation7 + $0x30] sm:$0xf]
  %v3436 = vld [vmem:[#allocation7 + $0x34] sm:$0xf]
  %v3437 = vld [vmem:[#allocation7 + $0x38] sm:$0xf]
  %v3438 = vld [vmem:[#allocation7 + $0x3c] sm:$0xf]
  %v3439 = vld [vmem:[%s15] sm:$0xf]
  %v3440 = vld [vmem:[%s15 + $0x4] sm:$0xf]
  %v3441 = vld [vmem:[%s15 + $0x8] sm:$0xf]
  %v3442 = vld [vmem:[%s15 + $0xc] sm:$0xf]
  %v3443 = vld [vmem:[%s15 + $0x10] sm:$0xf]
  %v3444 = vld [vmem:[%s15 + $0x14] sm:$0xf]
  %v3445 = vld [vmem:[%s15 + $0x18] sm:$0xf]
  %v3446 = vld [vmem:[%s15 + $0x1c] sm:$0xf]
  %v3447 = vld [vmem:[%s16] sm:$0x1]
  %v3449 = vperm.slane %v3447, 0
  %v3467 = vunpack.c.l.b16 %v3423
  %v3468 = vunpack.c.l.b16 %v3424
  %v3469 = vunpack.c.l.b16 %v3425
  %v3470 = vunpack.c.l.b16 %v3426
  %v3471 = vunpack.c.l.b16 %v3427
  %v3472 = vunpack.c.l.b16 %v3428
  %v3473 = vunpack.c.l.b16 %v3429
  %v3474 = vunpack.c.l.b16 %v3430
  %v3475 = vunpack.c.l.b16 %v3431
  %v3476 = vunpack.c.l.b16 %v3432
  %v3477 = vunpack.c.l.b16 %v3433
  %v3478 = vunpack.c.l.b16 %v3434
  %v3479 = vunpack.c.l.b16 %v3435
  %v3480 = vunpack.c.l.b16 %v3436
  %v3481 = vunpack.c.l.b16 %v3437
  %v3482 = vunpack.c.l.b16 %v3438
  %v3483 = vpack.c.b16 %v3468, %v3467
  %v3484 = vpack.c.b16 %v3470, %v3469
  %v3485 = vpack.c.b16 %v3472, %v3471
  %v3486 = vpack.c.b16 %v3474, %v3473
  %v3487 = vpack.c.b16 %v3476, %v3475
  %v3488 = vpack.c.b16 %v3478, %v3477
  %v3489 = vpack.c.b16 %v3480, %v3479
  %v3490 = vpack.c.b16 %v3482, %v3481
  %v3499 = vunpack.c.l.b16 %v3439
  %v3500 = vunpack.c.l.b16 %v3440
  %v3501 = vunpack.c.l.b16 %v3441
  %v3502 = vunpack.c.l.b16 %v3442
  %v3503 = vunpack.c.l.b16 %v3443
  %v3504 = vunpack.c.l.b16 %v3444
  %v3505 = vunpack.c.l.b16 %v3445
  %v3506 = vunpack.c.l.b16 %v3446
  %v3507 = vpack.c.b16 %v3500, %v3499
  %v3508 = vpack.c.b16 %v3502, %v3501
  %v3509 = vpack.c.b16 %v3504, %v3503
  %v3510 = vpack.c.b16 %v3506, %v3505
  %v3516 = vsel %vm1056, %v3483, 0
  %v3519 = vsel %vm1056, %v3484, 0
  %v3522 = vsel %vm1056, %v3485, 0
  %v3525 = vsel %vm1056, %v3486, 0
  %v3528 = vsel %vm1056, %v3487, 0
  %v3531 = vsel %vm1056, %v3488, 0
  %v3534 = vsel %vm1056, %v3489, 0
  %v3537 = vsel %vm1056, %v3490, 0
  %3539 = vmatpush.bf16.msra.mxu0 0
  %3540 = vmatpush.bf16.msra.mxu0 0
  %3541 = vmatpush.bf16.msra.mxu0 0
  %3542 = vmatpush.bf16.msra.mxu0 0
  %3543 = vmatpush.bf16.msra.mxu0 %v3510
  %3544 = vmatpush.bf16.msra.mxu0 %v3509
  %3545 = vmatpush.bf16.msra.mxu0 %v3508
  %3546 = vmatpush.bf16.msra.mxu0 %v3507
  %3547 = vmatmul.bf16.gmra.mxu0 %v3516
  %v3548 = vpop.f32.mrf.mxu0
  %v3549 = vadd.f32 %v3449, %v3548
  %v3550 = vpop.f32.mrf.mxu0
  %v3551 = vadd.f32 %v3449, %v3550
  %3552 = vmatmul.bf16.gmra.mxu0 %v3519
  %v3553 = vpop.f32.mrf.mxu0
  %v3554 = vadd.f32 %v3449, %v3553
  %v3555 = vpop.f32.mrf.mxu0
  %v3556 = vadd.f32 %v3449, %v3555
  %3557 = vmatmul.bf16.gmra.mxu0 %v3522
  %v3558 = vpop.f32.mrf.mxu0
  %v3559 = vadd.f32 %v3449, %v3558
  %v3560 = vpop.f32.mrf.mxu0
  %v3561 = vadd.f32 %v3449, %v3560
  %3562 = vmatmul.bf16.gmra.mxu0 %v3525
  %v3563 = vpop.f32.mrf.mxu0
  %v3564 = vadd.f32 %v3449, %v3563
  %v3565 = vpop.f32.mrf.mxu0
  %v3566 = vadd.f32 %v3449, %v3565
  %3567 = vmatmul.bf16.gmra.mxu0 %v3528
  %v3568 = vpop.f32.mrf.mxu0
  %v3569 = vadd.f32 %v3449, %v3568
  %v3570 = vpop.f32.mrf.mxu0
  %v3571 = vadd.f32 %v3449, %v3570
  %3572 = vmatmul.bf16.gmra.mxu0 %v3531
  %v3573 = vpop.f32.mrf.mxu0
  %v3574 = vadd.f32 %v3449, %v3573
  %v3575 = vpop.f32.mrf.mxu0
  %v3576 = vadd.f32 %v3449, %v3575
  %3577 = vmatmul.bf16.gmra.mxu0 %v3534
  %v3578 = vpop.f32.mrf.mxu0
  %v3579 = vadd.f32 %v3449, %v3578
  %v3580 = vpop.f32.mrf.mxu0
  %v3581 = vadd.f32 %v3449, %v3580
  %3582 = vmatmul.bf16.gmra.mxu0 %v3537
  %v3583 = vpop.f32.mrf.mxu0
  %v3584 = vadd.f32 %v3449, %v3583
  %v3585 = vpop.f32.mrf.mxu0
  %v3586 = vadd.f32 %v3449, %v3585
  %3587 = vdwg.mxu0
  %v3588 = vmax.f32 %v3549, 0.0
  %v3589 = vmax.f32 %v3551, 0.0
  %v3590 = vmax.f32 %v3554, 0.0
  %v3591 = vmax.f32 %v3556, 0.0
  %v3592 = vmax.f32 %v3559, 0.0
  %v3593 = vmax.f32 %v3561, 0.0
  %v3594 = vmax.f32 %v3564, 0.0
  %v3595 = vmax.f32 %v3566, 0.0
  %v3596 = vmax.f32 %v3569, 0.0
  %v3597 = vmax.f32 %v3571, 0.0
  %v3598 = vmax.f32 %v3574, 0.0
  %v3599 = vmax.f32 %v3576, 0.0
  %v3600 = vmax.f32 %v3579, 0.0
  %v3601 = vmax.f32 %v3581, 0.0
  %v3602 = vmax.f32 %v3584, 0.0
  %v3603 = vmax.f32 %v3586, 0.0
  %v3604 = vpack.c.bf16 %v3588, %v3588
  %v3605 = vpack.c.bf16 %v3589, %v3589
  %v3606 = vpack.c.bf16 %v3590, %v3590
  %v3607 = vpack.c.bf16 %v3591, %v3591
  %v3608 = vpack.c.bf16 %v3592, %v3592
  %v3609 = vpack.c.bf16 %v3593, %v3593
  %v3610 = vpack.c.bf16 %v3594, %v3594
  %v3611 = vpack.c.bf16 %v3595, %v3595
  %v3612 = vpack.c.bf16 %v3596, %v3596
  %v3613 = vpack.c.bf16 %v3597, %v3597
  %v3614 = vpack.c.bf16 %v3598, %v3598
  %v3615 = vpack.c.bf16 %v3599, %v3599
  %v3616 = vpack.c.bf16 %v3600, %v3600
  %v3617 = vpack.c.bf16 %v3601, %v3601
  %v3618 = vpack.c.bf16 %v3602, %v3602
  %v3619 = vpack.c.bf16 %v3603, %v3603
  %3620 = vst.msk [vmem:[#allocation8] sm:$0xf] %vm1402, %v3604
  %3621 = vst.msk [vmem:[#allocation8 + $0x4] sm:$0xf] %vm1402, %v3605
  %3622 = vst.msk [vmem:[#allocation8 + $0x8] sm:$0xf] %vm1402, %v3606
  %3623 = vst.msk [vmem:[#allocation8 + $0xc] sm:$0xf] %vm1402, %v3607
  %3624 = vst.msk [vmem:[#allocation8 + $0x10] sm:$0xf] %vm1402, %v3608
  %3625 = vst.msk [vmem:[#allocation8 + $0x14] sm:$0xf] %vm1402, %v3609
  %3626 = vst.msk [vmem:[#allocation8 + $0x18] sm:$0xf] %vm1402, %v3610
  %3627 = vst.msk [vmem:[#allocation8 + $0x1c] sm:$0xf] %vm1402, %v3611
  %3628 = vst.msk [vmem:[#allocation8 + $0x20] sm:$0xf] %vm1402, %v3612
  %3629 = vst.msk [vmem:[#allocation8 + $0x24] sm:$0xf] %vm1402, %v3613
  %3630 = vst.msk [vmem:[#allocation8 + $0x28] sm:$0xf] %vm1402, %v3614
  %3631 = vst.msk [vmem:[#allocation8 + $0x2c] sm:$0xf] %vm1402, %v3615
  %3632 = vst.msk [vmem:[#allocation8 + $0x30] sm:$0xf] %vm1402, %v3616
  %3633 = vst.msk [vmem:[#allocation8 + $0x34] sm:$0xf] %vm1402, %v3617
  %3634 = vst.msk [vmem:[#allocation8 + $0x38] sm:$0xf] %vm1402, %v3618
  %3635 = vst.msk [vmem:[#allocation8 + $0x3c] sm:$0xf] %vm1402, %v3619
  %3652 = vrot.lane.b32.xlu0 %v3604, 96
  %v3653 = vpop.permute.xlu0 %3652
  %3654 = vrot.lane.b32.xlu0 %v3605, 96
  %v3655 = vpop.permute.xlu0 %3654
  %3656 = vrot.lane.b32.xlu0 %v3606, 96
  %v3657 = vpop.permute.xlu0 %3656
  %3658 = vrot.lane.b32.xlu0 %v3607, 96
  %v3659 = vpop.permute.xlu0 %3658
  %3660 = vrot.lane.b32.xlu0 %v3608, 96
  %v3661 = vpop.permute.xlu0 %3660
  %3662 = vrot.lane.b32.xlu0 %v3609, 96
  %v3663 = vpop.permute.xlu0 %3662
  %3664 = vrot.lane.b32.xlu0 %v3610, 96
  %v3665 = vpop.permute.xlu0 %3664
  %3666 = vrot.lane.b32.xlu0 %v3611, 96
  %v3667 = vpop.permute.xlu0 %3666
  %3668 = vrot.lane.b32.xlu0 %v3612, 96
  %v3669 = vpop.permute.xlu0 %3668
  %3670 = vrot.lane.b32.xlu0 %v3613, 96
  %v3671 = vpop.permute.xlu0 %3670
  %3672 = vrot.lane.b32.xlu0 %v3614, 96
  %v3673 = vpop.permute.xlu0 %3672
  %3674 = vrot.lane.b32.xlu0 %v3615, 96
  %v3675 = vpop.permute.xlu0 %3674
  %3676 = vrot.lane.b32.xlu0 %v3616, 96
  %v3677 = vpop.permute.xlu0 %3676
  %3678 = vrot.lane.b32.xlu0 %v3617, 96
  %v3679 = vpop.permute.xlu0 %3678
  %3680 = vrot.lane.b32.xlu0 %v3618, 96
  %v3681 = vpop.permute.xlu0 %3680
  %3682 = vrot.lane.b32.xlu0 %v3619, 96
  %v3683 = vpop.permute.xlu0 %3682
  %3700 = vst.msk [vmem:[#allocation8 + $0x40] sm:$0xf] %vm1402, %v3653
  %3701 = vst.msk [vmem:[#allocation8 + $0x44] sm:$0xf] %vm1402, %v3655
  %3702 = vst.msk [vmem:[#allocation8 + $0x48] sm:$0xf] %vm1402, %v3657
  %3703 = vst.msk [vmem:[#allocation8 + $0x4c] sm:$0xf] %vm1402, %v3659
  %3704 = vst.msk [vmem:[#allocation8 + $0x50] sm:$0xf] %vm1402, %v3661
  %3705 = vst.msk [vmem:[#allocation8 + $0x54] sm:$0xf] %vm1402, %v3663
  %3706 = vst.msk [vmem:[#allocation8 + $0x58] sm:$0xf] %vm1402, %v3665
  %3707 = vst.msk [vmem:[#allocation8 + $0x5c] sm:$0xf] %vm1402, %v3667
  %3708 = vst.msk [vmem:[#allocation8 + $0x60] sm:$0xf] %vm1402, %v3669
  %3709 = vst.msk [vmem:[#allocation8 + $0x64] sm:$0xf] %vm1402, %v3671
  %3710 = vst.msk [vmem:[#allocation8 + $0x68] sm:$0xf] %vm1402, %v3673
  %3711 = vst.msk [vmem:[#allocation8 + $0x6c] sm:$0xf] %vm1402, %v3675
  %3712 = vst.msk [vmem:[#allocation8 + $0x70] sm:$0xf] %vm1402, %v3677
  %3713 = vst.msk [vmem:[#allocation8 + $0x74] sm:$0xf] %vm1402, %v3679
  %3714 = vst.msk [vmem:[#allocation8 + $0x78] sm:$0xf] %vm1402, %v3681
  %3715 = vst.msk [vmem:[#allocation8 + $0x7c] sm:$0xf] %vm1402, %v3683
  %3716 = vrot.lane.b32.xlu0 %v3604, 64
  %v3717 = vpop.permute.xlu0 %3716
  %3718 = vrot.lane.b32.xlu0 %v3605, 64
  %v3719 = vpop.permute.xlu0 %3718
  %3720 = vrot.lane.b32.xlu0 %v3606, 64
  %v3721 = vpop.permute.xlu0 %3720
  %3722 = vrot.lane.b32.xlu0 %v3607, 64
  %v3723 = vpop.permute.xlu0 %3722
  %3724 = vrot.lane.b32.xlu0 %v3608, 64
  %v3725 = vpop.permute.xlu0 %3724
  %3726 = vrot.lane.b32.xlu0 %v3609, 64
  %v3727 = vpop.permute.xlu0 %3726
  %3728 = vrot.lane.b32.xlu0 %v3610, 64
  %v3729 = vpop.permute.xlu0 %3728
  %3730 = vrot.lane.b32.xlu0 %v3611, 64
  %v3731 = vpop.permute.xlu0 %3730
  %3732 = vrot.lane.b32.xlu0 %v3612, 64
  %v3733 = vpop.permute.xlu0 %3732
  %3734 = vrot.lane.b32.xlu0 %v3613, 64
  %v3735 = vpop.permute.xlu0 %3734
  %3736 = vrot.lane.b32.xlu0 %v3614, 64
  %v3737 = vpop.permute.xlu0 %3736
  %3738 = vrot.lane.b32.xlu0 %v3615, 64
  %v3739 = vpop.permute.xlu0 %3738
  %3740 = vrot.lane.b32.xlu0 %v3616, 64
  %v3741 = vpop.permute.xlu0 %3740
  %3742 = vrot.lane.b32.xlu0 %v3617, 64
  %v3743 = vpop.permute.xlu0 %3742
  %3744 = vrot.lane.b32.xlu0 %v3618, 64
  %v3745 = vpop.permute.xlu0 %3744
  %3746 = vrot.lane.b32.xlu0 %v3619, 64
  %v3747 = vpop.permute.xlu0 %3746
  %3764 = vst.msk [vmem:[#allocation8 + $0x80] sm:$0xf] %vm1402, %v3717
  %3765 = vst.msk [vmem:[#allocation8 + $0x84] sm:$0xf] %vm1402, %v3719
  %3766 = vst.msk [vmem:[#allocation8 + $0x88] sm:$0xf] %vm1402, %v3721
  %3767 = vst.msk [vmem:[#allocation8 + $0x8c] sm:$0xf] %vm1402, %v3723
  %3768 = vst.msk [vmem:[#allocation8 + $0x90] sm:$0xf] %vm1402, %v3725
  %3769 = vst.msk [vmem:[#allocation8 + $0x94] sm:$0xf] %vm1402, %v3727
  %3770 = vst.msk [vmem:[#allocation8 + $0x98] sm:$0xf] %vm1402, %v3729
  %3771 = vst.msk [vmem:[#allocation8 + $0x9c] sm:$0xf] %vm1402, %v3731
  %3772 = vst.msk [vmem:[#allocation8 + $0xa0] sm:$0xf] %vm1402, %v3733
  %3773 = vst.msk [vmem:[#allocation8 + $0xa4] sm:$0xf] %vm1402, %v3735
  %3774 = vst.msk [vmem:[#allocation8 + $0xa8] sm:$0xf] %vm1402, %v3737
  %3775 = vst.msk [vmem:[#allocation8 + $0xac] sm:$0xf] %vm1402, %v3739
  %3776 = vst.msk [vmem:[#allocation8 + $0xb0] sm:$0xf] %vm1402, %v3741
  %3777 = vst.msk [vmem:[#allocation8 + $0xb4] sm:$0xf] %vm1402, %v3743
  %3778 = vst.msk [vmem:[#allocation8 + $0xb8] sm:$0xf] %vm1402, %v3745
  %3779 = vst.msk [vmem:[#allocation8 + $0xbc] sm:$0xf] %vm1402, %v3747
  %3780 = vrot.lane.b32.xlu0 %v3604, 32
  %v3781 = vpop.permute.xlu0 %3780
  %3782 = vrot.lane.b32.xlu0 %v3605, 32
  %v3783 = vpop.permute.xlu0 %3782
  %3784 = vrot.lane.b32.xlu0 %v3606, 32
  %v3785 = vpop.permute.xlu0 %3784
  %3786 = vrot.lane.b32.xlu0 %v3607, 32
  %v3787 = vpop.permute.xlu0 %3786
  %3788 = vrot.lane.b32.xlu0 %v3608, 32
  %v3789 = vpop.permute.xlu0 %3788
  %3790 = vrot.lane.b32.xlu0 %v3609, 32
  %v3791 = vpop.permute.xlu0 %3790
  %3792 = vrot.lane.b32.xlu0 %v3610, 32
  %v3793 = vpop.permute.xlu0 %3792
  %3794 = vrot.lane.b32.xlu0 %v3611, 32
  %v3795 = vpop.permute.xlu0 %3794
  %3796 = vrot.lane.b32.xlu0 %v3612, 32
  %v3797 = vpop.permute.xlu0 %3796
  %3798 = vrot.lane.b32.xlu0 %v3613, 32
  %v3799 = vpop.permute.xlu0 %3798
  %3800 = vrot.lane.b32.xlu0 %v3614, 32
  %v3801 = vpop.permute.xlu0 %3800
  %3802 = vrot.lane.b32.xlu0 %v3615, 32
  %v3803 = vpop.permute.xlu0 %3802
  %3804 = vrot.lane.b32.xlu0 %v3616, 32
  %v3805 = vpop.permute.xlu0 %3804
  %3806 = vrot.lane.b32.xlu0 %v3617, 32
  %v3807 = vpop.permute.xlu0 %3806
  %3808 = vrot.lane.b32.xlu0 %v3618, 32
  %v3809 = vpop.permute.xlu0 %3808
  %3810 = vrot.lane.b32.xlu0 %v3619, 32
  %v3811 = vpop.permute.xlu0 %3810
  %3828 = vst.msk [vmem:[#allocation8 + $0xc0] sm:$0xf] %vm1402, %v3781
  %3829 = vst.msk [vmem:[#allocation8 + $0xc4] sm:$0xf] %vm1402, %v3783
  %3830 = vst.msk [vmem:[#allocation8 + $0xc8] sm:$0xf] %vm1402, %v3785
  %3831 = vst.msk [vmem:[#allocation8 + $0xcc] sm:$0xf] %vm1402, %v3787
  %3832 = vst.msk [vmem:[#allocation8 + $0xd0] sm:$0xf] %vm1402, %v3789
  %3833 = vst.msk [vmem:[#allocation8 + $0xd4] sm:$0xf] %vm1402, %v3791
  %3834 = vst.msk [vmem:[#allocation8 + $0xd8] sm:$0xf] %vm1402, %v3793
  %3835 = vst.msk [vmem:[#allocation8 + $0xdc] sm:$0xf] %vm1402, %v3795
  %3836 = vst.msk [vmem:[#allocation8 + $0xe0] sm:$0xf] %vm1402, %v3797
  %3837 = vst.msk [vmem:[#allocation8 + $0xe4] sm:$0xf] %vm1402, %v3799
  %3838 = vst.msk [vmem:[#allocation8 + $0xe8] sm:$0xf] %vm1402, %v3801
  %3839 = vst.msk [vmem:[#allocation8 + $0xec] sm:$0xf] %vm1402, %v3803
  %3840 = vst.msk [vmem:[#allocation8 + $0xf0] sm:$0xf] %vm1402, %v3805
  %3841 = vst.msk [vmem:[#allocation8 + $0xf4] sm:$0xf] %vm1402, %v3807
  %3842 = vst.msk [vmem:[#allocation8 + $0xf8] sm:$0xf] %vm1402, %v3809
  %3843 = vst.msk [vmem:[#allocation8 + $0xfc] sm:$0xf] %vm1402, %v3811
  %v3844 = vld [vmem:[#allocation8] sm:$0xf]
  %v3845 = vld [vmem:[#allocation8 + $0x4] sm:$0xf]
  %v3846 = vld [vmem:[#allocation8 + $0x8] sm:$0xf]
  %v3847 = vld [vmem:[#allocation8 + $0xc] sm:$0xf]
  %v3848 = vld [vmem:[#allocation8 + $0x10] sm:$0xf]
  %v3849 = vld [vmem:[#allocation8 + $0x14] sm:$0xf]
  %v3850 = vld [vmem:[#allocation8 + $0x18] sm:$0xf]
  %v3851 = vld [vmem:[#allocation8 + $0x1c] sm:$0xf]
  %v3852 = vld [vmem:[#allocation8 + $0x20] sm:$0xf]
  %v3853 = vld [vmem:[#allocation8 + $0x24] sm:$0xf]
  %v3854 = vld [vmem:[#allocation8 + $0x28] sm:$0xf]
  %v3855 = vld [vmem:[#allocation8 + $0x2c] sm:$0xf]
  %v3856 = vld [vmem:[#allocation8 + $0x30] sm:$0xf]
  %v3857 = vld [vmem:[#allocation8 + $0x34] sm:$0xf]
  %v3858 = vld [vmem:[#allocation8 + $0x38] sm:$0xf]
  %v3859 = vld [vmem:[#allocation8 + $0x3c] sm:$0xf]
  %v3860 = vld [vmem:[#allocation8 + $0x40] sm:$0xf]
  %v3861 = vld [vmem:[#allocation8 + $0x44] sm:$0xf]
  %v3862 = vld [vmem:[#allocation8 + $0x48] sm:$0xf]
  %v3863 = vld [vmem:[#allocation8 + $0x4c] sm:$0xf]
  %v3864 = vld [vmem:[#allocation8 + $0x50] sm:$0xf]
  %v3865 = vld [vmem:[#allocation8 + $0x54] sm:$0xf]
  %v3866 = vld [vmem:[#allocation8 + $0x58] sm:$0xf]
  %v3867 = vld [vmem:[#allocation8 + $0x5c] sm:$0xf]
  %v3868 = vld [vmem:[#allocation8 + $0x60] sm:$0xf]
  %v3869 = vld [vmem:[#allocation8 + $0x64] sm:$0xf]
  %v3870 = vld [vmem:[#allocation8 + $0x68] sm:$0xf]
  %v3871 = vld [vmem:[#allocation8 + $0x6c] sm:$0xf]
  %v3872 = vld [vmem:[#allocation8 + $0x70] sm:$0xf]
  %v3873 = vld [vmem:[#allocation8 + $0x74] sm:$0xf]
  %v3874 = vld [vmem:[#allocation8 + $0x78] sm:$0xf]
  %v3875 = vld [vmem:[#allocation8 + $0x7c] sm:$0xf]
  %v3876 = vld [vmem:[#allocation8 + $0x80] sm:$0xf]
  %v3877 = vld [vmem:[#allocation8 + $0x84] sm:$0xf]
  %v3878 = vld [vmem:[#allocation8 + $0x88] sm:$0xf]
  %v3879 = vld [vmem:[#allocation8 + $0x8c] sm:$0xf]
  %v3880 = vld [vmem:[#allocation8 + $0x90] sm:$0xf]
  %v3881 = vld [vmem:[#allocation8 + $0x94] sm:$0xf]
  %v3882 = vld [vmem:[#allocation8 + $0x98] sm:$0xf]
  %v3883 = vld [vmem:[#allocation8 + $0x9c] sm:$0xf]
  %v3884 = vld [vmem:[#allocation8 + $0xa0] sm:$0xf]
  %v3885 = vld [vmem:[#allocation8 + $0xa4] sm:$0xf]
  %v3886 = vld [vmem:[#allocation8 + $0xa8] sm:$0xf]
  %v3887 = vld [vmem:[#allocation8 + $0xac] sm:$0xf]
  %v3888 = vld [vmem:[#allocation8 + $0xb0] sm:$0xf]
  %v3889 = vld [vmem:[#allocation8 + $0xb4] sm:$0xf]
  %v3890 = vld [vmem:[#allocation8 + $0xb8] sm:$0xf]
  %v3891 = vld [vmem:[#allocation8 + $0xbc] sm:$0xf]
  %v3892 = vld [vmem:[#allocation8 + $0xc0] sm:$0xf]
  %v3893 = vld [vmem:[#allocation8 + $0xc4] sm:$0xf]
  %v3894 = vld [vmem:[#allocation8 + $0xc8] sm:$0xf]
  %v3895 = vld [vmem:[#allocation8 + $0xcc] sm:$0xf]
  %v3896 = vld [vmem:[#allocation8 + $0xd0] sm:$0xf]
  %v3897 = vld [vmem:[#allocation8 + $0xd4] sm:$0xf]
  %v3898 = vld [vmem:[#allocation8 + $0xd8] sm:$0xf]
  %v3899 = vld [vmem:[#allocation8 + $0xdc] sm:$0xf]
  %v3900 = vld [vmem:[#allocation8 + $0xe0] sm:$0xf]
  %v3901 = vld [vmem:[#allocation8 + $0xe4] sm:$0xf]
  %v3902 = vld [vmem:[#allocation8 + $0xe8] sm:$0xf]
  %v3903 = vld [vmem:[#allocation8 + $0xec] sm:$0xf]
  %v3904 = vld [vmem:[#allocation8 + $0xf0] sm:$0xf]
  %v3905 = vld [vmem:[#allocation8 + $0xf4] sm:$0xf]
  %v3906 = vld [vmem:[#allocation8 + $0xf8] sm:$0xf]
  %v3907 = vld [vmem:[#allocation8 + $0xfc] sm:$0xf]
  %v3908 = vld [vmem:[%s17] sm:$0xf]
  %v3909 = vld [vmem:[%s17 + $0x4] sm:$0xf]
  %v3910 = vld [vmem:[%s17 + $0x8] sm:$0xf]
  %v3911 = vld [vmem:[%s17 + $0xc] sm:$0xf]
  %v3912 = vld [vmem:[%s18] sm:$0x1]
  %v3914 = vperm.slane %v3912, 0
  %v3980 = vunpack.c.l.b16 %v3844
  %v3981 = vunpack.c.l.b16 %v3845
  %v3982 = vunpack.c.l.b16 %v3846
  %v3983 = vunpack.c.l.b16 %v3847
  %v3984 = vunpack.c.l.b16 %v3848
  %v3985 = vunpack.c.l.b16 %v3849
  %v3986 = vunpack.c.l.b16 %v3850
  %v3987 = vunpack.c.l.b16 %v3851
  %v3988 = vunpack.c.l.b16 %v3852
  %v3989 = vunpack.c.l.b16 %v3853
  %v3990 = vunpack.c.l.b16 %v3854
  %v3991 = vunpack.c.l.b16 %v3855
  %v3992 = vunpack.c.l.b16 %v3856
  %v3993 = vunpack.c.l.b16 %v3857
  %v3994 = vunpack.c.l.b16 %v3858
  %v3995 = vunpack.c.l.b16 %v3859
  %v3996 = vunpack.c.l.b16 %v3860
  %v3997 = vunpack.c.l.b16 %v3861
  %v3998 = vunpack.c.l.b16 %v3862
  %v3999 = vunpack.c.l.b16 %v3863
  %v4000 = vunpack.c.l.b16 %v3864
  %v4001 = vunpack.c.l.b16 %v3865
  %v4002 = vunpack.c.l.b16 %v3866
  %v4003 = vunpack.c.l.b16 %v3867
  %v4004 = vunpack.c.l.b16 %v3868
  %v4005 = vunpack.c.l.b16 %v3869
  %v4006 = vunpack.c.l.b16 %v3870
  %v4007 = vunpack.c.l.b16 %v3871
  %v4008 = vunpack.c.l.b16 %v3872
  %v4009 = vunpack.c.l.b16 %v3873
  %v4010 = vunpack.c.l.b16 %v3874
  %v4011 = vunpack.c.l.b16 %v3875
  %v4012 = vunpack.c.l.b16 %v3876
  %v4013 = vunpack.c.l.b16 %v3877
  %v4014 = vunpack.c.l.b16 %v3878
  %v4015 = vunpack.c.l.b16 %v3879
  %v4016 = vunpack.c.l.b16 %v3880
  %v4017 = vunpack.c.l.b16 %v3881
  %v4018 = vunpack.c.l.b16 %v3882
  %v4019 = vunpack.c.l.b16 %v3883
  %v4020 = vunpack.c.l.b16 %v3884
  %v4021 = vunpack.c.l.b16 %v3885
  %v4022 = vunpack.c.l.b16 %v3886
  %v4023 = vunpack.c.l.b16 %v3887
  %v4024 = vunpack.c.l.b16 %v3888
  %v4025 = vunpack.c.l.b16 %v3889
  %v4026 = vunpack.c.l.b16 %v3890
  %v4027 = vunpack.c.l.b16 %v3891
  %v4028 = vunpack.c.l.b16 %v3892
  %v4029 = vunpack.c.l.b16 %v3893
  %v4030 = vunpack.c.l.b16 %v3894
  %v4031 = vunpack.c.l.b16 %v3895
  %v4032 = vunpack.c.l.b16 %v3896
  %v4033 = vunpack.c.l.b16 %v3897
  %v4034 = vunpack.c.l.b16 %v3898
  %v4035 = vunpack.c.l.b16 %v3899
  %v4036 = vunpack.c.l.b16 %v3900
  %v4037 = vunpack.c.l.b16 %v3901
  %v4038 = vunpack.c.l.b16 %v3902
  %v4039 = vunpack.c.l.b16 %v3903
  %v4040 = vunpack.c.l.b16 %v3904
  %v4041 = vunpack.c.l.b16 %v3905
  %v4042 = vunpack.c.l.b16 %v3906
  %v4043 = vunpack.c.l.b16 %v3907
  %v4044 = vpack.c.b16 %v3981, %v3980
  %v4045 = vpack.c.b16 %v3983, %v3982
  %v4046 = vpack.c.b16 %v3985, %v3984
  %v4047 = vpack.c.b16 %v3987, %v3986
  %v4048 = vpack.c.b16 %v3989, %v3988
  %v4049 = vpack.c.b16 %v3991, %v3990
  %v4050 = vpack.c.b16 %v3993, %v3992
  %v4051 = vpack.c.b16 %v3995, %v3994
  %v4052 = vpack.c.b16 %v3997, %v3996
  %v4053 = vpack.c.b16 %v3999, %v3998
  %v4054 = vpack.c.b16 %v4001, %v4000
  %v4055 = vpack.c.b16 %v4003, %v4002
  %v4056 = vpack.c.b16 %v4005, %v4004
  %v4057 = vpack.c.b16 %v4007, %v4006
  %v4058 = vpack.c.b16 %v4009, %v4008
  %v4059 = vpack.c.b16 %v4011, %v4010
  %v4060 = vpack.c.b16 %v4013, %v4012
  %v4061 = vpack.c.b16 %v4015, %v4014
  %v4062 = vpack.c.b16 %v4017, %v4016
  %v4063 = vpack.c.b16 %v4019, %v4018
  %v4064 = vpack.c.b16 %v4021, %v4020
  %v4065 = vpack.c.b16 %v4023, %v4022
  %v4066 = vpack.c.b16 %v4025, %v4024
  %v4067 = vpack.c.b16 %v4027, %v4026
  %v4068 = vpack.c.b16 %v4029, %v4028
  %v4069 = vpack.c.b16 %v4031, %v4030
  %v4070 = vpack.c.b16 %v4033, %v4032
  %v4071 = vpack.c.b16 %v4035, %v4034
  %v4072 = vpack.c.b16 %v4037, %v4036
  %v4073 = vpack.c.b16 %v4039, %v4038
  %v4074 = vpack.c.b16 %v4041, %v4040
  %v4075 = vpack.c.b16 %v4043, %v4042
  %v4080 = vunpack.c.l.b16 %v3908
  %v4081 = vunpack.c.l.b16 %v3909
  %v4082 = vunpack.c.l.b16 %v3910
  %v4083 = vunpack.c.l.b16 %v3911
  %v4084 = vpack.c.b16 %v4081, %v4080
  %v4085 = vpack.c.b16 %v4083, %v4082
  %vm4088 = vcmask 261120
  %v4090 = vsel %vm4088, %v4044, 0
  %v4093 = vsel %vm4088, %v4045, 0
  %v4096 = vsel %vm4088, %v4046, 0
  %v4099 = vsel %vm4088, %v4047, 0
  %v4102 = vsel %vm4088, %v4048, 0
  %v4105 = vsel %vm4088, %v4049, 0
  %v4108 = vsel %vm4088, %v4050, 0
  %v4111 = vsel %vm4088, %v4051, 0
  %v4114 = vsel %vm4088, %v4052, 0
  %v4117 = vsel %vm4088, %v4053, 0
  %v4120 = vsel %vm4088, %v4054, 0
  %v4123 = vsel %vm4088, %v4055, 0
  %v4126 = vsel %vm4088, %v4056, 0
  %v4129 = vsel %vm4088, %v4057, 0
  %v4132 = vsel %vm4088, %v4058, 0
  %v4135 = vsel %vm4088, %v4059, 0
  %v4138 = vsel %vm4088, %v4060, 0
  %v4141 = vsel %vm4088, %v4061, 0
  %v4144 = vsel %vm4088, %v4062, 0
  %v4147 = vsel %vm4088, %v4063, 0
  %v4150 = vsel %vm4088, %v4064, 0
  %v4153 = vsel %vm4088, %v4065, 0
  %v4156 = vsel %vm4088, %v4066, 0
  %v4159 = vsel %vm4088, %v4067, 0
  %v4162 = vsel %vm4088, %v4068, 0
  %v4165 = vsel %vm4088, %v4069, 0
  %v4168 = vsel %vm4088, %v4070, 0
  %v4171 = vsel %vm4088, %v4071, 0
  %v4174 = vsel %vm4088, %v4072, 0
  %v4177 = vsel %vm4088, %v4073, 0
  %v4180 = vsel %vm4088, %v4074, 0
  %v4183 = vsel %vm4088, %v4075, 0
  %4185 = vmatpush.bf16.msra.mxu0 0
  %4186 = vmatpush.bf16.msra.mxu0 0
  %4187 = vmatpush.bf16.msra.mxu0 0
  %4188 = vmatpush.bf16.msra.mxu0 0
  %4189 = vmatpush.bf16.msra.mxu0 0
  %4190 = vmatpush.bf16.msra.mxu0 0
  %4191 = vmatpush.bf16.msra.mxu0 %v4085
  %4192 = vmatpush.bf16.msra.mxu0 %v4084
  %4193 = vmatmul.bf16.gmra.mxu0 %v4090
  %v4194 = vpop.f32.mrf.mxu0
  %v4195 = vadd.f32 %v3914, %v4194
  %v4196 = vpop.f32.mrf.mxu0
  %v4197 = vadd.f32 %v3914, %v4196
  %4198 = vmatmul.bf16.gmra.mxu0 %v4093
  %v4199 = vpop.f32.mrf.mxu0
  %v4200 = vadd.f32 %v3914, %v4199
  %v4201 = vpop.f32.mrf.mxu0
  %v4202 = vadd.f32 %v3914, %v4201
  %4203 = vmatmul.bf16.gmra.mxu0 %v4096
  %v4204 = vpop.f32.mrf.mxu0
  %v4205 = vadd.f32 %v3914, %v4204
  %v4206 = vpop.f32.mrf.mxu0
  %v4207 = vadd.f32 %v3914, %v4206
  %4208 = vmatmul.bf16.gmra.mxu0 %v4099
  %v4209 = vpop.f32.mrf.mxu0
  %v4210 = vadd.f32 %v3914, %v4209
  %v4211 = vpop.f32.mrf.mxu0
  %v4212 = vadd.f32 %v3914, %v4211
  %4213 = vmatmul.bf16.gmra.mxu0 %v4102
  %v4214 = vpop.f32.mrf.mxu0
  %v4215 = vadd.f32 %v3914, %v4214
  %v4216 = vpop.f32.mrf.mxu0
  %v4217 = vadd.f32 %v3914, %v4216
  %4218 = vmatmul.bf16.gmra.mxu0 %v4105
  %v4219 = vpop.f32.mrf.mxu0
  %v4220 = vadd.f32 %v3914, %v4219
  %v4221 = vpop.f32.mrf.mxu0
  %v4222 = vadd.f32 %v3914, %v4221
  %4223 = vmatmul.bf16.gmra.mxu0 %v4108
  %v4224 = vpop.f32.mrf.mxu0
  %v4225 = vadd.f32 %v3914, %v4224
  %v4226 = vpop.f32.mrf.mxu0
  %v4227 = vadd.f32 %v3914, %v4226
  %4228 = vmatmul.bf16.gmra.mxu0 %v4111
  %v4229 = vpop.f32.mrf.mxu0
  %v4230 = vadd.f32 %v3914, %v4229
  %v4231 = vpop.f32.mrf.mxu0
  %v4232 = vadd.f32 %v3914, %v4231
  %4233 = vmatmul.bf16.gmra.mxu0 %v4114
  %v4234 = vpop.f32.mrf.mxu0
  %v4235 = vadd.f32 %v3914, %v4234
  %v4236 = vpop.f32.mrf.mxu0
  %v4237 = vadd.f32 %v3914, %v4236
  %4238 = vmatmul.bf16.gmra.mxu0 %v4117
  %v4239 = vpop.f32.mrf.mxu0
  %v4240 = vadd.f32 %v3914, %v4239
  %v4241 = vpop.f32.mrf.mxu0
  %v4242 = vadd.f32 %v3914, %v4241
  %4243 = vmatmul.bf16.gmra.mxu0 %v4120
  %v4244 = vpop.f32.mrf.mxu0
  %v4245 = vadd.f32 %v3914, %v4244
  %v4246 = vpop.f32.mrf.mxu0
  %v4247 = vadd.f32 %v3914, %v4246
  %4248 = vmatmul.bf16.gmra.mxu0 %v4123
  %v4249 = vpop.f32.mrf.mxu0
  %v4250 = vadd.f32 %v3914, %v4249
  %v4251 = vpop.f32.mrf.mxu0
  %v4252 = vadd.f32 %v3914, %v4251
  %4253 = vmatmul.bf16.gmra.mxu0 %v4126
  %v4254 = vpop.f32.mrf.mxu0
  %v4255 = vadd.f32 %v3914, %v4254
  %v4256 = vpop.f32.mrf.mxu0
  %v4257 = vadd.f32 %v3914, %v4256
  %4258 = vmatmul.bf16.gmra.mxu0 %v4129
  %v4259 = vpop.f32.mrf.mxu0
  %v4260 = vadd.f32 %v3914, %v4259
  %v4261 = vpop.f32.mrf.mxu0
  %v4262 = vadd.f32 %v3914, %v4261
  %4263 = vmatmul.bf16.gmra.mxu0 %v4132
  %v4264 = vpop.f32.mrf.mxu0
  %v4265 = vadd.f32 %v3914, %v4264
  %v4266 = vpop.f32.mrf.mxu0
  %v4267 = vadd.f32 %v3914, %v4266
  %4268 = vmatmul.bf16.gmra.mxu0 %v4135
  %v4269 = vpop.f32.mrf.mxu0
  %v4270 = vadd.f32 %v3914, %v4269
  %v4271 = vpop.f32.mrf.mxu0
  %v4272 = vadd.f32 %v3914, %v4271
  %4273 = vmatmul.bf16.gmra.mxu0 %v4138
  %v4274 = vpop.f32.mrf.mxu0
  %v4275 = vadd.f32 %v3914, %v4274
  %v4276 = vpop.f32.mrf.mxu0
  %v4277 = vadd.f32 %v3914, %v4276
  %4278 = vmatmul.bf16.gmra.mxu0 %v4141
  %v4279 = vpop.f32.mrf.mxu0
  %v4280 = vadd.f32 %v3914, %v4279
  %v4281 = vpop.f32.mrf.mxu0
  %v4282 = vadd.f32 %v3914, %v4281
  %4283 = vmatmul.bf16.gmra.mxu0 %v4144
  %v4284 = vpop.f32.mrf.mxu0
  %v4285 = vadd.f32 %v3914, %v4284
  %v4286 = vpop.f32.mrf.mxu0
  %v4287 = vadd.f32 %v3914, %v4286
  %4288 = vmatmul.bf16.gmra.mxu0 %v4147
  %v4289 = vpop.f32.mrf.mxu0
  %v4290 = vadd.f32 %v3914, %v4289
  %v4291 = vpop.f32.mrf.mxu0
  %v4292 = vadd.f32 %v3914, %v4291
  %4293 = vmatmul.bf16.gmra.mxu0 %v4150
  %v4294 = vpop.f32.mrf.mxu0
  %v4295 = vadd.f32 %v3914, %v4294
  %v4296 = vpop.f32.mrf.mxu0
  %v4297 = vadd.f32 %v3914, %v4296
  %4298 = vmatmul.bf16.gmra.mxu0 %v4153
  %v4299 = vpop.f32.mrf.mxu0
  %v4300 = vadd.f32 %v3914, %v4299
  %v4301 = vpop.f32.mrf.mxu0
  %v4302 = vadd.f32 %v3914, %v4301
  %4303 = vmatmul.bf16.gmra.mxu0 %v4156
  %v4304 = vpop.f32.mrf.mxu0
  %v4305 = vadd.f32 %v3914, %v4304
  %v4306 = vpop.f32.mrf.mxu0
  %v4307 = vadd.f32 %v3914, %v4306
  %4308 = vmatmul.bf16.gmra.mxu0 %v4159
  %v4309 = vpop.f32.mrf.mxu0
  %v4310 = vadd.f32 %v3914, %v4309
  %v4311 = vpop.f32.mrf.mxu0
  %v4312 = vadd.f32 %v3914, %v4311
  %4313 = vmatmul.bf16.gmra.mxu0 %v4162
  %v4314 = vpop.f32.mrf.mxu0
  %v4315 = vadd.f32 %v3914, %v4314
  %v4316 = vpop.f32.mrf.mxu0
  %v4317 = vadd.f32 %v3914, %v4316
  %4318 = vmatmul.bf16.gmra.mxu0 %v4165
  %v4319 = vpop.f32.mrf.mxu0
  %v4320 = vadd.f32 %v3914, %v4319
  %v4321 = vpop.f32.mrf.mxu0
  %v4322 = vadd.f32 %v3914, %v4321
  %4323 = vmatmul.bf16.gmra.mxu0 %v4168
  %v4324 = vpop.f32.mrf.mxu0
  %v4325 = vadd.f32 %v3914, %v4324
  %v4326 = vpop.f32.mrf.mxu0
  %v4327 = vadd.f32 %v3914, %v4326
  %4328 = vmatmul.bf16.gmra.mxu0 %v4171
  %v4329 = vpop.f32.mrf.mxu0
  %v4330 = vadd.f32 %v3914, %v4329
  %v4331 = vpop.f32.mrf.mxu0
  %v4332 = vadd.f32 %v3914, %v4331
  %4333 = vmatmul.bf16.gmra.mxu0 %v4174
  %v4334 = vpop.f32.mrf.mxu0
  %v4335 = vadd.f32 %v3914, %v4334
  %v4336 = vpop.f32.mrf.mxu0
  %v4337 = vadd.f32 %v3914, %v4336
  %4338 = vmatmul.bf16.gmra.mxu0 %v4177
  %v4339 = vpop.f32.mrf.mxu0
  %v4340 = vadd.f32 %v3914, %v4339
  %v4341 = vpop.f32.mrf.mxu0
  %v4342 = vadd.f32 %v3914, %v4341
  %4343 = vmatmul.bf16.gmra.mxu0 %v4180
  %v4344 = vpop.f32.mrf.mxu0
  %v4345 = vadd.f32 %v3914, %v4344
  %v4346 = vpop.f32.mrf.mxu0
  %v4347 = vadd.f32 %v3914, %v4346
  %4348 = vmatmul.bf16.gmra.mxu0 %v4183
  %v4349 = vpop.f32.mrf.mxu0
  %v4350 = vadd.f32 %v3914, %v4349
  %v4351 = vpop.f32.mrf.mxu0
  %v4352 = vadd.f32 %v3914, %v4351
  %4353 = vdwg.mxu0
  %v4354 = vmax.f32 %v4195, 0.0
  %v4355 = vmax.f32 %v4197, 0.0
  %v4356 = vmax.f32 %v4200, 0.0
  %v4357 = vmax.f32 %v4202, 0.0
  %v4358 = vmax.f32 %v4205, 0.0
  %v4359 = vmax.f32 %v4207, 0.0
  %v4360 = vmax.f32 %v4210, 0.0
  %v4361 = vmax.f32 %v4212, 0.0
  %v4362 = vmax.f32 %v4215, 0.0
  %v4363 = vmax.f32 %v4217, 0.0
  %v4364 = vmax.f32 %v4220, 0.0
  %v4365 = vmax.f32 %v4222, 0.0
  %v4366 = vmax.f32 %v4225, 0.0
  %v4367 = vmax.f32 %v4227, 0.0
  %v4368 = vmax.f32 %v4230, 0.0
  %v4369 = vmax.f32 %v4232, 0.0
  %v4370 = vmax.f32 %v4235, 0.0
  %v4371 = vmax.f32 %v4237, 0.0
  %v4372 = vmax.f32 %v4240, 0.0
  %v4373 = vmax.f32 %v4242, 0.0
  %v4374 = vmax.f32 %v4245, 0.0
  %v4375 = vmax.f32 %v4247, 0.0
  %v4376 = vmax.f32 %v4250, 0.0
  %v4377 = vmax.f32 %v4252, 0.0
  %v4378 = vmax.f32 %v4255, 0.0
  %v4379 = vmax.f32 %v4257, 0.0
  %v4380 = vmax.f32 %v4260, 0.0
  %v4381 = vmax.f32 %v4262, 0.0
  %v4382 = vmax.f32 %v4265, 0.0
  %v4383 = vmax.f32 %v4267, 0.0
  %v4384 = vmax.f32 %v4270, 0.0
  %v4385 = vmax.f32 %v4272, 0.0
  %v4386 = vmax.f32 %v4275, 0.0
  %v4387 = vmax.f32 %v4277, 0.0
  %v4388 = vmax.f32 %v4280, 0.0
  %v4389 = vmax.f32 %v4282, 0.0
  %v4390 = vmax.f32 %v4285, 0.0
  %v4391 = vmax.f32 %v4287, 0.0
  %v4392 = vmax.f32 %v4290, 0.0
  %v4393 = vmax.f32 %v4292, 0.0
  %v4394 = vmax.f32 %v4295, 0.0
  %v4395 = vmax.f32 %v4297, 0.0
  %v4396 = vmax.f32 %v4300, 0.0
  %v4397 = vmax.f32 %v4302, 0.0
  %v4398 = vmax.f32 %v4305, 0.0
  %v4399 = vmax.f32 %v4307, 0.0
  %v4400 = vmax.f32 %v4310, 0.0
  %v4401 = vmax.f32 %v4312, 0.0
  %v4402 = vmax.f32 %v4315, 0.0
  %v4403 = vmax.f32 %v4317, 0.0
  %v4404 = vmax.f32 %v4320, 0.0
  %v4405 = vmax.f32 %v4322, 0.0
  %v4406 = vmax.f32 %v4325, 0.0
  %v4407 = vmax.f32 %v4327, 0.0
  %v4408 = vmax.f32 %v4330, 0.0
  %v4409 = vmax.f32 %v4332, 0.0
  %v4410 = vmax.f32 %v4335, 0.0
  %v4411 = vmax.f32 %v4337, 0.0
  %v4412 = vmax.f32 %v4340, 0.0
  %v4413 = vmax.f32 %v4342, 0.0
  %v4414 = vmax.f32 %v4345, 0.0
  %v4415 = vmax.f32 %v4347, 0.0
  %v4416 = vmax.f32 %v4350, 0.0
  %v4417 = vmax.f32 %v4352, 0.0
  %v4418 = vpack.c.bf16 %v4355, %v4354
  %v4419 = vpack.c.bf16 %v4357, %v4356
  %v4420 = vpack.c.bf16 %v4359, %v4358
  %v4421 = vpack.c.bf16 %v4361, %v4360
  %v4422 = vpack.c.bf16 %v4363, %v4362
  %v4423 = vpack.c.bf16 %v4365, %v4364
  %v4424 = vpack.c.bf16 %v4367, %v4366
  %v4425 = vpack.c.bf16 %v4369, %v4368
  %v4426 = vpack.c.bf16 %v4371, %v4370
  %v4427 = vpack.c.bf16 %v4373, %v4372
  %v4428 = vpack.c.bf16 %v4375, %v4374
  %v4429 = vpack.c.bf16 %v4377, %v4376
  %v4430 = vpack.c.bf16 %v4379, %v4378
  %v4431 = vpack.c.bf16 %v4381, %v4380
  %v4432 = vpack.c.bf16 %v4383, %v4382
  %v4433 = vpack.c.bf16 %v4385, %v4384
  %v4434 = vpack.c.bf16 %v4387, %v4386
  %v4435 = vpack.c.bf16 %v4389, %v4388
  %v4436 = vpack.c.bf16 %v4391, %v4390
  %v4437 = vpack.c.bf16 %v4393, %v4392
  %v4438 = vpack.c.bf16 %v4395, %v4394
  %v4439 = vpack.c.bf16 %v4397, %v4396
  %v4440 = vpack.c.bf16 %v4399, %v4398
  %v4441 = vpack.c.bf16 %v4401, %v4400
  %v4442 = vpack.c.bf16 %v4403, %v4402
  %v4443 = vpack.c.bf16 %v4405, %v4404
  %v4444 = vpack.c.bf16 %v4407, %v4406
  %v4445 = vpack.c.bf16 %v4409, %v4408
  %v4446 = vpack.c.bf16 %v4411, %v4410
  %v4447 = vpack.c.bf16 %v4413, %v4412
  %v4448 = vpack.c.bf16 %v4415, %v4414
  %v4449 = vpack.c.bf16 %v4417, %v4416
  %v4450 = vld [vmem:[%s19] sm:$0xf]
  %v4451 = vld [vmem:[%s19 + $0x4] sm:$0xf]
  %v4452 = vld [vmem:[%s19 + $0x8] sm:$0xf]
  %v4453 = vld [vmem:[%s19 + $0xc] sm:$0xf]
  %v4454 = vld [vmem:[%s19 + $0x10] sm:$0xf]
  %v4455 = vld [vmem:[%s19 + $0x14] sm:$0xf]
  %v4456 = vld [vmem:[%s19 + $0x18] sm:$0xf]
  %v4457 = vld [vmem:[%s19 + $0x1c] sm:$0xf]
  %v4458 = vld [vmem:[%s20] sm:$0x1]
  %v4460 = vperm.slane %v4458, 0
  %v4470 = vunpack.c.l.b16 %v4450
  %v4471 = vunpack.c.l.b16 %v4451
  %v4472 = vunpack.c.l.b16 %v4452
  %v4473 = vunpack.c.l.b16 %v4453
  %v4474 = vunpack.c.l.b16 %v4454
  %v4475 = vunpack.c.l.b16 %v4455
  %v4476 = vunpack.c.l.b16 %v4456
  %v4477 = vunpack.c.l.b16 %v4457
  %v4478 = vpack.c.b16 %v4471, %v4470
  %v4479 = vpack.c.b16 %v4473, %v4472
  %v4480 = vpack.c.b16 %v4475, %v4474
  %v4481 = vpack.c.b16 %v4477, %v4476
  %v4487 = vsel %vm1056, %v4418, 0
  %v4490 = vsel %vm1056, %v4419, 0
  %v4493 = vsel %vm1056, %v4420, 0
  %v4496 = vsel %vm1056, %v4421, 0
  %v4499 = vsel %vm1056, %v4422, 0
  %v4502 = vsel %vm1056, %v4423, 0
  %v4505 = vsel %vm1056, %v4424, 0
  %v4508 = vsel %vm1056, %v4425, 0
  %v4511 = vsel %vm1056, %v4426, 0
  %v4514 = vsel %vm1056, %v4427, 0
  %v4517 = vsel %vm1056, %v4428, 0
  %v4520 = vsel %vm1056, %v4429, 0
  %v4523 = vsel %vm1056, %v4430, 0
  %v4526 = vsel %vm1056, %v4431, 0
  %v4529 = vsel %vm1056, %v4432, 0
  %v4532 = vsel %vm1056, %v4433, 0
  %v4535 = vsel %vm1056, %v4434, 0
  %v4538 = vsel %vm1056, %v4435, 0
  %v4541 = vsel %vm1056, %v4436, 0
  %v4544 = vsel %vm1056, %v4437, 0
  %v4547 = vsel %vm1056, %v4438, 0
  %v4550 = vsel %vm1056, %v4439, 0
  %v4553 = vsel %vm1056, %v4440, 0
  %v4556 = vsel %vm1056, %v4441, 0
  %v4559 = vsel %vm1056, %v4442, 0
  %v4562 = vsel %vm1056, %v4443, 0
  %v4565 = vsel %vm1056, %v4444, 0
  %v4568 = vsel %vm1056, %v4445, 0
  %v4571 = vsel %vm1056, %v4446, 0
  %v4574 = vsel %vm1056, %v4447, 0
  %v4577 = vsel %vm1056, %v4448, 0
  %v4580 = vsel %vm1056, %v4449, 0
  %4582 = vmatpush.bf16.msra.mxu0 0
  %4583 = vmatpush.bf16.msra.mxu0 0
  %4584 = vmatpush.bf16.msra.mxu0 0
  %4585 = vmatpush.bf16.msra.mxu0 0
  %4586 = vmatpush.bf16.msra.mxu0 %v4481
  %4587 = vmatpush.bf16.msra.mxu0 %v4480
  %4588 = vmatpush.bf16.msra.mxu0 %v4479
  %4589 = vmatpush.bf16.msra.mxu0 %v4478
  %4590 = vmatmul.bf16.gmra.mxu0 %v4487
  %v4591 = vpop.f32.mrf.mxu0
  %v4592 = vadd.f32 %v4460, %v4591
  %v4593 = vpop.f32.mrf.mxu0
  %v4594 = vadd.f32 %v4460, %v4593
  %4595 = vmatmul.bf16.gmra.mxu0 %v4490
  %v4596 = vpop.f32.mrf.mxu0
  %v4597 = vadd.f32 %v4460, %v4596
  %v4598 = vpop.f32.mrf.mxu0
  %v4599 = vadd.f32 %v4460, %v4598
  %4600 = vmatmul.bf16.gmra.mxu0 %v4493
  %v4601 = vpop.f32.mrf.mxu0
  %v4602 = vadd.f32 %v4460, %v4601
  %v4603 = vpop.f32.mrf.mxu0
  %v4604 = vadd.f32 %v4460, %v4603
  %4605 = vmatmul.bf16.gmra.mxu0 %v4496
  %v4606 = vpop.f32.mrf.mxu0
  %v4607 = vadd.f32 %v4460, %v4606
  %v4608 = vpop.f32.mrf.mxu0
  %v4609 = vadd.f32 %v4460, %v4608
  %4610 = vmatmul.bf16.gmra.mxu0 %v4499
  %v4611 = vpop.f32.mrf.mxu0
  %v4612 = vadd.f32 %v4460, %v4611
  %v4613 = vpop.f32.mrf.mxu0
  %v4614 = vadd.f32 %v4460, %v4613
  %4615 = vmatmul.bf16.gmra.mxu0 %v4502
  %v4616 = vpop.f32.mrf.mxu0
  %v4617 = vadd.f32 %v4460, %v4616
  %v4618 = vpop.f32.mrf.mxu0
  %v4619 = vadd.f32 %v4460, %v4618
  %4620 = vmatmul.bf16.gmra.mxu0 %v4505
  %v4621 = vpop.f32.mrf.mxu0
  %v4622 = vadd.f32 %v4460, %v4621
  %v4623 = vpop.f32.mrf.mxu0
  %v4624 = vadd.f32 %v4460, %v4623
  %4625 = vmatmul.bf16.gmra.mxu0 %v4508
  %v4626 = vpop.f32.mrf.mxu0
  %v4627 = vadd.f32 %v4460, %v4626
  %v4628 = vpop.f32.mrf.mxu0
  %v4629 = vadd.f32 %v4460, %v4628
  %4630 = vmatmul.bf16.gmra.mxu0 %v4511
  %v4631 = vpop.f32.mrf.mxu0
  %v4632 = vadd.f32 %v4460, %v4631
  %v4633 = vpop.f32.mrf.mxu0
  %v4634 = vadd.f32 %v4460, %v4633
  %4635 = vmatmul.bf16.gmra.mxu0 %v4514
  %v4636 = vpop.f32.mrf.mxu0
  %v4637 = vadd.f32 %v4460, %v4636
  %v4638 = vpop.f32.mrf.mxu0
  %v4639 = vadd.f32 %v4460, %v4638
  %4640 = vmatmul.bf16.gmra.mxu0 %v4517
  %v4641 = vpop.f32.mrf.mxu0
  %v4642 = vadd.f32 %v4460, %v4641
  %v4643 = vpop.f32.mrf.mxu0
  %v4644 = vadd.f32 %v4460, %v4643
  %4645 = vmatmul.bf16.gmra.mxu0 %v4520
  %v4646 = vpop.f32.mrf.mxu0
  %v4647 = vadd.f32 %v4460, %v4646
  %v4648 = vpop.f32.mrf.mxu0
  %v4649 = vadd.f32 %v4460, %v4648
  %4650 = vmatmul.bf16.gmra.mxu0 %v4523
  %v4651 = vpop.f32.mrf.mxu0
  %v4652 = vadd.f32 %v4460, %v4651
  %v4653 = vpop.f32.mrf.mxu0
  %v4654 = vadd.f32 %v4460, %v4653
  %4655 = vmatmul.bf16.gmra.mxu0 %v4526
  %v4656 = vpop.f32.mrf.mxu0
  %v4657 = vadd.f32 %v4460, %v4656
  %v4658 = vpop.f32.mrf.mxu0
  %v4659 = vadd.f32 %v4460, %v4658
  %4660 = vmatmul.bf16.gmra.mxu0 %v4529
  %v4661 = vpop.f32.mrf.mxu0
  %v4662 = vadd.f32 %v4460, %v4661
  %v4663 = vpop.f32.mrf.mxu0
  %v4664 = vadd.f32 %v4460, %v4663
  %4665 = vmatmul.bf16.gmra.mxu0 %v4532
  %v4666 = vpop.f32.mrf.mxu0
  %v4667 = vadd.f32 %v4460, %v4666
  %v4668 = vpop.f32.mrf.mxu0
  %v4669 = vadd.f32 %v4460, %v4668
  %4670 = vmatmul.bf16.gmra.mxu0 %v4535
  %v4671 = vpop.f32.mrf.mxu0
  %v4672 = vadd.f32 %v4460, %v4671
  %v4673 = vpop.f32.mrf.mxu0
  %v4674 = vadd.f32 %v4460, %v4673
  %4675 = vmatmul.bf16.gmra.mxu0 %v4538
  %v4676 = vpop.f32.mrf.mxu0
  %v4677 = vadd.f32 %v4460, %v4676
  %v4678 = vpop.f32.mrf.mxu0
  %v4679 = vadd.f32 %v4460, %v4678
  %4680 = vmatmul.bf16.gmra.mxu0 %v4541
  %v4681 = vpop.f32.mrf.mxu0
  %v4682 = vadd.f32 %v4460, %v4681
  %v4683 = vpop.f32.mrf.mxu0
  %v4684 = vadd.f32 %v4460, %v4683
  %4685 = vmatmul.bf16.gmra.mxu0 %v4544
  %v4686 = vpop.f32.mrf.mxu0
  %v4687 = vadd.f32 %v4460, %v4686
  %v4688 = vpop.f32.mrf.mxu0
  %v4689 = vadd.f32 %v4460, %v4688
  %4690 = vmatmul.bf16.gmra.mxu0 %v4547
  %v4691 = vpop.f32.mrf.mxu0
  %v4692 = vadd.f32 %v4460, %v4691
  %v4693 = vpop.f32.mrf.mxu0
  %v4694 = vadd.f32 %v4460, %v4693
  %4695 = vmatmul.bf16.gmra.mxu0 %v4550
  %v4696 = vpop.f32.mrf.mxu0
  %v4697 = vadd.f32 %v4460, %v4696
  %v4698 = vpop.f32.mrf.mxu0
  %v4699 = vadd.f32 %v4460, %v4698
  %4700 = vmatmul.bf16.gmra.mxu0 %v4553
  %v4701 = vpop.f32.mrf.mxu0
  %v4702 = vadd.f32 %v4460, %v4701
  %v4703 = vpop.f32.mrf.mxu0
  %v4704 = vadd.f32 %v4460, %v4703
  %4705 = vmatmul.bf16.gmra.mxu0 %v4556
  %v4706 = vpop.f32.mrf.mxu0
  %v4707 = vadd.f32 %v4460, %v4706
  %v4708 = vpop.f32.mrf.mxu0
  %v4709 = vadd.f32 %v4460, %v4708
  %4710 = vmatmul.bf16.gmra.mxu0 %v4559
  %v4711 = vpop.f32.mrf.mxu0
  %v4712 = vadd.f32 %v4460, %v4711
  %v4713 = vpop.f32.mrf.mxu0
  %v4714 = vadd.f32 %v4460, %v4713
  %4715 = vmatmul.bf16.gmra.mxu0 %v4562
  %v4716 = vpop.f32.mrf.mxu0
  %v4717 = vadd.f32 %v4460, %v4716
  %v4718 = vpop.f32.mrf.mxu0
  %v4719 = vadd.f32 %v4460, %v4718
  %4720 = vmatmul.bf16.gmra.mxu0 %v4565
  %v4721 = vpop.f32.mrf.mxu0
  %v4722 = vadd.f32 %v4460, %v4721
  %v4723 = vpop.f32.mrf.mxu0
  %v4724 = vadd.f32 %v4460, %v4723
  %4725 = vmatmul.bf16.gmra.mxu0 %v4568
  %v4726 = vpop.f32.mrf.mxu0
  %v4727 = vadd.f32 %v4460, %v4726
  %v4728 = vpop.f32.mrf.mxu0
  %v4729 = vadd.f32 %v4460, %v4728
  %4730 = vmatmul.bf16.gmra.mxu0 %v4571
  %v4731 = vpop.f32.mrf.mxu0
  %v4732 = vadd.f32 %v4460, %v4731
  %v4733 = vpop.f32.mrf.mxu0
  %v4734 = vadd.f32 %v4460, %v4733
  %4735 = vmatmul.bf16.gmra.mxu0 %v4574
  %v4736 = vpop.f32.mrf.mxu0
  %v4737 = vadd.f32 %v4460, %v4736
  %v4738 = vpop.f32.mrf.mxu0
  %v4739 = vadd.f32 %v4460, %v4738
  %4740 = vmatmul.bf16.gmra.mxu0 %v4577
  %v4741 = vpop.f32.mrf.mxu0
  %v4742 = vadd.f32 %v4460, %v4741
  %v4743 = vpop.f32.mrf.mxu0
  %v4744 = vadd.f32 %v4460, %v4743
  %4745 = vmatmul.bf16.gmra.mxu0 %v4580
  %v4746 = vpop.f32.mrf.mxu0
  %v4747 = vadd.f32 %v4460, %v4746
  %v4748 = vpop.f32.mrf.mxu0
  %v4749 = vadd.f32 %v4460, %v4748
  %4750 = vdwg.mxu0
  %4751 = vst.msk [vmem:[%s21] sm:$0xff] %vm658, %v4592
  %4752 = vst.msk [vmem:[%s21 + $0x10] sm:$0xff] %vm658, %v4594
  %4753 = vst.msk [vmem:[%s21 + $0x20] sm:$0xff] %vm658, %v4597
  %4754 = vst.msk [vmem:[%s21 + $0x30] sm:$0xff] %vm658, %v4599
  %4759 = vrot.lane.b32.xlu0 %v4632, 16
  %v4760 = vpop.permute.xlu0 %4759
  %4761 = vrot.lane.b32.xlu0 %v4634, 16
  %v4762 = vpop.permute.xlu0 %4761
  %4763 = vrot.lane.b32.xlu0 %v4637, 16
  %v4764 = vpop.permute.xlu0 %4763
  %4765 = vrot.lane.b32.xlu0 %v4639, 16
  %v4766 = vpop.permute.xlu0 %4765
  %vm4771 = vcmask 261248
  %4772 = vst.msk [vmem:[%s21] sm:$0xff] %vm4771, %v4760
  %4773 = vst.msk [vmem:[%s21 + $0x10] sm:$0xff] %vm4771, %v4762
  %4774 = vst.msk [vmem:[%s21 + $0x20] sm:$0xff] %vm4771, %v4764
  %4775 = vst.msk [vmem:[%s21 + $0x30] sm:$0xff] %vm4771, %v4766
  %4780 = vrot.lane.b32.xlu0 %v4672, 32
  %v4781 = vpop.permute.xlu0 %4780
  %4782 = vrot.lane.b32.xlu0 %v4674, 32
  %v4783 = vpop.permute.xlu0 %4782
  %4784 = vrot.lane.b32.xlu0 %v4677, 32
  %v4785 = vpop.permute.xlu0 %4784
  %4786 = vrot.lane.b32.xlu0 %v4679, 32
  %v4787 = vpop.permute.xlu0 %4786
  %vm4792 = vcmask 392448
  %4793 = vst.msk [vmem:[%s21] sm:$0xff] %vm4792, %v4781
  %4794 = vst.msk [vmem:[%s21 + $0x10] sm:$0xff] %vm4792, %v4783
  %4795 = vst.msk [vmem:[%s21 + $0x20] sm:$0xff] %vm4792, %v4785
  %4796 = vst.msk [vmem:[%s21 + $0x30] sm:$0xff] %vm4792, %v4787
  %4801 = vrot.lane.b32.xlu0 %v4712, 48
  %v4802 = vpop.permute.xlu0 %4801
  %4803 = vrot.lane.b32.xlu0 %v4714, 48
  %v4804 = vpop.permute.xlu0 %4803
  %4805 = vrot.lane.b32.xlu0 %v4717, 48
  %v4806 = vpop.permute.xlu0 %4805
  %4807 = vrot.lane.b32.xlu0 %v4719, 48
  %v4808 = vpop.permute.xlu0 %4807
  %vm4813 = vcmask 523648
  %4814 = vst.msk [vmem:[%s21] sm:$0xff] %vm4813, %v4802
  %4815 = vst.msk [vmem:[%s21 + $0x10] sm:$0xff] %vm4813, %v4804
  %4816 = vst.msk [vmem:[%s21 + $0x20] sm:$0xff] %vm4813, %v4806
  %4817 = vst.msk [vmem:[%s21 + $0x30] sm:$0xff] %vm4813, %v4808
  %4822 = vrot.lane.b32.xlu0 %v4602, 64
  %v4823 = vpop.permute.xlu0 %4822
  %4824 = vrot.lane.b32.xlu0 %v4604, 64
  %v4825 = vpop.permute.xlu0 %4824
  %4826 = vrot.lane.b32.xlu0 %v4607, 64
  %v4827 = vpop.permute.xlu0 %4826
  %4828 = vrot.lane.b32.xlu0 %v4609, 64
  %v4829 = vpop.permute.xlu0 %4828
  %vm4834 = vcmask 654848
  %4835 = vst.msk [vmem:[%s21] sm:$0xff] %vm4834, %v4823
  %4836 = vst.msk [vmem:[%s21 + $0x10] sm:$0xff] %vm4834, %v4825
  %4837 = vst.msk [vmem:[%s21 + $0x20] sm:$0xff] %vm4834, %v4827
  %4838 = vst.msk [vmem:[%s21 + $0x30] sm:$0xff] %vm4834, %v4829
  %4843 = vrot.lane.b32.xlu0 %v4642, 80
  %v4844 = vpop.permute.xlu0 %4843
  %4845 = vrot.lane.b32.xlu0 %v4644, 80
  %v4846 = vpop.permute.xlu0 %4845
  %4847 = vrot.lane.b32.xlu0 %v4647, 80
  %v4848 = vpop.permute.xlu0 %4847
  %4849 = vrot.lane.b32.xlu0 %v4649, 80
  %v4850 = vpop.permute.xlu0 %4849
  %vm4855 = vcmask 786048
  %4856 = vst.msk [vmem:[%s21] sm:$0xff] %vm4855, %v4844
  %4857 = vst.msk [vmem:[%s21 + $0x10] sm:$0xff] %vm4855, %v4846
  %4858 = vst.msk [vmem:[%s21 + $0x20] sm:$0xff] %vm4855, %v4848
  %4859 = vst.msk [vmem:[%s21 + $0x30] sm:$0xff] %vm4855, %v4850
  %4864 = vrot.lane.b32.xlu0 %v4682, 96
  %v4865 = vpop.permute.xlu0 %4864
  %4866 = vrot.lane.b32.xlu0 %v4684, 96
  %v4867 = vpop.permute.xlu0 %4866
  %4868 = vrot.lane.b32.xlu0 %v4687, 96
  %v4869 = vpop.permute.xlu0 %4868
  %4870 = vrot.lane.b32.xlu0 %v4689, 96
  %v4871 = vpop.permute.xlu0 %4870
  %vm4876 = vcmask 917248
  %4877 = vst.msk [vmem:[%s21] sm:$0xff] %vm4876, %v4865
  %4878 = vst.msk [vmem:[%s21 + $0x10] sm:$0xff] %vm4876, %v4867
  %4879 = vst.msk [vmem:[%s21 + $0x20] sm:$0xff] %vm4876, %v4869
  %4880 = vst.msk [vmem:[%s21 + $0x30] sm:$0xff] %vm4876, %v4871
  %4885 = vrot.lane.b32.xlu0 %v4722, 112
  %v4886 = vpop.permute.xlu0 %4885
  %4887 = vrot.lane.b32.xlu0 %v4724, 112
  %v4888 = vpop.permute.xlu0 %4887
  %4889 = vrot.lane.b32.xlu0 %v4727, 112
  %v4890 = vpop.permute.xlu0 %4889
  %4891 = vrot.lane.b32.xlu0 %v4729, 112
  %v4892 = vpop.permute.xlu0 %4891
  %vm4897 = vcmask 1048448
  %4898 = vst.msk [vmem:[%s21] sm:$0xff] %vm4897, %v4886
  %4899 = vst.msk [vmem:[%s21 + $0x10] sm:$0xff] %vm4897, %v4888
  %4900 = vst.msk [vmem:[%s21 + $0x20] sm:$0xff] %vm4897, %v4890
  %4901 = vst.msk [vmem:[%s21 + $0x30] sm:$0xff] %vm4897, %v4892
  %4902 = vst.msk [vmem:[%s21 + $0x8] sm:$0xff] %vm658, %v4612
  %4903 = vst.msk [vmem:[%s21 + $0x18] sm:$0xff] %vm658, %v4614
  %4904 = vst.msk [vmem:[%s21 + $0x28] sm:$0xff] %vm658, %v4617
  %4905 = vst.msk [vmem:[%s21 + $0x38] sm:$0xff] %vm658, %v4619
  %4910 = vrot.lane.b32.xlu0 %v4652, 16
  %v4911 = vpop.permute.xlu0 %4910
  %4912 = vrot.lane.b32.xlu0 %v4654, 16
  %v4913 = vpop.permute.xlu0 %4912
  %4914 = vrot.lane.b32.xlu0 %v4657, 16
  %v4915 = vpop.permute.xlu0 %4914
  %4916 = vrot.lane.b32.xlu0 %v4659, 16
  %v4917 = vpop.permute.xlu0 %4916
  %4922 = vst.msk [vmem:[%s21 + $0x8] sm:$0xff] %vm4771, %v4911
  %4923 = vst.msk [vmem:[%s21 + $0x18] sm:$0xff] %vm4771, %v4913
  %4924 = vst.msk [vmem:[%s21 + $0x28] sm:$0xff] %vm4771, %v4915
  %4925 = vst.msk [vmem:[%s21 + $0x38] sm:$0xff] %vm4771, %v4917
  %4930 = vrot.lane.b32.xlu0 %v4692, 32
  %v4931 = vpop.permute.xlu0 %4930
  %4932 = vrot.lane.b32.xlu0 %v4694, 32
  %v4933 = vpop.permute.xlu0 %4932
  %4934 = vrot.lane.b32.xlu0 %v4697, 32
  %v4935 = vpop.permute.xlu0 %4934
  %4936 = vrot.lane.b32.xlu0 %v4699, 32
  %v4937 = vpop.permute.xlu0 %4936
  %4942 = vst.msk [vmem:[%s21 + $0x8] sm:$0xff] %vm4792, %v4931
  %4943 = vst.msk [vmem:[%s21 + $0x18] sm:$0xff] %vm4792, %v4933
  %4944 = vst.msk [vmem:[%s21 + $0x28] sm:$0xff] %vm4792, %v4935
  %4945 = vst.msk [vmem:[%s21 + $0x38] sm:$0xff] %vm4792, %v4937
  %4950 = vrot.lane.b32.xlu0 %v4732, 48
  %v4951 = vpop.permute.xlu0 %4950
  %4952 = vrot.lane.b32.xlu0 %v4734, 48
  %v4953 = vpop.permute.xlu0 %4952
  %4954 = vrot.lane.b32.xlu0 %v4737, 48
  %v4955 = vpop.permute.xlu0 %4954
  %4956 = vrot.lane.b32.xlu0 %v4739, 48
  %v4957 = vpop.permute.xlu0 %4956
  %4962 = vst.msk [vmem:[%s21 + $0x8] sm:$0xff] %vm4813, %v4951
  %4963 = vst.msk [vmem:[%s21 + $0x18] sm:$0xff] %vm4813, %v4953
  %4964 = vst.msk [vmem:[%s21 + $0x28] sm:$0xff] %vm4813, %v4955
  %4965 = vst.msk [vmem:[%s21 + $0x38] sm:$0xff] %vm4813, %v4957
  %4970 = vrot.lane.b32.xlu0 %v4622, 64
  %v4971 = vpop.permute.xlu0 %4970
  %4972 = vrot.lane.b32.xlu0 %v4624, 64
  %v4973 = vpop.permute.xlu0 %4972
  %4974 = vrot.lane.b32.xlu0 %v4627, 64
  %v4975 = vpop.permute.xlu0 %4974
  %4976 = vrot.lane.b32.xlu0 %v4629, 64
  %v4977 = vpop.permute.xlu0 %4976
  %4982 = vst.msk [vmem:[%s21 + $0x8] sm:$0xff] %vm4834, %v4971
  %4983 = vst.msk [vmem:[%s21 + $0x18] sm:$0xff] %vm4834, %v4973
  %4984 = vst.msk [vmem:[%s21 + $0x28] sm:$0xff] %vm4834, %v4975
  %4985 = vst.msk [vmem:[%s21 + $0x38] sm:$0xff] %vm4834, %v4977
  %4990 = vrot.lane.b32.xlu0 %v4662, 80
  %v4991 = vpop.permute.xlu0 %4990
  %4992 = vrot.lane.b32.xlu0 %v4664, 80
  %v4993 = vpop.permute.xlu0 %4992
  %4994 = vrot.lane.b32.xlu0 %v4667, 80
  %v4995 = vpop.permute.xlu0 %4994
  %4996 = vrot.lane.b32.xlu0 %v4669, 80
  %v4997 = vpop.permute.xlu0 %4996
  %5002 = vst.msk [vmem:[%s21 + $0x8] sm:$0xff] %vm4855, %v4991
  %5003 = vst.msk [vmem:[%s21 + $0x18] sm:$0xff] %vm4855, %v4993
  %5004 = vst.msk [vmem:[%s21 + $0x28] sm:$0xff] %vm4855, %v4995
  %5005 = vst.msk [vmem:[%s21 + $0x38] sm:$0xff] %vm4855, %v4997
  %5010 = vrot.lane.b32.xlu0 %v4702, 96
  %v5011 = vpop.permute.xlu0 %5010
  %5012 = vrot.lane.b32.xlu0 %v4704, 96
  %v5013 = vpop.permute.xlu0 %5012
  %5014 = vrot.lane.b32.xlu0 %v4707, 96
  %v5015 = vpop.permute.xlu0 %5014
  %5016 = vrot.lane.b32.xlu0 %v4709, 96
  %v5017 = vpop.permute.xlu0 %5016
  %5022 = vst.msk [vmem:[%s21 + $0x8] sm:$0xff] %vm4876, %v5011
  %5023 = vst.msk [vmem:[%s21 + $0x18] sm:$0xff] %vm4876, %v5013
  %5024 = vst.msk [vmem:[%s21 + $0x28] sm:$0xff] %vm4876, %v5015
  %5025 = vst.msk [vmem:[%s21 + $0x38] sm:$0xff] %vm4876, %v5017
  %5030 = vrot.lane.b32.xlu0 %v4742, 112
  %v5031 = vpop.permute.xlu0 %5030
  %5032 = vrot.lane.b32.xlu0 %v4744, 112
  %v5033 = vpop.permute.xlu0 %5032
  %5034 = vrot.lane.b32.xlu0 %v4747, 112
  %v5035 = vpop.permute.xlu0 %5034
  %5036 = vrot.lane.b32.xlu0 %v4749, 112
  %v5037 = vpop.permute.xlu0 %5036
  %5042 = vst.msk [vmem:[%s21 + $0x8] sm:$0xff] %vm4897, %v5031
  %5043 = vst.msk [vmem:[%s21 + $0x18] sm:$0xff] %vm4897, %v5033
  %5044 = vst.msk [vmem:[%s21 + $0x28] sm:$0xff] %vm4897, %v5035
  %5045 = vst.msk [vmem:[%s21 + $0x38] sm:$0xff] %vm4897, %v5037
  // Predicated region
  $region86: #{forward.1} parent=0 // pred_check
    _
  $region87: #{forward.1} parent=0 // pred_check_branch
    %5047 = sbr.rel (0) target = $region89
  $region88: #{forward.1} parent=0 // pred_region
    _
  $region89: #{forward.1} parent=0 // pred_fallthru
    _
  // Predicated region
  $region90: #{forward.1} parent=0 // pred_check
    _
  $region91: #{forward.1} parent=0 // pred_check_branch
    %5049 = sbr.rel (0) target = $region93
  $region92: #{forward.1} parent=0 // pred_region
    _
  $region93: #{forward.1} parent=0 // pred_fallthru
    _

</llo_original>
